<compile_context>
chip_gen: v7x
topology: tpu7x:2x2x1
jax: 0.10.0
libtpu: 0.0.40
codegen_flags: <defaults>
</compile_context>

<pallas_src>
import functools

import jax
import jax.numpy as jnp
from jax.experimental import pallas as pl
from jax.experimental.pallas import tpu as pltpu

H1 = 500   # first hidden width  (padded to 512 inside the wrapper)
H2 = 2000  # second hidden width (padded to 2048 inside the wrapper)


def _round_up(x, m):
    return (x + m - 1) // m * m


def _pad2(a, target_shape):
    pads = [(0, t - s) for s, t in zip(a.shape, target_shape)]
    return jnp.pad(a, pads)


def _encoder2_kernel(x_ref, w1_ref, b1_ref, w2_ref, b2_ref, w3_ref, b3_ref, o_ref):
    # Layer 1: Linear(D -> 500) + ReLU   (bf16 MXU matmul, f32 accumulation)
    h1 = jnp.dot(x_ref[...], w1_ref[...], preferred_element_type=jnp.float32)
    h1 = jnp.maximum(h1 + b1_ref[...], 0.0)

    # Layer 2: Linear(500 -> 2000) + ReLU
    h2 = jnp.dot(h1.astype(jnp.bfloat16), w2_ref[...],
                 preferred_element_type=jnp.float32)
    h2 = jnp.maximum(h2 + b2_ref[...], 0.0)

    # Layer 3: Linear(2000 -> output_dim) + ReLU
    h3 = jnp.dot(h2.astype(jnp.bfloat16), w3_ref[...],
                 preferred_element_type=jnp.float32)
    o_ref[...] = jnp.maximum(h3 + b3_ref[...], 0.0).astype(o_ref.dtype)


@functools.partial(jax.jit, static_argnames=("batch_tile",))
def encoder2_forward(x, params, batch_tile=256):
    """x: [B, D] float32. params: dict of w1,b1,w2,b2,w3,b3 ([in,out] weights)."""
    B, D = x.shape
    output_dim = params["w3"].shape[1]

    # MXU-aligned (padded) dimensions.
    d_pad = _round_up(D, 128)
    h1_pad = _round_up(H1, 128)
    h2_pad = _round_up(H2, 128)
    out_pad = _round_up(output_dim, 128)

    # Pick the batch tile; shrink it for small batches so we never allocate a
    # tile much larger than the (padded) batch itself.
    bt = batch_tile if B >= batch_tile else _round_up(B, 16)
    b_pad = _round_up(B, bt)

    bf16 = jnp.bfloat16
    x_p = _pad2(x, (b_pad, d_pad)).astype(bf16)
    w1 = _pad2(params["w1"], (d_pad, h1_pad)).astype(bf16)
    b1 = _pad2(params["b1"], (1, h1_pad))                      # f32 bias
    w2 = _pad2(params["w2"], (h1_pad, h2_pad)).astype(bf16)
    b2 = _pad2(params["b2"], (1, h2_pad))
    w3 = _pad2(params["w3"], (h2_pad, out_pad)).astype(bf16)
    b3 = _pad2(params["b3"], (1, out_pad))

    grid = (b_pad // bt,)

    # Weights/biases: constant index_map -> fetched once, resident across the
    # whole batch grid.  (Total bf16 weight footprint < 5 MiB, so default
    # double-buffering is harmless; pl.Buffered(1) not needed.)
    full = lambda shape: pl.BlockSpec(shape, lambda i: (0, 0))

    out = pl.pallas_call(
        _encoder2_kernel,
        out_shape=jax.ShapeDtypeStruct((b_pad, out_pad), jnp.float32),
        grid_spec=pltpu.PrefetchScalarGridSpec(
            num_scalar_prefetch=0,
            grid=grid,
            in_specs=[
                pl.BlockSpec((bt, d_pad), lambda i: (i, 0)),  # x tile
                full((d_pad, h1_pad)),                        # w1
                full((1, h1_pad)),                            # b1
                full((h1_pad, h2_pad)),                       # w2
                full((1, h2_pad)),                            # b2
                full((h2_pad, out_pad)),                      # w3
                full((1, out_pad)),                           # b3
            ],
            out_specs=pl.BlockSpec((bt, out_pad), lambda i: (i, 0)),
        ),
        compiler_params=pltpu.CompilerParams(
            dimension_semantics=("parallel",),   # shards batch tiles across TCs on v7x
            vmem_limit_bytes=48 << 20,           # < 64 MiB physical VMEM on v7x
        ),
    )(x_p, w1, b1, w2, b2, w3, b3)

    # Drop batch / feature padding.
    return out[:B, :output_dim]


def init_params(key, input_dim, output_dim):
    """Deterministic synthetic parameters (Kaiming-ish uniform like torch)."""
    ks = jax.random.split(key, 6)

    def lin(kw, kb, fan_in, fan_out):
        bound = 1.0 / jnp.sqrt(fan_in)
        # stored as [in, out] (transposed vs torch's [out, in])
        w = jax.random.uniform(kw, (fan_in, fan_out), jnp.float32, -bound, bound)
        b = jax.random.uniform(kb, (1, fan_out), jnp.float32, -bound, bound)
        return w, b

    w1, b1 = lin(ks[0], ks[1], input_dim, H1)
    w2, b2 = lin(ks[2], ks[3], H1, H2)
    w3, b3 = lin(ks[4], ks[5], H2, output_dim)
    return {"w1": w1, "b1": b1, "w2": w2, "b2": b2, "w3": w3, "b3": b3}


def reference_forward(x, p):
    """Pure-JAX reference mirroring the kernel's bf16-in / f32-accumulate math."""
    bf16 = jnp.bfloat16

    def lin(h, w, b):
        return jnp.dot(h.astype(bf16), w.astype(bf16),
                       preferred_element_type=jnp.float32) + b

    h1 = jnp.maximum(lin(x, p["w1"], p["b1"]), 0.0)
    h2 = jnp.maximum(lin(h1, p["w2"], p["b2"]), 0.0)
    return jnp.maximum(lin(h2, p["w3"], p["b3"]), 0.0)


if __name__ == "__main__":
    key = jax.random.PRNGKey(0)
    k_x, k_p = jax.random.split(key)

    batch, input_dim, output_dim = 8, 32, 10
    x = jax.random.normal(k_x, (batch, input_dim), jnp.float32)
    params = init_params(k_p, input_dim, output_dim)

    out = encoder2_forward(x, params)
    out = jax.block_until_ready(out)

    ref = reference_forward(x, params)
    assert out.shape == (batch, output_dim), out.shape
    assert jnp.allclose(out, ref, atol=5e-3, rtol=5e-3), "mismatch vs reference"

    print("KERNEL_OK")
</pallas_src>

<mosaic_0001>
module attributes {stable_mosaic.version = 11 : i64} {
  func.func @_encoder2_kernel(%arg0: i32, %arg1: memref<16x128xbf16, #tpu.memory_space<vmem>>, %arg2: memref<128x512xbf16, #tpu.memory_space<vmem>>, %arg3: memref<1x512xf32, #tpu.memory_space<vmem>>, %arg4: memref<512x2048xbf16, #tpu.memory_space<vmem>>, %arg5: memref<1x2048xf32, #tpu.memory_space<vmem>>, %arg6: memref<2048x128xbf16, #tpu.memory_space<vmem>>, %arg7: memref<1x128xf32, #tpu.memory_space<vmem>>, %arg8: memref<16x128xf32, #tpu.memory_space<vmem>>) attributes {dimension_semantics = [#tpu.dimension_semantics<parallel>], iteration_bounds = array<i64: 1>, scalar_prefetch = 0 : i64, scratch_operands = 0 : i64, tpu.core_type = #tpu.core_type<tc>, window_params = [{transform_indices = @transform_0, window_bounds = array<i64: 16, 128>}, {pipeline_mode = #tpu.pipeline_mode<synchronous>, transform_indices = @transform_1, window_bounds = array<i64: 128, 512>}, {pipeline_mode = #tpu.pipeline_mode<synchronous>, transform_indices = @transform_2, window_bounds = array<i64: 1, 512>}, {pipeline_mode = #tpu.pipeline_mode<synchronous>, transform_indices = @transform_3, window_bounds = array<i64: 512, 2048>}, {pipeline_mode = #tpu.pipeline_mode<synchronous>, transform_indices = @transform_4, window_bounds = array<i64: 1, 2048>}, {pipeline_mode = #tpu.pipeline_mode<synchronous>, transform_indices = @transform_5, window_bounds = array<i64: 2048, 128>}, {pipeline_mode = #tpu.pipeline_mode<synchronous>, transform_indices = @transform_6, window_bounds = array<i64: 1, 128>}, {transform_indices = @transform_7, window_bounds = array<i64: 16, 128>}]} {
    %c0 = arith.constant 0 : index
    %c0_0 = arith.constant 0 : index
    %0 = vector.load %arg1[%c0, %c0_0] : memref<16x128xbf16, #tpu.memory_space<vmem>>, vector<16x128xbf16>
    %c0_1 = arith.constant 0 : index
    %c0_2 = arith.constant 0 : index
    %1 = vector.load %arg2[%c0_1, %c0_2] : memref<128x512xbf16, #tpu.memory_space<vmem>>, vector<128x512xbf16>
    %cst = arith.constant dense<0.000000e+00> : vector<16x512xf32>
    %2 = tpu.matmul %0, %1, %cst {dimension_numbers = #tpu.dot_dimension_numbers<[1], [0], [0], [1], [0, 0, 1, 1], [], []>} : vector<16x128xbf16>, vector<128x512xbf16>, vector<16x512xf32> -> vector<16x512xf32>
    %c0_3 = arith.constant 0 : index
    %c0_4 = arith.constant 0 : index
    %3 = vector.load %arg3[%c0_3, %c0_4] : memref<1x512xf32, #tpu.memory_space<vmem>>, vector<1x512xf32>
    %4 = vector.broadcast %3 : vector<1x512xf32> to vector<16x512xf32>
    %5 = arith.addf %2, %4 : vector<16x512xf32>
    %cst_5 = arith.constant 0.000000e+00 : f32
    %6 = vector.broadcast %cst_5 : f32 to vector<16x512xf32>
    %7 = arith.maximumf %5, %6 : vector<16x512xf32>
    %8 = arith.truncf %7 : vector<16x512xf32> to vector<16x512xbf16>
    %c0_6 = arith.constant 0 : index
    %c0_7 = arith.constant 0 : index
    %9 = vector.load %arg4[%c0_6, %c0_7] : memref<512x2048xbf16, #tpu.memory_space<vmem>>, vector<512x2048xbf16>
    %cst_8 = arith.constant dense<0.000000e+00> : vector<16x2048xf32>
    %10 = tpu.matmul %8, %9, %cst_8 {dimension_numbers = #tpu.dot_dimension_numbers<[1], [0], [0], [1], [0, 0, 1, 1], [], []>} : vector<16x512xbf16>, vector<512x2048xbf16>, vector<16x2048xf32> -> vector<16x2048xf32>
    %c0_9 = arith.constant 0 : index
    %c0_10 = arith.constant 0 : index
    %11 = vector.load %arg5[%c0_9, %c0_10] : memref<1x2048xf32, #tpu.memory_space<vmem>>, vector<1x2048xf32>
    %12 = vector.broadcast %11 : vector<1x2048xf32> to vector<16x2048xf32>
    %13 = arith.addf %10, %12 : vector<16x2048xf32>
    %cst_11 = arith.constant 0.000000e+00 : f32
    %14 = vector.broadcast %cst_11 : f32 to vector<16x2048xf32>
    %15 = arith.maximumf %13, %14 : vector<16x2048xf32>
    %16 = arith.truncf %15 : vector<16x2048xf32> to vector<16x2048xbf16>
    %c0_12 = arith.constant 0 : index
    %c0_13 = arith.constant 0 : index
    %17 = vector.load %arg6[%c0_12, %c0_13] : memref<2048x128xbf16, #tpu.memory_space<vmem>>, vector<2048x128xbf16>
    %cst_14 = arith.constant dense<0.000000e+00> : vector<16x128xf32>
    %18 = tpu.matmul %16, %17, %cst_14 {dimension_numbers = #tpu.dot_dimension_numbers<[1], [0], [0], [1], [0, 0, 1, 1], [], []>} : vector<16x2048xbf16>, vector<2048x128xbf16>, vector<16x128xf32> -> vector<16x128xf32>
    %c0_15 = arith.constant 0 : index
    %c0_16 = arith.constant 0 : index
    %19 = vector.load %arg7[%c0_15, %c0_16] : memref<1x128xf32, #tpu.memory_space<vmem>>, vector<1x128xf32>
    %20 = vector.broadcast %19 : vector<1x128xf32> to vector<16x128xf32>
    %21 = arith.addf %18, %20 : vector<16x128xf32>
    %cst_17 = arith.constant 0.000000e+00 : f32
    %22 = vector.broadcast %cst_17 : f32 to vector<16x128xf32>
    %23 = arith.maximumf %21, %22 : vector<16x128xf32>
    %c0_18 = arith.constant 0 : index
    %c0_19 = arith.constant 0 : index
    %24 = vector.load %arg8[%c0_18, %c0_19] : memref<16x128xf32, #tpu.memory_space<vmem>>, vector<16x128xf32>
    tpu.vector_store %arg8[%c0_18, %c0_19], %23 {strides = array<i32>} : memref<16x128xf32, #tpu.memory_space<vmem>>, vector<16x128xf32>,
    return
  }
  func.func @transform_0(%arg0: i32) -> (i32, i32) {
    %c0_i32 = arith.constant 0 : i32
    %c0_i32_0 = arith.constant 0 : i32
    return %arg0, %c0_i32 : i32, i32
  }
  func.func @transform_1(%arg0: i32) -> (i32, i32) {
    %c0_i32 = arith.constant 0 : i32
    %c0_i32_0 = arith.constant 0 : i32
    %c0_i32_1 = arith.constant 0 : i32
    return %c0_i32, %c0_i32_0 : i32, i32
  }
  func.func @transform_2(%arg0: i32) -> (i32, i32) {
    %c0_i32 = arith.constant 0 : i32
    %c0_i32_0 = arith.constant 0 : i32
    %c0_i32_1 = arith.constant 0 : i32
    return %c0_i32, %c0_i32_0 : i32, i32
  }
  func.func @transform_3(%arg0: i32) -> (i32, i32) {
    %c0_i32 = arith.constant 0 : i32
    %c0_i32_0 = arith.constant 0 : i32
    %c0_i32_1 = arith.constant 0 : i32
    return %c0_i32, %c0_i32_0 : i32, i32
  }
  func.func @transform_4(%arg0: i32) -> (i32, i32) {
    %c0_i32 = arith.constant 0 : i32
    %c0_i32_0 = arith.constant 0 : i32
    %c0_i32_1 = arith.constant 0 : i32
    return %c0_i32, %c0_i32_0 : i32, i32
  }
  func.func @transform_5(%arg0: i32) -> (i32, i32) {
    %c0_i32 = arith.constant 0 : i32
    %c0_i32_0 = arith.constant 0 : i32
    %c0_i32_1 = arith.constant 0 : i32
    return %c0_i32, %c0_i32_0 : i32, i32
  }
  func.func @transform_6(%arg0: i32) -> (i32, i32) {
    %c0_i32 = arith.constant 0 : i32
    %c0_i32_0 = arith.constant 0 : i32
    %c0_i32_1 = arith.constant 0 : i32
    return %c0_i32, %c0_i32_0 : i32, i32
  }
  func.func @transform_7(%arg0: i32) -> (i32, i32) {
    %c0_i32 = arith.constant 0 : i32
    %c0_i32_0 = arith.constant 0 : i32
    return %arg0, %c0_i32 : i32, i32
  }
}

</mosaic_0001>

<llo_original>
// kernel: encoder2_forward.1
$region0: #{encoder2_forward.1}
  #allocation0 [shape = 'u32[]', space=smem, size = 0x4, offset = 0x4, fixed_abs, tag = 'smem constant byte address 0x4 - core index']
  #allocation1 [shape = 'u32[144,128]{1,0:T(1,128)}', space=vmem, size = 0x12000, scoped, tag = 'internal scratch']
  %s0 = inlined_call_operand.vmem [shape: bf16[16,128], index: 0, kind: input, shape index: {}]
  %s1 = inlined_call_operand.vmem [shape: bf16[128,512], index: 1, kind: input, shape index: {}]
  %s2 = inlined_call_operand.vmem [shape: f32[1,512], index: 2, kind: input, shape index: {}]
  %s3 = inlined_call_operand.vmem [shape: bf16[512,2048], index: 3, kind: input, shape index: {}]
  %s4 = inlined_call_operand.vmem [shape: f32[1,2048], index: 4, kind: input, shape index: {}]
  %s5 = inlined_call_operand.vmem [shape: bf16[2048,128], index: 5, kind: input, shape index: {}]
  %s6 = inlined_call_operand.vmem [shape: f32[1,128], index: 6, kind: input, shape index: {}]
  %s7 = inlined_call_operand.vmem [shape: f32[16,128], index: 7, kind: output, shape index: {}]
  %s8 = sld [smem:[#allocation0]]
  $region38: #{encoder2_forward.1} parent=0
    _
  %s10 = ssub.s32 1, %s8
  %s11 = scalar_select 0, %s10, %s8
  // Predicated region
  $region2: #{encoder2_forward.1} parent=0 // pred_check
    _
  $region3: #{encoder2_forward.1} parent=0 // pred_check_branch
    %13 = sbr.rel (0) target = $region5
  $region4: #{encoder2_forward.1} parent=0 // pred_region
    _
  $region5: #{encoder2_forward.1} parent=0 // pred_fallthru
    _
  // Predicated region
  $region6: #{encoder2_forward.1} parent=0 // pred_check
    _
  $region7: #{encoder2_forward.1} parent=0 // pred_check_branch
    %15 = sbr.rel (0) target = $region9
  $region8: #{encoder2_forward.1} parent=0 // pred_region
    _
  $region9: #{encoder2_forward.1} parent=0 // pred_fallthru
    _
  // Predicated region
  $region10: #{encoder2_forward.1} parent=0 // pred_check
    _
  $region11: #{encoder2_forward.1} parent=0 // pred_check_branch
    %17 = sbr.rel (0) target = $region13
  $region12: #{encoder2_forward.1} parent=0 // pred_region
    _
  $region13: #{encoder2_forward.1} parent=0 // pred_fallthru
    _
  // Predicated region
  $region14: #{encoder2_forward.1} parent=0 // pred_check
    _
  $region15: #{encoder2_forward.1} parent=0 // pred_check_branch
    %19 = sbr.rel (0) target = $region17
  $region16: #{encoder2_forward.1} parent=0 // pred_region
    _
  $region17: #{encoder2_forward.1} parent=0 // pred_fallthru
    _
  // Predicated region
  $region18: #{encoder2_forward.1} parent=0 // pred_check
    _
  $region19: #{encoder2_forward.1} parent=0 // pred_check_branch
    %21 = sbr.rel (0) target = $region21
  $region20: #{encoder2_forward.1} parent=0 // pred_region
    _
  $region21: #{encoder2_forward.1} parent=0 // pred_fallthru
    _
  // Predicated region
  $region22: #{encoder2_forward.1} parent=0 // pred_check
    _
  $region23: #{encoder2_forward.1} parent=0 // pred_check_branch
    %23 = sbr.rel (0) target = $region25
  $region24: #{encoder2_forward.1} parent=0 // pred_region
    _
  $region25: #{encoder2_forward.1} parent=0 // pred_fallthru
    _
  // Predicated region
  $region26: #{encoder2_forward.1} parent=0 // pred_check
    _
  $region27: #{encoder2_forward.1} parent=0 // pred_check_branch
    %25 = sbr.rel (0) target = $region29
  $region28: #{encoder2_forward.1} parent=0 // pred_region
    _
  $region29: #{encoder2_forward.1} parent=0 // pred_fallthru
    _
  %v27 = vld [vmem:[%s0] sm:$0xf]
  %v28 = vld [vmem:[%s0 + $0x4] sm:$0xf]
  %v29 = vld [vmem:[%s1] sm:$0xff]
  %v30 = vld [vmem:[%s1 + $0x8] sm:$0xff]
  %v31 = vld [vmem:[%s1 + $0x10] sm:$0xff]
  %v32 = vld [vmem:[%s1 + $0x18] sm:$0xff]
  %v33 = vld [vmem:[%s1 + $0x20] sm:$0xff]
  %v34 = vld [vmem:[%s1 + $0x28] sm:$0xff]
  %v35 = vld [vmem:[%s1 + $0x30] sm:$0xff]
  %v36 = vld [vmem:[%s1 + $0x38] sm:$0xff]
  %v37 = vld [vmem:[%s1 + $0x40] sm:$0xff]
  %v38 = vld [vmem:[%s1 + $0x48] sm:$0xff]
  %v39 = vld [vmem:[%s1 + $0x50] sm:$0xff]
  %v40 = vld [vmem:[%s1 + $0x58] sm:$0xff]
  %v41 = vld [vmem:[%s1 + $0x60] sm:$0xff]
  %v42 = vld [vmem:[%s1 + $0x68] sm:$0xff]
  %v43 = vld [vmem:[%s1 + $0x70] sm:$0xff]
  %v44 = vld [vmem:[%s1 + $0x78] sm:$0xff]
  %v45 = vld [vmem:[%s1 + $0x80] sm:$0xff]
  %v46 = vld [vmem:[%s1 + $0x88] sm:$0xff]
  %v47 = vld [vmem:[%s1 + $0x90] sm:$0xff]
  %v48 = vld [vmem:[%s1 + $0x98] sm:$0xff]
  %v49 = vld [vmem:[%s1 + $0xa0] sm:$0xff]
  %v50 = vld [vmem:[%s1 + $0xa8] sm:$0xff]
  %v51 = vld [vmem:[%s1 + $0xb0] sm:$0xff]
  %v52 = vld [vmem:[%s1 + $0xb8] sm:$0xff]
  %v53 = vld [vmem:[%s1 + $0xc0] sm:$0xff]
  %v54 = vld [vmem:[%s1 + $0xc8] sm:$0xff]
  %v55 = vld [vmem:[%s1 + $0xd0] sm:$0xff]
  %v56 = vld [vmem:[%s1 + $0xd8] sm:$0xff]
  %v57 = vld [vmem:[%s1 + $0xe0] sm:$0xff]
  %v58 = vld [vmem:[%s1 + $0xe8] sm:$0xff]
  %v59 = vld [vmem:[%s1 + $0xf0] sm:$0xff]
  %v60 = vld [vmem:[%s1 + $0xf8] sm:$0xff]
  %v61 = vld [vmem:[%s2] sm:$0xf]
  %v63 = vlaneseq
  %v64 = vshrl.u32 %v63, 7
  %v65 = vsub.s32 0, %v64
  %v66 = vrot.slane %v61, %v65
  %v67 = vlaneseq
  %v68 = vshrl.u32 %v67, 7
  %v69 = vsub.s32 1, %v68
  %v70 = vrot.slane %v61, %v69
  %v71 = vlaneseq
  %v72 = vshrl.u32 %v71, 7
  %v73 = vsub.s32 2, %v72
  %v74 = vrot.slane %v61, %v73
  %v75 = vlaneseq
  %v76 = vshrl.u32 %v75, 7
  %v77 = vsub.s32 3, %v76
  %v78 = vrot.slane %v61, %v77
  %v85 = vunpack.c.l.b16 %v27
  %v86 = vunpack.c.l.b16 %v28
  %v87 = vpack.c.b16 %v86, %v85
  %v121 = vunpack.c.l.b16 %v29
  %v122 = vunpack.c.h.b16 %v29
  %v123 = vunpack.c.l.b16 %v30
  %v124 = vunpack.c.h.b16 %v30
  %v125 = vunpack.c.l.b16 %v31
  %v126 = vunpack.c.h.b16 %v31
  %v127 = vunpack.c.l.b16 %v32
  %v128 = vunpack.c.h.b16 %v32
  %v129 = vunpack.c.l.b16 %v33
  %v130 = vunpack.c.h.b16 %v33
  %v131 = vunpack.c.l.b16 %v34
  %v132 = vunpack.c.h.b16 %v34
  %v133 = vunpack.c.l.b16 %v35
  %v134 = vunpack.c.h.b16 %v35
  %v135 = vunpack.c.l.b16 %v36
  %v136 = vunpack.c.h.b16 %v36
  %v137 = vunpack.c.l.b16 %v37
  %v138 = vunpack.c.h.b16 %v37
  %v139 = vunpack.c.l.b16 %v38
  %v140 = vunpack.c.h.b16 %v38
  %v141 = vunpack.c.l.b16 %v39
  %v142 = vunpack.c.h.b16 %v39
  %v143 = vunpack.c.l.b16 %v40
  %v144 = vunpack.c.h.b16 %v40
  %v145 = vunpack.c.l.b16 %v41
  %v146 = vunpack.c.h.b16 %v41
  %v147 = vunpack.c.l.b16 %v42
  %v148 = vunpack.c.h.b16 %v42
  %v149 = vunpack.c.l.b16 %v43
  %v150 = vunpack.c.h.b16 %v43
  %v151 = vunpack.c.l.b16 %v44
  %v152 = vunpack.c.h.b16 %v44
  %v153 = vunpack.c.l.b16 %v45
  %v154 = vunpack.c.h.b16 %v45
  %v155 = vunpack.c.l.b16 %v46
  %v156 = vunpack.c.h.b16 %v46
  %v157 = vunpack.c.l.b16 %v47
  %v158 = vunpack.c.h.b16 %v47
  %v159 = vunpack.c.l.b16 %v48
  %v160 = vunpack.c.h.b16 %v48
  %v161 = vunpack.c.l.b16 %v49
  %v162 = vunpack.c.h.b16 %v49
  %v163 = vunpack.c.l.b16 %v50
  %v164 = vunpack.c.h.b16 %v50
  %v165 = vunpack.c.l.b16 %v51
  %v166 = vunpack.c.h.b16 %v51
  %v167 = vunpack.c.l.b16 %v52
  %v168 = vunpack.c.h.b16 %v52
  %v169 = vunpack.c.l.b16 %v53
  %v170 = vunpack.c.h.b16 %v53
  %v171 = vunpack.c.l.b16 %v54
  %v172 = vunpack.c.h.b16 %v54
  %v173 = vunpack.c.l.b16 %v55
  %v174 = vunpack.c.h.b16 %v55
  %v175 = vunpack.c.l.b16 %v56
  %v176 = vunpack.c.h.b16 %v56
  %v177 = vunpack.c.l.b16 %v57
  %v178 = vunpack.c.h.b16 %v57
  %v179 = vunpack.c.l.b16 %v58
  %v180 = vunpack.c.h.b16 %v58
  %v181 = vunpack.c.l.b16 %v59
  %v182 = vunpack.c.h.b16 %v59
  %v183 = vunpack.c.l.b16 %v60
  %v184 = vunpack.c.h.b16 %v60
  %v185 = vpack.c.b16 %v125, %v121
  %v186 = vpack.c.b16 %v126, %v122
  %v187 = vpack.c.b16 %v127, %v123
  %v188 = vpack.c.b16 %v128, %v124
  %v189 = vpack.c.b16 %v133, %v129
  %v190 = vpack.c.b16 %v134, %v130
  %v191 = vpack.c.b16 %v135, %v131
  %v192 = vpack.c.b16 %v136, %v132
  %v193 = vpack.c.b16 %v141, %v137
  %v194 = vpack.c.b16 %v142, %v138
  %v195 = vpack.c.b16 %v143, %v139
  %v196 = vpack.c.b16 %v144, %v140
  %v197 = vpack.c.b16 %v149, %v145
  %v198 = vpack.c.b16 %v150, %v146
  %v199 = vpack.c.b16 %v151, %v147
  %v200 = vpack.c.b16 %v152, %v148
  %v201 = vpack.c.b16 %v157, %v153
  %v202 = vpack.c.b16 %v158, %v154
  %v203 = vpack.c.b16 %v159, %v155
  %v204 = vpack.c.b16 %v160, %v156
  %v205 = vpack.c.b16 %v165, %v161
  %v206 = vpack.c.b16 %v166, %v162
  %v207 = vpack.c.b16 %v167, %v163
  %v208 = vpack.c.b16 %v168, %v164
  %v209 = vpack.c.b16 %v173, %v169
  %v210 = vpack.c.b16 %v174, %v170
  %v211 = vpack.c.b16 %v175, %v171
  %v212 = vpack.c.b16 %v176, %v172
  %v213 = vpack.c.b16 %v181, %v177
  %v214 = vpack.c.b16 %v182, %v178
  %v215 = vpack.c.b16 %v183, %v179
  %v216 = vpack.c.b16 %v184, %v180
  %249 = vmatprep.subr.bf16.mxu0 %v186
  %250 = vmatpush1.bf16.msra.mxu0 %v185
  %251 = vmatprep.subr.bf16.mxu0 %v190
  %252 = vmatpush1.bf16.msra.mxu0 %v189
  %253 = vmatprep.subr.bf16.mxu0 %v194
  %254 = vmatpush1.bf16.msra.mxu0 %v193
  %255 = vmatprep.subr.bf16.mxu0 %v198
  %256 = vmatpush1.bf16.msra.mxu0 %v197
  %257 = vmatprep.subr.bf16.mxu0 %v202
  %258 = vmatpush1.bf16.msra.mxu0 %v201
  %259 = vmatprep.subr.bf16.mxu0 %v206
  %260 = vmatpush1.bf16.msra.mxu0 %v205
  %261 = vmatprep.subr.bf16.mxu0 %v210
  %262 = vmatpush1.bf16.msra.mxu0 %v209
  %263 = vmatprep.subr.bf16.mxu0 %v214
  %264 = vmatpush1.bf16.msra.mxu0 %v213
  %265 = vmatprep.subr.bf16.mxu0 0
  %266 = vmatpush1.bf16.msra.mxu0 0
  %267 = vmatprep.subr.bf16.mxu0 0
  %268 = vmatpush1.bf16.msra.mxu0 0
  %269 = vmatprep.subr.bf16.mxu0 0
  %270 = vmatpush1.bf16.msra.mxu0 0
  %271 = vmatprep.subr.bf16.mxu0 0
  %272 = vmatpush1.bf16.msra.mxu0 0
  %273 = vmatprep.subr.bf16.mxu0 0
  %274 = vmatpush1.bf16.msra.mxu0 0
  %275 = vmatprep.subr.bf16.mxu0 0
  %276 = vmatpush1.bf16.msra.mxu0 0
  %277 = vmatprep.subr.bf16.mxu0 0
  %278 = vmatpush1.bf16.msra.mxu0 0
  %279 = vmatprep.subr.bf16.mxu0 0
  %280 = vmatpush1.bf16.msra.mxu0 0
  %281 = vmatprep.mubr.bf16.mxu0 0
  %282 = vmatmul.mubr.bf16.gmra.mrb[0].mxu0 %v87
  %v283 = vpop.f32.mrb[0].mxu0
  %v284 = vadd.f32 %v66, %v283
  %v285 = vpop.f32.mrb[0].mxu0
  %v286 = vadd.f32 %v70, %v285
  %v287 = vpop.f32.mrb[0].mxu0
  %v288 = vadd.f32 %v66, %v287
  %v289 = vpop.f32.mrb[0].mxu0
  %v290 = vadd.f32 %v70, %v289
  %291 = vdwg.mxu0
  %292 = vmatprep.subr.bf16.mxu0 %v188
  %293 = vmatpush1.bf16.msra.mxu0 %v187
  %294 = vmatprep.subr.bf16.mxu0 %v192
  %295 = vmatpush1.bf16.msra.mxu0 %v191
  %296 = vmatprep.subr.bf16.mxu0 %v196
  %297 = vmatpush1.bf16.msra.mxu0 %v195
  %298 = vmatprep.subr.bf16.mxu0 %v200
  %299 = vmatpush1.bf16.msra.mxu0 %v199
  %300 = vmatprep.subr.bf16.mxu0 %v204
  %301 = vmatpush1.bf16.msra.mxu0 %v203
  %302 = vmatprep.subr.bf16.mxu0 %v208
  %303 = vmatpush1.bf16.msra.mxu0 %v207
  %304 = vmatprep.subr.bf16.mxu0 %v212
  %305 = vmatpush1.bf16.msra.mxu0 %v211
  %306 = vmatprep.subr.bf16.mxu0 %v216
  %307 = vmatpush1.bf16.msra.mxu0 %v215
  %308 = vmatprep.subr.bf16.mxu0 0
  %309 = vmatpush1.bf16.msra.mxu0 0
  %310 = vmatprep.subr.bf16.mxu0 0
  %311 = vmatpush1.bf16.msra.mxu0 0
  %312 = vmatprep.subr.bf16.mxu0 0
  %313 = vmatpush1.bf16.msra.mxu0 0
  %314 = vmatprep.subr.bf16.mxu0 0
  %315 = vmatpush1.bf16.msra.mxu0 0
  %316 = vmatprep.subr.bf16.mxu0 0
  %317 = vmatpush1.bf16.msra.mxu0 0
  %318 = vmatprep.subr.bf16.mxu0 0
  %319 = vmatpush1.bf16.msra.mxu0 0
  %320 = vmatprep.subr.bf16.mxu0 0
  %321 = vmatpush1.bf16.msra.mxu0 0
  %322 = vmatprep.subr.bf16.mxu0 0
  %323 = vmatpush1.bf16.msra.mxu0 0
  %324 = vmatprep.mubr.bf16.mxu0 0
  %325 = vmatmul.mubr.bf16.gmra.mrb[0].mxu0 %v87
  %v326 = vpop.f32.mrb[0].mxu0
  %v327 = vadd.f32 %v74, %v326
  %v328 = vpop.f32.mrb[0].mxu0
  %v329 = vadd.f32 %v78, %v328
  %v330 = vpop.f32.mrb[0].mxu0
  %v331 = vadd.f32 %v74, %v330
  %v332 = vpop.f32.mrb[0].mxu0
  %v333 = vadd.f32 %v78, %v332
  %334 = vdwg.mxu0
  %v335 = vmax.f32 %v284, 0.0
  %v336 = vmax.f32 %v286, 0.0
  %v337 = vmax.f32 %v327, 0.0
  %v338 = vmax.f32 %v329, 0.0
  %v339 = vmax.f32 %v288, 0.0
  %v340 = vmax.f32 %v290, 0.0
  %v341 = vmax.f32 %v331, 0.0
  %v342 = vmax.f32 %v333, 0.0
  %v343 = vpack.c.bf16 %v339, %v335
  %v344 = vpack.c.bf16 %v340, %v336
  %v345 = vpack.c.bf16 %v341, %v337
  %v346 = vpack.c.bf16 %v342, %v338
  %v347 = vld [vmem:[%s3] sm:$0xff]
  %v348 = vld [vmem:[%s3 + $0x8] sm:$0xff]
  %v349 = vld [vmem:[%s3 + $0x10] sm:$0xff]
  %v350 = vld [vmem:[%s3 + $0x18] sm:$0xff]
  %v351 = vld [vmem:[%s3 + $0x20] sm:$0xff]
  %v352 = vld [vmem:[%s3 + $0x28] sm:$0xff]
  %v353 = vld [vmem:[%s3 + $0x30] sm:$0xff]
  %v354 = vld [vmem:[%s3 + $0x38] sm:$0xff]
  %v355 = vld [vmem:[%s3 + $0x40] sm:$0xff]
  %v356 = vld [vmem:[%s3 + $0x48] sm:$0xff]
  %v357 = vld [vmem:[%s3 + $0x50] sm:$0xff]
  %v358 = vld [vmem:[%s3 + $0x58] sm:$0xff]
  %v359 = vld [vmem:[%s3 + $0x60] sm:$0xff]
  %v360 = vld [vmem:[%s3 + $0x68] sm:$0xff]
  %v361 = vld [vmem:[%s3 + $0x70] sm:$0xff]
  %v362 = vld [vmem:[%s3 + $0x78] sm:$0xff]
  %v363 = vld [vmem:[%s3 + $0x80] sm:$0xff]
  %v364 = vld [vmem:[%s3 + $0x88] sm:$0xff]
  %v365 = vld [vmem:[%s3 + $0x90] sm:$0xff]
  %v366 = vld [vmem:[%s3 + $0x98] sm:$0xff]
  %v367 = vld [vmem:[%s3 + $0xa0] sm:$0xff]
  %v368 = vld [vmem:[%s3 + $0xa8] sm:$0xff]
  %v369 = vld [vmem:[%s3 + $0xb0] sm:$0xff]
  %v370 = vld [vmem:[%s3 + $0xb8] sm:$0xff]
  %v371 = vld [vmem:[%s3 + $0xc0] sm:$0xff]
  %v372 = vld [vmem:[%s3 + $0xc8] sm:$0xff]
  %v373 = vld [vmem:[%s3 + $0xd0] sm:$0xff]
  %v374 = vld [vmem:[%s3 + $0xd8] sm:$0xff]
  %v375 = vld [vmem:[%s3 + $0xe0] sm:$0xff]
  %v376 = vld [vmem:[%s3 + $0xe8] sm:$0xff]
  %v377 = vld [vmem:[%s3 + $0xf0] sm:$0xff]
  %v378 = vld [vmem:[%s3 + $0xf8] sm:$0xff]
  %v379 = vld [vmem:[%s3 + $0x100] sm:$0xff]
  %v380 = vld [vmem:[%s3 + $0x108] sm:$0xff]
  %v381 = vld [vmem:[%s3 + $0x110] sm:$0xff]
  %v382 = vld [vmem:[%s3 + $0x118] sm:$0xff]
  %v383 = vld [vmem:[%s3 + $0x120] sm:$0xff]
  %v384 = vld [vmem:[%s3 + $0x128] sm:$0xff]
  %v385 = vld [vmem:[%s3 + $0x130] sm:$0xff]
  %v386 = vld [vmem:[%s3 + $0x138] sm:$0xff]
  %v387 = vld [vmem:[%s3 + $0x140] sm:$0xff]
  %v388 = vld [vmem:[%s3 + $0x148] sm:$0xff]
  %v389 = vld [vmem:[%s3 + $0x150] sm:$0xff]
  %v390 = vld [vmem:[%s3 + $0x158] sm:$0xff]
  %v391 = vld [vmem:[%s3 + $0x160] sm:$0xff]
  %v392 = vld [vmem:[%s3 + $0x168] sm:$0xff]
  %v393 = vld [vmem:[%s3 + $0x170] sm:$0xff]
  %v394 = vld [vmem:[%s3 + $0x178] sm:$0xff]
  %v395 = vld [vmem:[%s3 + $0x180] sm:$0xff]
  %v396 = vld [vmem:[%s3 + $0x188] sm:$0xff]
  %v397 = vld [vmem:[%s3 + $0x190] sm:$0xff]
  %v398 = vld [vmem:[%s3 + $0x198] sm:$0xff]
  %v399 = vld [vmem:[%s3 + $0x1a0] sm:$0xff]
  %v400 = vld [vmem:[%s3 + $0x1a8] sm:$0xff]
  %v401 = vld [vmem:[%s3 + $0x1b0] sm:$0xff]
  %v402 = vld [vmem:[%s3 + $0x1b8] sm:$0xff]
  %v403 = vld [vmem:[%s3 + $0x1c0] sm:$0xff]
  %v404 = vld [vmem:[%s3 + $0x1c8] sm:$0xff]
  %v405 = vld [vmem:[%s3 + $0x1d0] sm:$0xff]
  %v406 = vld [vmem:[%s3 + $0x1d8] sm:$0xff]
  %v407 = vld [vmem:[%s3 + $0x1e0] sm:$0xff]
  %v408 = vld [vmem:[%s3 + $0x1e8] sm:$0xff]
  %v409 = vld [vmem:[%s3 + $0x1f0] sm:$0xff]
  %v410 = vld [vmem:[%s3 + $0x1f8] sm:$0xff]
  %v411 = vld [vmem:[%s3 + $0x200] sm:$0xff]
  %v412 = vld [vmem:[%s3 + $0x208] sm:$0xff]
  %v413 = vld [vmem:[%s3 + $0x210] sm:$0xff]
  %v414 = vld [vmem:[%s3 + $0x218] sm:$0xff]
  %v415 = vld [vmem:[%s3 + $0x220] sm:$0xff]
  %v416 = vld [vmem:[%s3 + $0x228] sm:$0xff]
  %v417 = vld [vmem:[%s3 + $0x230] sm:$0xff]
  %v418 = vld [vmem:[%s3 + $0x238] sm:$0xff]
  %v419 = vld [vmem:[%s3 + $0x240] sm:$0xff]
  %v420 = vld [vmem:[%s3 + $0x248] sm:$0xff]
  %v421 = vld [vmem:[%s3 + $0x250] sm:$0xff]
  %v422 = vld [vmem:[%s3 + $0x258] sm:$0xff]
  %v423 = vld [vmem:[%s3 + $0x260] sm:$0xff]
  %v424 = vld [vmem:[%s3 + $0x268] sm:$0xff]
  %v425 = vld [vmem:[%s3 + $0x270] sm:$0xff]
  %v426 = vld [vmem:[%s3 + $0x278] sm:$0xff]
  %v427 = vld [vmem:[%s3 + $0x280] sm:$0xff]
  %v428 = vld [vmem:[%s3 + $0x288] sm:$0xff]
  %v429 = vld [vmem:[%s3 + $0x290] sm:$0xff]
  %v430 = vld [vmem:[%s3 + $0x298] sm:$0xff]
  %v431 = vld [vmem:[%s3 + $0x2a0] sm:$0xff]
  %v432 = vld [vmem:[%s3 + $0x2a8] sm:$0xff]
  %v433 = vld [vmem:[%s3 + $0x2b0] sm:$0xff]
  %v434 = vld [vmem:[%s3 + $0x2b8] sm:$0xff]
  %v435 = vld [vmem:[%s3 + $0x2c0] sm:$0xff]
  %v436 = vld [vmem:[%s3 + $0x2c8] sm:$0xff]
  %v437 = vld [vmem:[%s3 + $0x2d0] sm:$0xff]
  %v438 = vld [vmem:[%s3 + $0x2d8] sm:$0xff]
  %v439 = vld [vmem:[%s3 + $0x2e0] sm:$0xff]
  %v440 = vld [vmem:[%s3 + $0x2e8] sm:$0xff]
  %v441 = vld [vmem:[%s3 + $0x2f0] sm:$0xff]
  %v442 = vld [vmem:[%s3 + $0x2f8] sm:$0xff]
  %v443 = vld [vmem:[%s3 + $0x300] sm:$0xff]
  %v444 = vld [vmem:[%s3 + $0x308] sm:$0xff]
  %v445 = vld [vmem:[%s3 + $0x310] sm:$0xff]
  %v446 = vld [vmem:[%s3 + $0x318] sm:$0xff]
  %v447 = vld [vmem:[%s3 + $0x320] sm:$0xff]
  %v448 = vld [vmem:[%s3 + $0x328] sm:$0xff]
  %v449 = vld [vmem:[%s3 + $0x330] sm:$0xff]
  %v450 = vld [vmem:[%s3 + $0x338] sm:$0xff]
  %v451 = vld [vmem:[%s3 + $0x340] sm:$0xff]
  %v452 = vld [vmem:[%s3 + $0x348] sm:$0xff]
  %v453 = vld [vmem:[%s3 + $0x350] sm:$0xff]
  %v454 = vld [vmem:[%s3 + $0x358] sm:$0xff]
  %v455 = vld [vmem:[%s3 + $0x360] sm:$0xff]
  %v456 = vld [vmem:[%s3 + $0x368] sm:$0xff]
  %v457 = vld [vmem:[%s3 + $0x370] sm:$0xff]
  %v458 = vld [vmem:[%s3 + $0x378] sm:$0xff]
  %v459 = vld [vmem:[%s3 + $0x380] sm:$0xff]
  %v460 = vld [vmem:[%s3 + $0x388] sm:$0xff]
  %v461 = vld [vmem:[%s3 + $0x390] sm:$0xff]
  %v462 = vld [vmem:[%s3 + $0x398] sm:$0xff]
  %v463 = vld [vmem:[%s3 + $0x3a0] sm:$0xff]
  %v464 = vld [vmem:[%s3 + $0x3a8] sm:$0xff]
  %v465 = vld [vmem:[%s3 + $0x3b0] sm:$0xff]
  %v466 = vld [vmem:[%s3 + $0x3b8] sm:$0xff]
  %v467 = vld [vmem:[%s3 + $0x3c0] sm:$0xff]
  %v468 = vld [vmem:[%s3 + $0x3c8] sm:$0xff]
  %v469 = vld [vmem:[%s3 + $0x3d0] sm:$0xff]
  %v470 = vld [vmem:[%s3 + $0x3d8] sm:$0xff]
  %v471 = vld [vmem:[%s3 + $0x3e0] sm:$0xff]
  %v472 = vld [vmem:[%s3 + $0x3e8] sm:$0xff]
  %v473 = vld [vmem:[%s3 + $0x3f0] sm:$0xff]
  %v474 = vld [vmem:[%s3 + $0x3f8] sm:$0xff]
  %v475 = vld [vmem:[%s3 + $0x400] sm:$0xff]
  %v476 = vld [vmem:[%s3 + $0x408] sm:$0xff]
  %v477 = vld [vmem:[%s3 + $0x410] sm:$0xff]
  %v478 = vld [vmem:[%s3 + $0x418] sm:$0xff]
  %v479 = vld [vmem:[%s3 + $0x420] sm:$0xff]
  %v480 = vld [vmem:[%s3 + $0x428] sm:$0xff]
  %v481 = vld [vmem:[%s3 + $0x430] sm:$0xff]
  %v482 = vld [vmem:[%s3 + $0x438] sm:$0xff]
  %v483 = vld [vmem:[%s3 + $0x440] sm:$0xff]
  %v484 = vld [vmem:[%s3 + $0x448] sm:$0xff]
  %v485 = vld [vmem:[%s3 + $0x450] sm:$0xff]
  %v486 = vld [vmem:[%s3 + $0x458] sm:$0xff]
  %v487 = vld [vmem:[%s3 + $0x460] sm:$0xff]
  %v488 = vld [vmem:[%s3 + $0x468] sm:$0xff]
  %v489 = vld [vmem:[%s3 + $0x470] sm:$0xff]
  %v490 = vld [vmem:[%s3 + $0x478] sm:$0xff]
  %v491 = vld [vmem:[%s3 + $0x480] sm:$0xff]
  %v492 = vld [vmem:[%s3 + $0x488] sm:$0xff]
  %v493 = vld [vmem:[%s3 + $0x490] sm:$0xff]
  %v494 = vld [vmem:[%s3 + $0x498] sm:$0xff]
  %v495 = vld [vmem:[%s3 + $0x4a0] sm:$0xff]
  %v496 = vld [vmem:[%s3 + $0x4a8] sm:$0xff]
  %v497 = vld [vmem:[%s3 + $0x4b0] sm:$0xff]
  %v498 = vld [vmem:[%s3 + $0x4b8] sm:$0xff]
  %v499 = vld [vmem:[%s3 + $0x4c0] sm:$0xff]
  %v500 = vld [vmem:[%s3 + $0x4c8] sm:$0xff]
  %v501 = vld [vmem:[%s3 + $0x4d0] sm:$0xff]
  %v502 = vld [vmem:[%s3 + $0x4d8] sm:$0xff]
  %v503 = vld [vmem:[%s3 + $0x4e0] sm:$0xff]
  %v504 = vld [vmem:[%s3 + $0x4e8] sm:$0xff]
  %v505 = vld [vmem:[%s3 + $0x4f0] sm:$0xff]
  %v506 = vld [vmem:[%s3 + $0x4f8] sm:$0xff]
  %v507 = vld [vmem:[%s3 + $0x500] sm:$0xff]
  %v508 = vld [vmem:[%s3 + $0x508] sm:$0xff]
  %v509 = vld [vmem:[%s3 + $0x510] sm:$0xff]
  %v510 = vld [vmem:[%s3 + $0x518] sm:$0xff]
  %v511 = vld [vmem:[%s3 + $0x520] sm:$0xff]
  %v512 = vld [vmem:[%s3 + $0x528] sm:$0xff]
  %v513 = vld [vmem:[%s3 + $0x530] sm:$0xff]
  %v514 = vld [vmem:[%s3 + $0x538] sm:$0xff]
  %v515 = vld [vmem:[%s3 + $0x540] sm:$0xff]
  %v516 = vld [vmem:[%s3 + $0x548] sm:$0xff]
  %v517 = vld [vmem:[%s3 + $0x550] sm:$0xff]
  %v518 = vld [vmem:[%s3 + $0x558] sm:$0xff]
  %v519 = vld [vmem:[%s3 + $0x560] sm:$0xff]
  %v520 = vld [vmem:[%s3 + $0x568] sm:$0xff]
  %v521 = vld [vmem:[%s3 + $0x570] sm:$0xff]
  %v522 = vld [vmem:[%s3 + $0x578] sm:$0xff]
  %v523 = vld [vmem:[%s3 + $0x580] sm:$0xff]
  %v524 = vld [vmem:[%s3 + $0x588] sm:$0xff]
  %v525 = vld [vmem:[%s3 + $0x590] sm:$0xff]
  %v526 = vld [vmem:[%s3 + $0x598] sm:$0xff]
  %v527 = vld [vmem:[%s3 + $0x5a0] sm:$0xff]
  %v528 = vld [vmem:[%s3 + $0x5a8] sm:$0xff]
  %v529 = vld [vmem:[%s3 + $0x5b0] sm:$0xff]
  %v530 = vld [vmem:[%s3 + $0x5b8] sm:$0xff]
  %v531 = vld [vmem:[%s3 + $0x5c0] sm:$0xff]
  %v532 = vld [vmem:[%s3 + $0x5c8] sm:$0xff]
  %v533 = vld [vmem:[%s3 + $0x5d0] sm:$0xff]
  %v534 = vld [vmem:[%s3 + $0x5d8] sm:$0xff]
  %v535 = vld [vmem:[%s3 + $0x5e0] sm:$0xff]
  %v536 = vld [vmem:[%s3 + $0x5e8] sm:$0xff]
  %v537 = vld [vmem:[%s3 + $0x5f0] sm:$0xff]
  %v538 = vld [vmem:[%s3 + $0x5f8] sm:$0xff]
  %v539 = vld [vmem:[%s3 + $0x600] sm:$0xff]
  %v540 = vld [vmem:[%s3 + $0x608] sm:$0xff]
  %v541 = vld [vmem:[%s3 + $0x610] sm:$0xff]
  %v542 = vld [vmem:[%s3 + $0x618] sm:$0xff]
  %v543 = vld [vmem:[%s3 + $0x620] sm:$0xff]
  %v544 = vld [vmem:[%s3 + $0x628] sm:$0xff]
  %v545 = vld [vmem:[%s3 + $0x630] sm:$0xff]
  %v546 = vld [vmem:[%s3 + $0x638] sm:$0xff]
  %v547 = vld [vmem:[%s3 + $0x640] sm:$0xff]
  %v548 = vld [vmem:[%s3 + $0x648] sm:$0xff]
  %v549 = vld [vmem:[%s3 + $0x650] sm:$0xff]
  %v550 = vld [vmem:[%s3 + $0x658] sm:$0xff]
  %v551 = vld [vmem:[%s3 + $0x660] sm:$0xff]
  %v552 = vld [vmem:[%s3 + $0x668] sm:$0xff]
  %v553 = vld [vmem:[%s3 + $0x670] sm:$0xff]
  %v554 = vld [vmem:[%s3 + $0x678] sm:$0xff]
  %v555 = vld [vmem:[%s3 + $0x680] sm:$0xff]
  %v556 = vld [vmem:[%s3 + $0x688] sm:$0xff]
  %v557 = vld [vmem:[%s3 + $0x690] sm:$0xff]
  %v558 = vld [vmem:[%s3 + $0x698] sm:$0xff]
  %v559 = vld [vmem:[%s3 + $0x6a0] sm:$0xff]
  %v560 = vld [vmem:[%s3 + $0x6a8] sm:$0xff]
  %v561 = vld [vmem:[%s3 + $0x6b0] sm:$0xff]
  %v562 = vld [vmem:[%s3 + $0x6b8] sm:$0xff]
  %v563 = vld [vmem:[%s3 + $0x6c0] sm:$0xff]
  %v564 = vld [vmem:[%s3 + $0x6c8] sm:$0xff]
  %v565 = vld [vmem:[%s3 + $0x6d0] sm:$0xff]
  %v566 = vld [vmem:[%s3 + $0x6d8] sm:$0xff]
  %v567 = vld [vmem:[%s3 + $0x6e0] sm:$0xff]
  %v568 = vld [vmem:[%s3 + $0x6e8] sm:$0xff]
  %v569 = vld [vmem:[%s3 + $0x6f0] sm:$0xff]
  %v570 = vld [vmem:[%s3 + $0x6f8] sm:$0xff]
  %v571 = vld [vmem:[%s3 + $0x700] sm:$0xff]
  %v572 = vld [vmem:[%s3 + $0x708] sm:$0xff]
  %v573 = vld [vmem:[%s3 + $0x710] sm:$0xff]
  %v574 = vld [vmem:[%s3 + $0x718] sm:$0xff]
  %v575 = vld [vmem:[%s3 + $0x720] sm:$0xff]
  %v576 = vld [vmem:[%s3 + $0x728] sm:$0xff]
  %v577 = vld [vmem:[%s3 + $0x730] sm:$0xff]
  %v578 = vld [vmem:[%s3 + $0x738] sm:$0xff]
  %v579 = vld [vmem:[%s3 + $0x740] sm:$0xff]
  %v580 = vld [vmem:[%s3 + $0x748] sm:$0xff]
  %v581 = vld [vmem:[%s3 + $0x750] sm:$0xff]
  %v582 = vld [vmem:[%s3 + $0x758] sm:$0xff]
  %v583 = vld [vmem:[%s3 + $0x760] sm:$0xff]
  %v584 = vld [vmem:[%s3 + $0x768] sm:$0xff]
  %v585 = vld [vmem:[%s3 + $0x770] sm:$0xff]
  %v586 = vld [vmem:[%s3 + $0x778] sm:$0xff]
  %v587 = vld [vmem:[%s3 + $0x780] sm:$0xff]
  %v588 = vld [vmem:[%s3 + $0x788] sm:$0xff]
  %v589 = vld [vmem:[%s3 + $0x790] sm:$0xff]
  %v590 = vld [vmem:[%s3 + $0x798] sm:$0xff]
  %v591 = vld [vmem:[%s3 + $0x7a0] sm:$0xff]
  %v592 = vld [vmem:[%s3 + $0x7a8] sm:$0xff]
  %v593 = vld [vmem:[%s3 + $0x7b0] sm:$0xff]
  %v594 = vld [vmem:[%s3 + $0x7b8] sm:$0xff]
  %v595 = vld [vmem:[%s3 + $0x7c0] sm:$0xff]
  %v596 = vld [vmem:[%s3 + $0x7c8] sm:$0xff]
  %v597 = vld [vmem:[%s3 + $0x7d0] sm:$0xff]
  %v598 = vld [vmem:[%s3 + $0x7d8] sm:$0xff]
  %v599 = vld [vmem:[%s3 + $0x7e0] sm:$0xff]
  %v600 = vld [vmem:[%s3 + $0x7e8] sm:$0xff]
  %v601 = vld [vmem:[%s3 + $0x7f0] sm:$0xff]
  %v602 = vld [vmem:[%s3 + $0x7f8] sm:$0xff]
  %v603 = vld [vmem:[%s3 + $0x800] sm:$0xff]
  %v604 = vld [vmem:[%s3 + $0x808] sm:$0xff]
  %v605 = vld [vmem:[%s3 + $0x810] sm:$0xff]
  %v606 = vld [vmem:[%s3 + $0x818] sm:$0xff]
  %v607 = vld [vmem:[%s3 + $0x820] sm:$0xff]
  %v608 = vld [vmem:[%s3 + $0x828] sm:$0xff]
  %v609 = vld [vmem:[%s3 + $0x830] sm:$0xff]
  %v610 = vld [vmem:[%s3 + $0x838] sm:$0xff]
  %v611 = vld [vmem:[%s3 + $0x840] sm:$0xff]
  %v612 = vld [vmem:[%s3 + $0x848] sm:$0xff]
  %v613 = vld [vmem:[%s3 + $0x850] sm:$0xff]
  %v614 = vld [vmem:[%s3 + $0x858] sm:$0xff]
  %v615 = vld [vmem:[%s3 + $0x860] sm:$0xff]
  %v616 = vld [vmem:[%s3 + $0x868] sm:$0xff]
  %v617 = vld [vmem:[%s3 + $0x870] sm:$0xff]
  %v618 = vld [vmem:[%s3 + $0x878] sm:$0xff]
  %v619 = vld [vmem:[%s3 + $0x880] sm:$0xff]
  %v620 = vld [vmem:[%s3 + $0x888] sm:$0xff]
  %v621 = vld [vmem:[%s3 + $0x890] sm:$0xff]
  %v622 = vld [vmem:[%s3 + $0x898] sm:$0xff]
  %v623 = vld [vmem:[%s3 + $0x8a0] sm:$0xff]
  %v624 = vld [vmem:[%s3 + $0x8a8] sm:$0xff]
  %v625 = vld [vmem:[%s3 + $0x8b0] sm:$0xff]
  %v626 = vld [vmem:[%s3 + $0x8b8] sm:$0xff]
  %v627 = vld [vmem:[%s3 + $0x8c0] sm:$0xff]
  %v628 = vld [vmem:[%s3 + $0x8c8] sm:$0xff]
  %v629 = vld [vmem:[%s3 + $0x8d0] sm:$0xff]
  %v630 = vld [vmem:[%s3 + $0x8d8] sm:$0xff]
  %v631 = vld [vmem:[%s3 + $0x8e0] sm:$0xff]
  %v632 = vld [vmem:[%s3 + $0x8e8] sm:$0xff]
  %v633 = vld [vmem:[%s3 + $0x8f0] sm:$0xff]
  %v634 = vld [vmem:[%s3 + $0x8f8] sm:$0xff]
  %v635 = vld [vmem:[%s3 + $0x900] sm:$0xff]
  %v636 = vld [vmem:[%s3 + $0x908] sm:$0xff]
  %v637 = vld [vmem:[%s3 + $0x910] sm:$0xff]
  %v638 = vld [vmem:[%s3 + $0x918] sm:$0xff]
  %v639 = vld [vmem:[%s3 + $0x920] sm:$0xff]
  %v640 = vld [vmem:[%s3 + $0x928] sm:$0xff]
  %v641 = vld [vmem:[%s3 + $0x930] sm:$0xff]
  %v642 = vld [vmem:[%s3 + $0x938] sm:$0xff]
  %v643 = vld [vmem:[%s3 + $0x940] sm:$0xff]
  %v644 = vld [vmem:[%s3 + $0x948] sm:$0xff]
  %v645 = vld [vmem:[%s3 + $0x950] sm:$0xff]
  %v646 = vld [vmem:[%s3 + $0x958] sm:$0xff]
  %v647 = vld [vmem:[%s3 + $0x960] sm:$0xff]
  %v648 = vld [vmem:[%s3 + $0x968] sm:$0xff]
  %v649 = vld [vmem:[%s3 + $0x970] sm:$0xff]
  %v650 = vld [vmem:[%s3 + $0x978] sm:$0xff]
  %v651 = vld [vmem:[%s3 + $0x980] sm:$0xff]
  %v652 = vld [vmem:[%s3 + $0x988] sm:$0xff]
  %v653 = vld [vmem:[%s3 + $0x990] sm:$0xff]
  %v654 = vld [vmem:[%s3 + $0x998] sm:$0xff]
  %v655 = vld [vmem:[%s3 + $0x9a0] sm:$0xff]
  %v656 = vld [vmem:[%s3 + $0x9a8] sm:$0xff]
  %v657 = vld [vmem:[%s3 + $0x9b0] sm:$0xff]
  %v658 = vld [vmem:[%s3 + $0x9b8] sm:$0xff]
  %v659 = vld [vmem:[%s3 + $0x9c0] sm:$0xff]
  %v660 = vld [vmem:[%s3 + $0x9c8] sm:$0xff]
  %v661 = vld [vmem:[%s3 + $0x9d0] sm:$0xff]
  %v662 = vld [vmem:[%s3 + $0x9d8] sm:$0xff]
  %v663 = vld [vmem:[%s3 + $0x9e0] sm:$0xff]
  %v664 = vld [vmem:[%s3 + $0x9e8] sm:$0xff]
  %v665 = vld [vmem:[%s3 + $0x9f0] sm:$0xff]
  %v666 = vld [vmem:[%s3 + $0x9f8] sm:$0xff]
  %v667 = vld [vmem:[%s3 + $0xa00] sm:$0xff]
  %v668 = vld [vmem:[%s3 + $0xa08] sm:$0xff]
  %v669 = vld [vmem:[%s3 + $0xa10] sm:$0xff]
  %v670 = vld [vmem:[%s3 + $0xa18] sm:$0xff]
  %v671 = vld [vmem:[%s3 + $0xa20] sm:$0xff]
  %v672 = vld [vmem:[%s3 + $0xa28] sm:$0xff]
  %v673 = vld [vmem:[%s3 + $0xa30] sm:$0xff]
  %v674 = vld [vmem:[%s3 + $0xa38] sm:$0xff]
  %v675 = vld [vmem:[%s3 + $0xa40] sm:$0xff]
  %v676 = vld [vmem:[%s3 + $0xa48] sm:$0xff]
  %v677 = vld [vmem:[%s3 + $0xa50] sm:$0xff]
  %v678 = vld [vmem:[%s3 + $0xa58] sm:$0xff]
  %v679 = vld [vmem:[%s3 + $0xa60] sm:$0xff]
  %v680 = vld [vmem:[%s3 + $0xa68] sm:$0xff]
  %v681 = vld [vmem:[%s3 + $0xa70] sm:$0xff]
  %v682 = vld [vmem:[%s3 + $0xa78] sm:$0xff]
  %v683 = vld [vmem:[%s3 + $0xa80] sm:$0xff]
  %v684 = vld [vmem:[%s3 + $0xa88] sm:$0xff]
  %v685 = vld [vmem:[%s3 + $0xa90] sm:$0xff]
  %v686 = vld [vmem:[%s3 + $0xa98] sm:$0xff]
  %v687 = vld [vmem:[%s3 + $0xaa0] sm:$0xff]
  %v688 = vld [vmem:[%s3 + $0xaa8] sm:$0xff]
  %v689 = vld [vmem:[%s3 + $0xab0] sm:$0xff]
  %v690 = vld [vmem:[%s3 + $0xab8] sm:$0xff]
  %v691 = vld [vmem:[%s3 + $0xac0] sm:$0xff]
  %v692 = vld [vmem:[%s3 + $0xac8] sm:$0xff]
  %v693 = vld [vmem:[%s3 + $0xad0] sm:$0xff]
  %v694 = vld [vmem:[%s3 + $0xad8] sm:$0xff]
  %v695 = vld [vmem:[%s3 + $0xae0] sm:$0xff]
  %v696 = vld [vmem:[%s3 + $0xae8] sm:$0xff]
  %v697 = vld [vmem:[%s3 + $0xaf0] sm:$0xff]
  %v698 = vld [vmem:[%s3 + $0xaf8] sm:$0xff]
  %v699 = vld [vmem:[%s3 + $0xb00] sm:$0xff]
  %v700 = vld [vmem:[%s3 + $0xb08] sm:$0xff]
  %v701 = vld [vmem:[%s3 + $0xb10] sm:$0xff]
  %v702 = vld [vmem:[%s3 + $0xb18] sm:$0xff]
  %v703 = vld [vmem:[%s3 + $0xb20] sm:$0xff]
  %v704 = vld [vmem:[%s3 + $0xb28] sm:$0xff]
  %v705 = vld [vmem:[%s3 + $0xb30] sm:$0xff]
  %v706 = vld [vmem:[%s3 + $0xb38] sm:$0xff]
  %v707 = vld [vmem:[%s3 + $0xb40] sm:$0xff]
  %v708 = vld [vmem:[%s3 + $0xb48] sm:$0xff]
  %v709 = vld [vmem:[%s3 + $0xb50] sm:$0xff]
  %v710 = vld [vmem:[%s3 + $0xb58] sm:$0xff]
  %v711 = vld [vmem:[%s3 + $0xb60] sm:$0xff]
  %v712 = vld [vmem:[%s3 + $0xb68] sm:$0xff]
  %v713 = vld [vmem:[%s3 + $0xb70] sm:$0xff]
  %v714 = vld [vmem:[%s3 + $0xb78] sm:$0xff]
  %v715 = vld [vmem:[%s3 + $0xb80] sm:$0xff]
  %v716 = vld [vmem:[%s3 + $0xb88] sm:$0xff]
  %v717 = vld [vmem:[%s3 + $0xb90] sm:$0xff]
  %v718 = vld [vmem:[%s3 + $0xb98] sm:$0xff]
  %v719 = vld [vmem:[%s3 + $0xba0] sm:$0xff]
  %v720 = vld [vmem:[%s3 + $0xba8] sm:$0xff]
  %v721 = vld [vmem:[%s3 + $0xbb0] sm:$0xff]
  %v722 = vld [vmem:[%s3 + $0xbb8] sm:$0xff]
  %v723 = vld [vmem:[%s3 + $0xbc0] sm:$0xff]
  %v724 = vld [vmem:[%s3 + $0xbc8] sm:$0xff]
  %v725 = vld [vmem:[%s3 + $0xbd0] sm:$0xff]
  %v726 = vld [vmem:[%s3 + $0xbd8] sm:$0xff]
  %v727 = vld [vmem:[%s3 + $0xbe0] sm:$0xff]
  %v728 = vld [vmem:[%s3 + $0xbe8] sm:$0xff]
  %v729 = vld [vmem:[%s3 + $0xbf0] sm:$0xff]
  %v730 = vld [vmem:[%s3 + $0xbf8] sm:$0xff]
  %v731 = vld [vmem:[%s3 + $0xc00] sm:$0xff]
  %v732 = vld [vmem:[%s3 + $0xc08] sm:$0xff]
  %v733 = vld [vmem:[%s3 + $0xc10] sm:$0xff]
  %v734 = vld [vmem:[%s3 + $0xc18] sm:$0xff]
  %v735 = vld [vmem:[%s3 + $0xc20] sm:$0xff]
  %v736 = vld [vmem:[%s3 + $0xc28] sm:$0xff]
  %v737 = vld [vmem:[%s3 + $0xc30] sm:$0xff]
  %v738 = vld [vmem:[%s3 + $0xc38] sm:$0xff]
  %v739 = vld [vmem:[%s3 + $0xc40] sm:$0xff]
  %v740 = vld [vmem:[%s3 + $0xc48] sm:$0xff]
  %v741 = vld [vmem:[%s3 + $0xc50] sm:$0xff]
  %v742 = vld [vmem:[%s3 + $0xc58] sm:$0xff]
  %v743 = vld [vmem:[%s3 + $0xc60] sm:$0xff]
  %v744 = vld [vmem:[%s3 + $0xc68] sm:$0xff]
  %v745 = vld [vmem:[%s3 + $0xc70] sm:$0xff]
  %v746 = vld [vmem:[%s3 + $0xc78] sm:$0xff]
  %v747 = vld [vmem:[%s3 + $0xc80] sm:$0xff]
  %v748 = vld [vmem:[%s3 + $0xc88] sm:$0xff]
  %v749 = vld [vmem:[%s3 + $0xc90] sm:$0xff]
  %v750 = vld [vmem:[%s3 + $0xc98] sm:$0xff]
  %v751 = vld [vmem:[%s3 + $0xca0] sm:$0xff]
  %v752 = vld [vmem:[%s3 + $0xca8] sm:$0xff]
  %v753 = vld [vmem:[%s3 + $0xcb0] sm:$0xff]
  %v754 = vld [vmem:[%s3 + $0xcb8] sm:$0xff]
  %v755 = vld [vmem:[%s3 + $0xcc0] sm:$0xff]
  %v756 = vld [vmem:[%s3 + $0xcc8] sm:$0xff]
  %v757 = vld [vmem:[%s3 + $0xcd0] sm:$0xff]
  %v758 = vld [vmem:[%s3 + $0xcd8] sm:$0xff]
  %v759 = vld [vmem:[%s3 + $0xce0] sm:$0xff]
  %v760 = vld [vmem:[%s3 + $0xce8] sm:$0xff]
  %v761 = vld [vmem:[%s3 + $0xcf0] sm:$0xff]
  %v762 = vld [vmem:[%s3 + $0xcf8] sm:$0xff]
  %v763 = vld [vmem:[%s3 + $0xd00] sm:$0xff]
  %v764 = vld [vmem:[%s3 + $0xd08] sm:$0xff]
  %v765 = vld [vmem:[%s3 + $0xd10] sm:$0xff]
  %v766 = vld [vmem:[%s3 + $0xd18] sm:$0xff]
  %v767 = vld [vmem:[%s3 + $0xd20] sm:$0xff]
  %v768 = vld [vmem:[%s3 + $0xd28] sm:$0xff]
  %v769 = vld [vmem:[%s3 + $0xd30] sm:$0xff]
  %v770 = vld [vmem:[%s3 + $0xd38] sm:$0xff]
  %v771 = vld [vmem:[%s3 + $0xd40] sm:$0xff]
  %v772 = vld [vmem:[%s3 + $0xd48] sm:$0xff]
  %v773 = vld [vmem:[%s3 + $0xd50] sm:$0xff]
  %v774 = vld [vmem:[%s3 + $0xd58] sm:$0xff]
  %v775 = vld [vmem:[%s3 + $0xd60] sm:$0xff]
  %v776 = vld [vmem:[%s3 + $0xd68] sm:$0xff]
  %v777 = vld [vmem:[%s3 + $0xd70] sm:$0xff]
  %v778 = vld [vmem:[%s3 + $0xd78] sm:$0xff]
  %v779 = vld [vmem:[%s3 + $0xd80] sm:$0xff]
  %v780 = vld [vmem:[%s3 + $0xd88] sm:$0xff]
  %v781 = vld [vmem:[%s3 + $0xd90] sm:$0xff]
  %v782 = vld [vmem:[%s3 + $0xd98] sm:$0xff]
  %v783 = vld [vmem:[%s3 + $0xda0] sm:$0xff]
  %v784 = vld [vmem:[%s3 + $0xda8] sm:$0xff]
  %v785 = vld [vmem:[%s3 + $0xdb0] sm:$0xff]
  %v786 = vld [vmem:[%s3 + $0xdb8] sm:$0xff]
  %v787 = vld [vmem:[%s3 + $0xdc0] sm:$0xff]
  %v788 = vld [vmem:[%s3 + $0xdc8] sm:$0xff]
  %v789 = vld [vmem:[%s3 + $0xdd0] sm:$0xff]
  %v790 = vld [vmem:[%s3 + $0xdd8] sm:$0xff]
  %v791 = vld [vmem:[%s3 + $0xde0] sm:$0xff]
  %v792 = vld [vmem:[%s3 + $0xde8] sm:$0xff]
  %v793 = vld [vmem:[%s3 + $0xdf0] sm:$0xff]
  %v794 = vld [vmem:[%s3 + $0xdf8] sm:$0xff]
  %v795 = vld [vmem:[%s3 + $0xe00] sm:$0xff]
  %v796 = vld [vmem:[%s3 + $0xe08] sm:$0xff]
  %v797 = vld [vmem:[%s3 + $0xe10] sm:$0xff]
  %v798 = vld [vmem:[%s3 + $0xe18] sm:$0xff]
  %v799 = vld [vmem:[%s3 + $0xe20] sm:$0xff]
  %v800 = vld [vmem:[%s3 + $0xe28] sm:$0xff]
  %v801 = vld [vmem:[%s3 + $0xe30] sm:$0xff]
  %v802 = vld [vmem:[%s3 + $0xe38] sm:$0xff]
  %v803 = vld [vmem:[%s3 + $0xe40] sm:$0xff]
  %v804 = vld [vmem:[%s3 + $0xe48] sm:$0xff]
  %v805 = vld [vmem:[%s3 + $0xe50] sm:$0xff]
  %v806 = vld [vmem:[%s3 + $0xe58] sm:$0xff]
  %v807 = vld [vmem:[%s3 + $0xe60] sm:$0xff]
  %v808 = vld [vmem:[%s3 + $0xe68] sm:$0xff]
  %v809 = vld [vmem:[%s3 + $0xe70] sm:$0xff]
  %v810 = vld [vmem:[%s3 + $0xe78] sm:$0xff]
  %v811 = vld [vmem:[%s3 + $0xe80] sm:$0xff]
  %v812 = vld [vmem:[%s3 + $0xe88] sm:$0xff]
  %v813 = vld [vmem:[%s3 + $0xe90] sm:$0xff]
  %v814 = vld [vmem:[%s3 + $0xe98] sm:$0xff]
  %v815 = vld [vmem:[%s3 + $0xea0] sm:$0xff]
  %v816 = vld [vmem:[%s3 + $0xea8] sm:$0xff]
  %v817 = vld [vmem:[%s3 + $0xeb0] sm:$0xff]
  %v818 = vld [vmem:[%s3 + $0xeb8] sm:$0xff]
  %v819 = vld [vmem:[%s3 + $0xec0] sm:$0xff]
  %v820 = vld [vmem:[%s3 + $0xec8] sm:$0xff]
  %v821 = vld [vmem:[%s3 + $0xed0] sm:$0xff]
  %v822 = vld [vmem:[%s3 + $0xed8] sm:$0xff]
  %v823 = vld [vmem:[%s3 + $0xee0] sm:$0xff]
  %v824 = vld [vmem:[%s3 + $0xee8] sm:$0xff]
  %v825 = vld [vmem:[%s3 + $0xef0] sm:$0xff]
  %v826 = vld [vmem:[%s3 + $0xef8] sm:$0xff]
  %v827 = vld [vmem:[%s3 + $0xf00] sm:$0xff]
  %v828 = vld [vmem:[%s3 + $0xf08] sm:$0xff]
  %v829 = vld [vmem:[%s3 + $0xf10] sm:$0xff]
  %v830 = vld [vmem:[%s3 + $0xf18] sm:$0xff]
  %v831 = vld [vmem:[%s3 + $0xf20] sm:$0xff]
  %v832 = vld [vmem:[%s3 + $0xf28] sm:$0xff]
  %v833 = vld [vmem:[%s3 + $0xf30] sm:$0xff]
  %v834 = vld [vmem:[%s3 + $0xf38] sm:$0xff]
  %v835 = vld [vmem:[%s3 + $0xf40] sm:$0xff]
  %v836 = vld [vmem:[%s3 + $0xf48] sm:$0xff]
  %v837 = vld [vmem:[%s3 + $0xf50] sm:$0xff]
  %v838 = vld [vmem:[%s3 + $0xf58] sm:$0xff]
  %v839 = vld [vmem:[%s3 + $0xf60] sm:$0xff]
  %v840 = vld [vmem:[%s3 + $0xf68] sm:$0xff]
  %v841 = vld [vmem:[%s3 + $0xf70] sm:$0xff]
  %v842 = vld [vmem:[%s3 + $0xf78] sm:$0xff]
  %v843 = vld [vmem:[%s3 + $0xf80] sm:$0xff]
  %v844 = vld [vmem:[%s3 + $0xf88] sm:$0xff]
  %v845 = vld [vmem:[%s3 + $0xf90] sm:$0xff]
  %v846 = vld [vmem:[%s3 + $0xf98] sm:$0xff]
  %v847 = vld [vmem:[%s3 + $0xfa0] sm:$0xff]
  %v848 = vld [vmem:[%s3 + $0xfa8] sm:$0xff]
  %v849 = vld [vmem:[%s3 + $0xfb0] sm:$0xff]
  %v850 = vld [vmem:[%s3 + $0xfb8] sm:$0xff]
  %v851 = vld [vmem:[%s3 + $0xfc0] sm:$0xff]
  %v852 = vld [vmem:[%s3 + $0xfc8] sm:$0xff]
  %v853 = vld [vmem:[%s3 + $0xfd0] sm:$0xff]
  %v854 = vld [vmem:[%s3 + $0xfd8] sm:$0xff]
  %v855 = vld [vmem:[%s3 + $0xfe0] sm:$0xff]
  %v856 = vld [vmem:[%s3 + $0xfe8] sm:$0xff]
  %v857 = vld [vmem:[%s3 + $0xff0] sm:$0xff]
  %v858 = vld [vmem:[%s3 + $0xff8] sm:$0xff]
  %v859 = vld [vmem:[%s4] sm:$0xff]
  %v860 = vld [vmem:[%s4 + $0x8] sm:$0xff]
  %v863 = vlaneseq
  %v864 = vshrl.u32 %v863, 7
  %v865 = vsub.s32 0, %v864
  %v866 = vrot.slane %v859, %v865
  %v867 = vlaneseq
  %v868 = vshrl.u32 %v867, 7
  %v869 = vsub.s32 1, %v868
  %v870 = vrot.slane %v859, %v869
  %v871 = vlaneseq
  %v872 = vshrl.u32 %v871, 7
  %v873 = vsub.s32 2, %v872
  %v874 = vrot.slane %v859, %v873
  %v875 = vlaneseq
  %v876 = vshrl.u32 %v875, 7
  %v877 = vsub.s32 3, %v876
  %v878 = vrot.slane %v859, %v877
  %v879 = vlaneseq
  %v880 = vshrl.u32 %v879, 7
  %v881 = vsub.s32 4, %v880
  %v882 = vrot.slane %v859, %v881
  %v883 = vlaneseq
  %v884 = vshrl.u32 %v883, 7
  %v885 = vsub.s32 5, %v884
  %v886 = vrot.slane %v859, %v885
  %v887 = vlaneseq
  %v888 = vshrl.u32 %v887, 7
  %v889 = vsub.s32 6, %v888
  %v890 = vrot.slane %v859, %v889
  %v891 = vlaneseq
  %v892 = vshrl.u32 %v891, 7
  %v893 = vsub.s32 7, %v892
  %v894 = vrot.slane %v859, %v893
  %v895 = vlaneseq
  %v896 = vshrl.u32 %v895, 7
  %v897 = vsub.s32 0, %v896
  %v898 = vrot.slane %v860, %v897
  %v899 = vlaneseq
  %v900 = vshrl.u32 %v899, 7
  %v901 = vsub.s32 1, %v900
  %v902 = vrot.slane %v860, %v901
  %v903 = vlaneseq
  %v904 = vshrl.u32 %v903, 7
  %v905 = vsub.s32 2, %v904
  %v906 = vrot.slane %v860, %v905
  %v907 = vlaneseq
  %v908 = vshrl.u32 %v907, 7
  %v909 = vsub.s32 3, %v908
  %v910 = vrot.slane %v860, %v909
  %v911 = vlaneseq
  %v912 = vshrl.u32 %v911, 7
  %v913 = vsub.s32 4, %v912
  %v914 = vrot.slane %v860, %v913
  %v915 = vlaneseq
  %v916 = vshrl.u32 %v915, 7
  %v917 = vsub.s32 5, %v916
  %v918 = vrot.slane %v860, %v917
  %v919 = vlaneseq
  %v920 = vshrl.u32 %v919, 7
  %v921 = vsub.s32 6, %v920
  %v922 = vrot.slane %v860, %v921
  %v923 = vlaneseq
  %v924 = vshrl.u32 %v923, 7
  %v925 = vsub.s32 7, %v924
  %v926 = vrot.slane %v860, %v925
  %v1455 = vunpack.c.l.b16 %v347
  %v1456 = vunpack.c.h.b16 %v347
  %v1457 = vunpack.c.l.b16 %v348
  %v1458 = vunpack.c.h.b16 %v348
  %v1459 = vunpack.c.l.b16 %v349
  %v1460 = vunpack.c.h.b16 %v349
  %v1461 = vunpack.c.l.b16 %v350
  %v1462 = vunpack.c.h.b16 %v350
  %v1463 = vunpack.c.l.b16 %v351
  %v1464 = vunpack.c.h.b16 %v351
  %v1465 = vunpack.c.l.b16 %v352
  %v1466 = vunpack.c.h.b16 %v352
  %v1467 = vunpack.c.l.b16 %v353
  %v1468 = vunpack.c.h.b16 %v353
  %v1469 = vunpack.c.l.b16 %v354
  %v1470 = vunpack.c.h.b16 %v354
  %v1471 = vunpack.c.l.b16 %v355
  %v1472 = vunpack.c.h.b16 %v355
  %v1473 = vunpack.c.l.b16 %v356
  %v1474 = vunpack.c.h.b16 %v356
  %v1475 = vunpack.c.l.b16 %v357
  %v1476 = vunpack.c.h.b16 %v357
  %v1477 = vunpack.c.l.b16 %v358
  %v1478 = vunpack.c.h.b16 %v358
  %v1479 = vunpack.c.l.b16 %v359
  %v1480 = vunpack.c.h.b16 %v359
  %v1481 = vunpack.c.l.b16 %v360
  %v1482 = vunpack.c.h.b16 %v360
  %v1483 = vunpack.c.l.b16 %v361
  %v1484 = vunpack.c.h.b16 %v361
  %v1485 = vunpack.c.l.b16 %v362
  %v1486 = vunpack.c.h.b16 %v362
  %v1487 = vunpack.c.l.b16 %v363
  %v1488 = vunpack.c.h.b16 %v363
  %v1489 = vunpack.c.l.b16 %v364
  %v1490 = vunpack.c.h.b16 %v364
  %v1491 = vunpack.c.l.b16 %v365
  %v1492 = vunpack.c.h.b16 %v365
  %v1493 = vunpack.c.l.b16 %v366
  %v1494 = vunpack.c.h.b16 %v366
  %v1495 = vunpack.c.l.b16 %v367
  %v1496 = vunpack.c.h.b16 %v367
  %v1497 = vunpack.c.l.b16 %v368
  %v1498 = vunpack.c.h.b16 %v368
  %v1499 = vunpack.c.l.b16 %v369
  %v1500 = vunpack.c.h.b16 %v369
  %v1501 = vunpack.c.l.b16 %v370
  %v1502 = vunpack.c.h.b16 %v370
  %v1503 = vunpack.c.l.b16 %v371
  %v1504 = vunpack.c.h.b16 %v371
  %v1505 = vunpack.c.l.b16 %v372
  %v1506 = vunpack.c.h.b16 %v372
  %v1507 = vunpack.c.l.b16 %v373
  %v1508 = vunpack.c.h.b16 %v373
  %v1509 = vunpack.c.l.b16 %v374
  %v1510 = vunpack.c.h.b16 %v374
  %v1511 = vunpack.c.l.b16 %v375
  %v1512 = vunpack.c.h.b16 %v375
  %v1513 = vunpack.c.l.b16 %v376
  %v1514 = vunpack.c.h.b16 %v376
  %v1515 = vunpack.c.l.b16 %v377
  %v1516 = vunpack.c.h.b16 %v377
  %v1517 = vunpack.c.l.b16 %v378
  %v1518 = vunpack.c.h.b16 %v378
  %v1519 = vunpack.c.l.b16 %v379
  %v1520 = vunpack.c.h.b16 %v379
  %v1521 = vunpack.c.l.b16 %v380
  %v1522 = vunpack.c.h.b16 %v380
  %v1523 = vunpack.c.l.b16 %v381
  %v1524 = vunpack.c.h.b16 %v381
  %v1525 = vunpack.c.l.b16 %v382
  %v1526 = vunpack.c.h.b16 %v382
  %v1527 = vunpack.c.l.b16 %v383
  %v1528 = vunpack.c.h.b16 %v383
  %v1529 = vunpack.c.l.b16 %v384
  %v1530 = vunpack.c.h.b16 %v384
  %v1531 = vunpack.c.l.b16 %v385
  %v1532 = vunpack.c.h.b16 %v385
  %v1533 = vunpack.c.l.b16 %v386
  %v1534 = vunpack.c.h.b16 %v386
  %v1535 = vunpack.c.l.b16 %v387
  %v1536 = vunpack.c.h.b16 %v387
  %v1537 = vunpack.c.l.b16 %v388
  %v1538 = vunpack.c.h.b16 %v388
  %v1539 = vunpack.c.l.b16 %v389
  %v1540 = vunpack.c.h.b16 %v389
  %v1541 = vunpack.c.l.b16 %v390
  %v1542 = vunpack.c.h.b16 %v390
  %v1543 = vunpack.c.l.b16 %v391
  %v1544 = vunpack.c.h.b16 %v391
  %v1545 = vunpack.c.l.b16 %v392
  %v1546 = vunpack.c.h.b16 %v392
  %v1547 = vunpack.c.l.b16 %v393
  %v1548 = vunpack.c.h.b16 %v393
  %v1549 = vunpack.c.l.b16 %v394
  %v1550 = vunpack.c.h.b16 %v394
  %v1551 = vunpack.c.l.b16 %v395
  %v1552 = vunpack.c.h.b16 %v395
  %v1553 = vunpack.c.l.b16 %v396
  %v1554 = vunpack.c.h.b16 %v396
  %v1555 = vunpack.c.l.b16 %v397
  %v1556 = vunpack.c.h.b16 %v397
  %v1557 = vunpack.c.l.b16 %v398
  %v1558 = vunpack.c.h.b16 %v398
  %v1559 = vunpack.c.l.b16 %v399
  %v1560 = vunpack.c.h.b16 %v399
  %v1561 = vunpack.c.l.b16 %v400
  %v1562 = vunpack.c.h.b16 %v400
  %v1563 = vunpack.c.l.b16 %v401
  %v1564 = vunpack.c.h.b16 %v401
  %v1565 = vunpack.c.l.b16 %v402
  %v1566 = vunpack.c.h.b16 %v402
  %v1567 = vunpack.c.l.b16 %v403
  %v1568 = vunpack.c.h.b16 %v403
  %v1569 = vunpack.c.l.b16 %v404
  %v1570 = vunpack.c.h.b16 %v404
  %v1571 = vunpack.c.l.b16 %v405
  %v1572 = vunpack.c.h.b16 %v405
  %v1573 = vunpack.c.l.b16 %v406
  %v1574 = vunpack.c.h.b16 %v406
  %v1575 = vunpack.c.l.b16 %v407
  %v1576 = vunpack.c.h.b16 %v407
  %v1577 = vunpack.c.l.b16 %v408
  %v1578 = vunpack.c.h.b16 %v408
  %v1579 = vunpack.c.l.b16 %v409
  %v1580 = vunpack.c.h.b16 %v409
  %v1581 = vunpack.c.l.b16 %v410
  %v1582 = vunpack.c.h.b16 %v410
  %v1583 = vunpack.c.l.b16 %v411
  %v1584 = vunpack.c.h.b16 %v411
  %v1585 = vunpack.c.l.b16 %v412
  %v1586 = vunpack.c.h.b16 %v412
  %v1587 = vunpack.c.l.b16 %v413
  %v1588 = vunpack.c.h.b16 %v413
  %v1589 = vunpack.c.l.b16 %v414
  %v1590 = vunpack.c.h.b16 %v414
  %v1591 = vunpack.c.l.b16 %v415
  %v1592 = vunpack.c.h.b16 %v415
  %v1593 = vunpack.c.l.b16 %v416
  %v1594 = vunpack.c.h.b16 %v416
  %v1595 = vunpack.c.l.b16 %v417
  %v1596 = vunpack.c.h.b16 %v417
  %v1597 = vunpack.c.l.b16 %v418
  %v1598 = vunpack.c.h.b16 %v418
  %v1599 = vunpack.c.l.b16 %v419
  %v1600 = vunpack.c.h.b16 %v419
  %v1601 = vunpack.c.l.b16 %v420
  %v1602 = vunpack.c.h.b16 %v420
  %v1603 = vunpack.c.l.b16 %v421
  %v1604 = vunpack.c.h.b16 %v421
  %v1605 = vunpack.c.l.b16 %v422
  %v1606 = vunpack.c.h.b16 %v422
  %v1607 = vunpack.c.l.b16 %v423
  %v1608 = vunpack.c.h.b16 %v423
  %v1609 = vunpack.c.l.b16 %v424
  %v1610 = vunpack.c.h.b16 %v424
  %v1611 = vunpack.c.l.b16 %v425
  %v1612 = vunpack.c.h.b16 %v425
  %v1613 = vunpack.c.l.b16 %v426
  %v1614 = vunpack.c.h.b16 %v426
  %v1615 = vunpack.c.l.b16 %v427
  %v1616 = vunpack.c.h.b16 %v427
  %v1617 = vunpack.c.l.b16 %v428
  %v1618 = vunpack.c.h.b16 %v428
  %v1619 = vunpack.c.l.b16 %v429
  %v1620 = vunpack.c.h.b16 %v429
  %v1621 = vunpack.c.l.b16 %v430
  %v1622 = vunpack.c.h.b16 %v430
  %v1623 = vunpack.c.l.b16 %v431
  %v1624 = vunpack.c.h.b16 %v431
  %v1625 = vunpack.c.l.b16 %v432
  %v1626 = vunpack.c.h.b16 %v432
  %v1627 = vunpack.c.l.b16 %v433
  %v1628 = vunpack.c.h.b16 %v433
  %v1629 = vunpack.c.l.b16 %v434
  %v1630 = vunpack.c.h.b16 %v434
  %v1631 = vunpack.c.l.b16 %v435
  %v1632 = vunpack.c.h.b16 %v435
  %v1633 = vunpack.c.l.b16 %v436
  %v1634 = vunpack.c.h.b16 %v436
  %v1635 = vunpack.c.l.b16 %v437
  %v1636 = vunpack.c.h.b16 %v437
  %v1637 = vunpack.c.l.b16 %v438
  %v1638 = vunpack.c.h.b16 %v438
  %v1639 = vunpack.c.l.b16 %v439
  %v1640 = vunpack.c.h.b16 %v439
  %v1641 = vunpack.c.l.b16 %v440
  %v1642 = vunpack.c.h.b16 %v440
  %v1643 = vunpack.c.l.b16 %v441
  %v1644 = vunpack.c.h.b16 %v441
  %v1645 = vunpack.c.l.b16 %v442
  %v1646 = vunpack.c.h.b16 %v442
  %v1647 = vunpack.c.l.b16 %v443
  %v1648 = vunpack.c.h.b16 %v443
  %v1649 = vunpack.c.l.b16 %v444
  %v1650 = vunpack.c.h.b16 %v444
  %v1651 = vunpack.c.l.b16 %v445
  %v1652 = vunpack.c.h.b16 %v445
  %v1653 = vunpack.c.l.b16 %v446
  %v1654 = vunpack.c.h.b16 %v446
  %v1655 = vunpack.c.l.b16 %v447
  %v1656 = vunpack.c.h.b16 %v447
  %v1657 = vunpack.c.l.b16 %v448
  %v1658 = vunpack.c.h.b16 %v448
  %v1659 = vunpack.c.l.b16 %v449
  %v1660 = vunpack.c.h.b16 %v449
  %v1661 = vunpack.c.l.b16 %v450
  %v1662 = vunpack.c.h.b16 %v450
  %v1663 = vunpack.c.l.b16 %v451
  %v1664 = vunpack.c.h.b16 %v451
  %v1665 = vunpack.c.l.b16 %v452
  %v1666 = vunpack.c.h.b16 %v452
  %v1667 = vunpack.c.l.b16 %v453
  %v1668 = vunpack.c.h.b16 %v453
  %v1669 = vunpack.c.l.b16 %v454
  %v1670 = vunpack.c.h.b16 %v454
  %v1671 = vunpack.c.l.b16 %v455
  %v1672 = vunpack.c.h.b16 %v455
  %v1673 = vunpack.c.l.b16 %v456
  %v1674 = vunpack.c.h.b16 %v456
  %v1675 = vunpack.c.l.b16 %v457
  %v1676 = vunpack.c.h.b16 %v457
  %v1677 = vunpack.c.l.b16 %v458
  %v1678 = vunpack.c.h.b16 %v458
  %v1679 = vunpack.c.l.b16 %v459
  %v1680 = vunpack.c.h.b16 %v459
  %v1681 = vunpack.c.l.b16 %v460
  %v1682 = vunpack.c.h.b16 %v460
  %v1683 = vunpack.c.l.b16 %v461
  %v1684 = vunpack.c.h.b16 %v461
  %v1685 = vunpack.c.l.b16 %v462
  %v1686 = vunpack.c.h.b16 %v462
  %v1687 = vunpack.c.l.b16 %v463
  %v1688 = vunpack.c.h.b16 %v463
  %v1689 = vunpack.c.l.b16 %v464
  %v1690 = vunpack.c.h.b16 %v464
  %v1691 = vunpack.c.l.b16 %v465
  %v1692 = vunpack.c.h.b16 %v465
  %v1693 = vunpack.c.l.b16 %v466
  %v1694 = vunpack.c.h.b16 %v466
  %v1695 = vunpack.c.l.b16 %v467
  %v1696 = vunpack.c.h.b16 %v467
  %v1697 = vunpack.c.l.b16 %v468
  %v1698 = vunpack.c.h.b16 %v468
  %v1699 = vunpack.c.l.b16 %v469
  %v1700 = vunpack.c.h.b16 %v469
  %v1701 = vunpack.c.l.b16 %v470
  %v1702 = vunpack.c.h.b16 %v470
  %v1703 = vunpack.c.l.b16 %v471
  %v1704 = vunpack.c.h.b16 %v471
  %v1705 = vunpack.c.l.b16 %v472
  %v1706 = vunpack.c.h.b16 %v472
  %v1707 = vunpack.c.l.b16 %v473
  %v1708 = vunpack.c.h.b16 %v473
  %v1709 = vunpack.c.l.b16 %v474
  %v1710 = vunpack.c.h.b16 %v474
  %v1711 = vunpack.c.l.b16 %v475
  %v1712 = vunpack.c.h.b16 %v475
  %v1713 = vunpack.c.l.b16 %v476
  %v1714 = vunpack.c.h.b16 %v476
  %v1715 = vunpack.c.l.b16 %v477
  %v1716 = vunpack.c.h.b16 %v477
  %v1717 = vunpack.c.l.b16 %v478
  %v1718 = vunpack.c.h.b16 %v478
  %v1719 = vunpack.c.l.b16 %v479
  %v1720 = vunpack.c.h.b16 %v479
  %v1721 = vunpack.c.l.b16 %v480
  %v1722 = vunpack.c.h.b16 %v480
  %v1723 = vunpack.c.l.b16 %v481
  %v1724 = vunpack.c.h.b16 %v481
  %v1725 = vunpack.c.l.b16 %v482
  %v1726 = vunpack.c.h.b16 %v482
  %v1727 = vunpack.c.l.b16 %v483
  %v1728 = vunpack.c.h.b16 %v483
  %v1729 = vunpack.c.l.b16 %v484
  %v1730 = vunpack.c.h.b16 %v484
  %v1731 = vunpack.c.l.b16 %v485
  %v1732 = vunpack.c.h.b16 %v485
  %v1733 = vunpack.c.l.b16 %v486
  %v1734 = vunpack.c.h.b16 %v486
  %v1735 = vunpack.c.l.b16 %v487
  %v1736 = vunpack.c.h.b16 %v487
  %v1737 = vunpack.c.l.b16 %v488
  %v1738 = vunpack.c.h.b16 %v488
  %v1739 = vunpack.c.l.b16 %v489
  %v1740 = vunpack.c.h.b16 %v489
  %v1741 = vunpack.c.l.b16 %v490
  %v1742 = vunpack.c.h.b16 %v490
  %v1743 = vunpack.c.l.b16 %v491
  %v1744 = vunpack.c.h.b16 %v491
  %v1745 = vunpack.c.l.b16 %v492
  %v1746 = vunpack.c.h.b16 %v492
  %v1747 = vunpack.c.l.b16 %v493
  %v1748 = vunpack.c.h.b16 %v493
  %v1749 = vunpack.c.l.b16 %v494
  %v1750 = vunpack.c.h.b16 %v494
  %v1751 = vunpack.c.l.b16 %v495
  %v1752 = vunpack.c.h.b16 %v495
  %v1753 = vunpack.c.l.b16 %v496
  %v1754 = vunpack.c.h.b16 %v496
  %v1755 = vunpack.c.l.b16 %v497
  %v1756 = vunpack.c.h.b16 %v497
  %v1757 = vunpack.c.l.b16 %v498
  %v1758 = vunpack.c.h.b16 %v498
  %v1759 = vunpack.c.l.b16 %v499
  %v1760 = vunpack.c.h.b16 %v499
  %v1761 = vunpack.c.l.b16 %v500
  %v1762 = vunpack.c.h.b16 %v500
  %v1763 = vunpack.c.l.b16 %v501
  %v1764 = vunpack.c.h.b16 %v501
  %v1765 = vunpack.c.l.b16 %v502
  %v1766 = vunpack.c.h.b16 %v502
  %v1767 = vunpack.c.l.b16 %v503
  %v1768 = vunpack.c.h.b16 %v503
  %v1769 = vunpack.c.l.b16 %v504
  %v1770 = vunpack.c.h.b16 %v504
  %v1771 = vunpack.c.l.b16 %v505
  %v1772 = vunpack.c.h.b16 %v505
  %v1773 = vunpack.c.l.b16 %v506
  %v1774 = vunpack.c.h.b16 %v506
  %v1775 = vunpack.c.l.b16 %v507
  %v1776 = vunpack.c.h.b16 %v507
  %v1777 = vunpack.c.l.b16 %v508
  %v1778 = vunpack.c.h.b16 %v508
  %v1779 = vunpack.c.l.b16 %v509
  %v1780 = vunpack.c.h.b16 %v509
  %v1781 = vunpack.c.l.b16 %v510
  %v1782 = vunpack.c.h.b16 %v510
  %v1783 = vunpack.c.l.b16 %v511
  %v1784 = vunpack.c.h.b16 %v511
  %v1785 = vunpack.c.l.b16 %v512
  %v1786 = vunpack.c.h.b16 %v512
  %v1787 = vunpack.c.l.b16 %v513
  %v1788 = vunpack.c.h.b16 %v513
  %v1789 = vunpack.c.l.b16 %v514
  %v1790 = vunpack.c.h.b16 %v514
  %v1791 = vunpack.c.l.b16 %v515
  %v1792 = vunpack.c.h.b16 %v515
  %v1793 = vunpack.c.l.b16 %v516
  %v1794 = vunpack.c.h.b16 %v516
  %v1795 = vunpack.c.l.b16 %v517
  %v1796 = vunpack.c.h.b16 %v517
  %v1797 = vunpack.c.l.b16 %v518
  %v1798 = vunpack.c.h.b16 %v518
  %v1799 = vunpack.c.l.b16 %v519
  %v1800 = vunpack.c.h.b16 %v519
  %v1801 = vunpack.c.l.b16 %v520
  %v1802 = vunpack.c.h.b16 %v520
  %v1803 = vunpack.c.l.b16 %v521
  %v1804 = vunpack.c.h.b16 %v521
  %v1805 = vunpack.c.l.b16 %v522
  %v1806 = vunpack.c.h.b16 %v522
  %v1807 = vunpack.c.l.b16 %v523
  %v1808 = vunpack.c.h.b16 %v523
  %v1809 = vunpack.c.l.b16 %v524
  %v1810 = vunpack.c.h.b16 %v524
  %v1811 = vunpack.c.l.b16 %v525
  %v1812 = vunpack.c.h.b16 %v525
  %v1813 = vunpack.c.l.b16 %v526
  %v1814 = vunpack.c.h.b16 %v526
  %v1815 = vunpack.c.l.b16 %v527
  %v1816 = vunpack.c.h.b16 %v527
  %v1817 = vunpack.c.l.b16 %v528
  %v1818 = vunpack.c.h.b16 %v528
  %v1819 = vunpack.c.l.b16 %v529
  %v1820 = vunpack.c.h.b16 %v529
  %v1821 = vunpack.c.l.b16 %v530
  %v1822 = vunpack.c.h.b16 %v530
  %v1823 = vunpack.c.l.b16 %v531
  %v1824 = vunpack.c.h.b16 %v531
  %v1825 = vunpack.c.l.b16 %v532
  %v1826 = vunpack.c.h.b16 %v532
  %v1827 = vunpack.c.l.b16 %v533
  %v1828 = vunpack.c.h.b16 %v533
  %v1829 = vunpack.c.l.b16 %v534
  %v1830 = vunpack.c.h.b16 %v534
  %v1831 = vunpack.c.l.b16 %v535
  %v1832 = vunpack.c.h.b16 %v535
  %v1833 = vunpack.c.l.b16 %v536
  %v1834 = vunpack.c.h.b16 %v536
  %v1835 = vunpack.c.l.b16 %v537
  %v1836 = vunpack.c.h.b16 %v537
  %v1837 = vunpack.c.l.b16 %v538
  %v1838 = vunpack.c.h.b16 %v538
  %v1839 = vunpack.c.l.b16 %v539
  %v1840 = vunpack.c.h.b16 %v539
  %v1841 = vunpack.c.l.b16 %v540
  %v1842 = vunpack.c.h.b16 %v540
  %v1843 = vunpack.c.l.b16 %v541
  %v1844 = vunpack.c.h.b16 %v541
  %v1845 = vunpack.c.l.b16 %v542
  %v1846 = vunpack.c.h.b16 %v542
  %v1847 = vunpack.c.l.b16 %v543
  %v1848 = vunpack.c.h.b16 %v543
  %v1849 = vunpack.c.l.b16 %v544
  %v1850 = vunpack.c.h.b16 %v544
  %v1851 = vunpack.c.l.b16 %v545
  %v1852 = vunpack.c.h.b16 %v545
  %v1853 = vunpack.c.l.b16 %v546
  %v1854 = vunpack.c.h.b16 %v546
  %v1855 = vunpack.c.l.b16 %v547
  %v1856 = vunpack.c.h.b16 %v547
  %v1857 = vunpack.c.l.b16 %v548
  %v1858 = vunpack.c.h.b16 %v548
  %v1859 = vunpack.c.l.b16 %v549
  %v1860 = vunpack.c.h.b16 %v549
  %v1861 = vunpack.c.l.b16 %v550
  %v1862 = vunpack.c.h.b16 %v550
  %v1863 = vunpack.c.l.b16 %v551
  %v1864 = vunpack.c.h.b16 %v551
  %v1865 = vunpack.c.l.b16 %v552
  %v1866 = vunpack.c.h.b16 %v552
  %v1867 = vunpack.c.l.b16 %v553
  %v1868 = vunpack.c.h.b16 %v553
  %v1869 = vunpack.c.l.b16 %v554
  %v1870 = vunpack.c.h.b16 %v554
  %v1871 = vunpack.c.l.b16 %v555
  %v1872 = vunpack.c.h.b16 %v555
  %v1873 = vunpack.c.l.b16 %v556
  %v1874 = vunpack.c.h.b16 %v556
  %v1875 = vunpack.c.l.b16 %v557
  %v1876 = vunpack.c.h.b16 %v557
  %v1877 = vunpack.c.l.b16 %v558
  %v1878 = vunpack.c.h.b16 %v558
  %v1879 = vunpack.c.l.b16 %v559
  %v1880 = vunpack.c.h.b16 %v559
  %v1881 = vunpack.c.l.b16 %v560
  %v1882 = vunpack.c.h.b16 %v560
  %v1883 = vunpack.c.l.b16 %v561
  %v1884 = vunpack.c.h.b16 %v561
  %v1885 = vunpack.c.l.b16 %v562
  %v1886 = vunpack.c.h.b16 %v562
  %v1887 = vunpack.c.l.b16 %v563
  %v1888 = vunpack.c.h.b16 %v563
  %v1889 = vunpack.c.l.b16 %v564
  %v1890 = vunpack.c.h.b16 %v564
  %v1891 = vunpack.c.l.b16 %v565
  %v1892 = vunpack.c.h.b16 %v565
  %v1893 = vunpack.c.l.b16 %v566
  %v1894 = vunpack.c.h.b16 %v566
  %v1895 = vunpack.c.l.b16 %v567
  %v1896 = vunpack.c.h.b16 %v567
  %v1897 = vunpack.c.l.b16 %v568
  %v1898 = vunpack.c.h.b16 %v568
  %v1899 = vunpack.c.l.b16 %v569
  %v1900 = vunpack.c.h.b16 %v569
  %v1901 = vunpack.c.l.b16 %v570
  %v1902 = vunpack.c.h.b16 %v570
  %v1903 = vunpack.c.l.b16 %v571
  %v1904 = vunpack.c.h.b16 %v571
  %v1905 = vunpack.c.l.b16 %v572
  %v1906 = vunpack.c.h.b16 %v572
  %v1907 = vunpack.c.l.b16 %v573
  %v1908 = vunpack.c.h.b16 %v573
  %v1909 = vunpack.c.l.b16 %v574
  %v1910 = vunpack.c.h.b16 %v574
  %v1911 = vunpack.c.l.b16 %v575
  %v1912 = vunpack.c.h.b16 %v575
  %v1913 = vunpack.c.l.b16 %v576
  %v1914 = vunpack.c.h.b16 %v576
  %v1915 = vunpack.c.l.b16 %v577
  %v1916 = vunpack.c.h.b16 %v577
  %v1917 = vunpack.c.l.b16 %v578
  %v1918 = vunpack.c.h.b16 %v578
  %v1919 = vunpack.c.l.b16 %v579
  %v1920 = vunpack.c.h.b16 %v579
  %v1921 = vunpack.c.l.b16 %v580
  %v1922 = vunpack.c.h.b16 %v580
  %v1923 = vunpack.c.l.b16 %v581
  %v1924 = vunpack.c.h.b16 %v581
  %v1925 = vunpack.c.l.b16 %v582
  %v1926 = vunpack.c.h.b16 %v582
  %v1927 = vunpack.c.l.b16 %v583
  %v1928 = vunpack.c.h.b16 %v583
  %v1929 = vunpack.c.l.b16 %v584
  %v1930 = vunpack.c.h.b16 %v584
  %v1931 = vunpack.c.l.b16 %v585
  %v1932 = vunpack.c.h.b16 %v585
  %v1933 = vunpack.c.l.b16 %v586
  %v1934 = vunpack.c.h.b16 %v586
  %v1935 = vunpack.c.l.b16 %v587
  %v1936 = vunpack.c.h.b16 %v587
  %v1937 = vunpack.c.l.b16 %v588
  %v1938 = vunpack.c.h.b16 %v588
  %v1939 = vunpack.c.l.b16 %v589
  %v1940 = vunpack.c.h.b16 %v589
  %v1941 = vunpack.c.l.b16 %v590
  %v1942 = vunpack.c.h.b16 %v590
  %v1943 = vunpack.c.l.b16 %v591
  %v1944 = vunpack.c.h.b16 %v591
  %v1945 = vunpack.c.l.b16 %v592
  %v1946 = vunpack.c.h.b16 %v592
  %v1947 = vunpack.c.l.b16 %v593
  %v1948 = vunpack.c.h.b16 %v593
  %v1949 = vunpack.c.l.b16 %v594
  %v1950 = vunpack.c.h.b16 %v594
  %v1951 = vunpack.c.l.b16 %v595
  %v1952 = vunpack.c.h.b16 %v595
  %v1953 = vunpack.c.l.b16 %v596
  %v1954 = vunpack.c.h.b16 %v596
  %v1955 = vunpack.c.l.b16 %v597
  %v1956 = vunpack.c.h.b16 %v597
  %v1957 = vunpack.c.l.b16 %v598
  %v1958 = vunpack.c.h.b16 %v598
  %v1959 = vunpack.c.l.b16 %v599
  %v1960 = vunpack.c.h.b16 %v599
  %v1961 = vunpack.c.l.b16 %v600
  %v1962 = vunpack.c.h.b16 %v600
  %v1963 = vunpack.c.l.b16 %v601
  %v1964 = vunpack.c.h.b16 %v601
  %v1965 = vunpack.c.l.b16 %v602
  %v1966 = vunpack.c.h.b16 %v602
  %v1967 = vunpack.c.l.b16 %v603
  %v1968 = vunpack.c.h.b16 %v603
  %v1969 = vunpack.c.l.b16 %v604
  %v1970 = vunpack.c.h.b16 %v604
  %v1971 = vunpack.c.l.b16 %v605
  %v1972 = vunpack.c.h.b16 %v605
  %v1973 = vunpack.c.l.b16 %v606
  %v1974 = vunpack.c.h.b16 %v606
  %v1975 = vunpack.c.l.b16 %v607
  %v1976 = vunpack.c.h.b16 %v607
  %v1977 = vunpack.c.l.b16 %v608
  %v1978 = vunpack.c.h.b16 %v608
  %v1979 = vunpack.c.l.b16 %v609
  %v1980 = vunpack.c.h.b16 %v609
  %v1981 = vunpack.c.l.b16 %v610
  %v1982 = vunpack.c.h.b16 %v610
  %v1983 = vunpack.c.l.b16 %v611
  %v1984 = vunpack.c.h.b16 %v611
  %v1985 = vunpack.c.l.b16 %v612
  %v1986 = vunpack.c.h.b16 %v612
  %v1987 = vunpack.c.l.b16 %v613
  %v1988 = vunpack.c.h.b16 %v613
  %v1989 = vunpack.c.l.b16 %v614
  %v1990 = vunpack.c.h.b16 %v614
  %v1991 = vunpack.c.l.b16 %v615
  %v1992 = vunpack.c.h.b16 %v615
  %v1993 = vunpack.c.l.b16 %v616
  %v1994 = vunpack.c.h.b16 %v616
  %v1995 = vunpack.c.l.b16 %v617
  %v1996 = vunpack.c.h.b16 %v617
  %v1997 = vunpack.c.l.b16 %v618
  %v1998 = vunpack.c.h.b16 %v618
  %v1999 = vunpack.c.l.b16 %v619
  %v2000 = vunpack.c.h.b16 %v619
  %v2001 = vunpack.c.l.b16 %v620
  %v2002 = vunpack.c.h.b16 %v620
  %v2003 = vunpack.c.l.b16 %v621
  %v2004 = vunpack.c.h.b16 %v621
  %v2005 = vunpack.c.l.b16 %v622
  %v2006 = vunpack.c.h.b16 %v622
  %v2007 = vunpack.c.l.b16 %v623
  %v2008 = vunpack.c.h.b16 %v623
  %v2009 = vunpack.c.l.b16 %v624
  %v2010 = vunpack.c.h.b16 %v624
  %v2011 = vunpack.c.l.b16 %v625
  %v2012 = vunpack.c.h.b16 %v625
  %v2013 = vunpack.c.l.b16 %v626
  %v2014 = vunpack.c.h.b16 %v626
  %v2015 = vunpack.c.l.b16 %v627
  %v2016 = vunpack.c.h.b16 %v627
  %v2017 = vunpack.c.l.b16 %v628
  %v2018 = vunpack.c.h.b16 %v628
  %v2019 = vunpack.c.l.b16 %v629
  %v2020 = vunpack.c.h.b16 %v629
  %v2021 = vunpack.c.l.b16 %v630
  %v2022 = vunpack.c.h.b16 %v630
  %v2023 = vunpack.c.l.b16 %v631
  %v2024 = vunpack.c.h.b16 %v631
  %v2025 = vunpack.c.l.b16 %v632
  %v2026 = vunpack.c.h.b16 %v632
  %v2027 = vunpack.c.l.b16 %v633
  %v2028 = vunpack.c.h.b16 %v633
  %v2029 = vunpack.c.l.b16 %v634
  %v2030 = vunpack.c.h.b16 %v634
  %v2031 = vunpack.c.l.b16 %v635
  %v2032 = vunpack.c.h.b16 %v635
  %v2033 = vunpack.c.l.b16 %v636
  %v2034 = vunpack.c.h.b16 %v636
  %v2035 = vunpack.c.l.b16 %v637
  %v2036 = vunpack.c.h.b16 %v637
  %v2037 = vunpack.c.l.b16 %v638
  %v2038 = vunpack.c.h.b16 %v638
  %v2039 = vunpack.c.l.b16 %v639
  %v2040 = vunpack.c.h.b16 %v639
  %v2041 = vunpack.c.l.b16 %v640
  %v2042 = vunpack.c.h.b16 %v640
  %v2043 = vunpack.c.l.b16 %v641
  %v2044 = vunpack.c.h.b16 %v641
  %v2045 = vunpack.c.l.b16 %v642
  %v2046 = vunpack.c.h.b16 %v642
  %v2047 = vunpack.c.l.b16 %v643
  %v2048 = vunpack.c.h.b16 %v643
  %v2049 = vunpack.c.l.b16 %v644
  %v2050 = vunpack.c.h.b16 %v644
  %v2051 = vunpack.c.l.b16 %v645
  %v2052 = vunpack.c.h.b16 %v645
  %v2053 = vunpack.c.l.b16 %v646
  %v2054 = vunpack.c.h.b16 %v646
  %v2055 = vunpack.c.l.b16 %v647
  %v2056 = vunpack.c.h.b16 %v647
  %v2057 = vunpack.c.l.b16 %v648
  %v2058 = vunpack.c.h.b16 %v648
  %v2059 = vunpack.c.l.b16 %v649
  %v2060 = vunpack.c.h.b16 %v649
  %v2061 = vunpack.c.l.b16 %v650
  %v2062 = vunpack.c.h.b16 %v650
  %v2063 = vunpack.c.l.b16 %v651
  %v2064 = vunpack.c.h.b16 %v651
  %v2065 = vunpack.c.l.b16 %v652
  %v2066 = vunpack.c.h.b16 %v652
  %v2067 = vunpack.c.l.b16 %v653
  %v2068 = vunpack.c.h.b16 %v653
  %v2069 = vunpack.c.l.b16 %v654
  %v2070 = vunpack.c.h.b16 %v654
  %v2071 = vunpack.c.l.b16 %v655
  %v2072 = vunpack.c.h.b16 %v655
  %v2073 = vunpack.c.l.b16 %v656
  %v2074 = vunpack.c.h.b16 %v656
  %v2075 = vunpack.c.l.b16 %v657
  %v2076 = vunpack.c.h.b16 %v657
  %v2077 = vunpack.c.l.b16 %v658
  %v2078 = vunpack.c.h.b16 %v658
  %v2079 = vunpack.c.l.b16 %v659
  %v2080 = vunpack.c.h.b16 %v659
  %v2081 = vunpack.c.l.b16 %v660
  %v2082 = vunpack.c.h.b16 %v660
  %v2083 = vunpack.c.l.b16 %v661
  %v2084 = vunpack.c.h.b16 %v661
  %v2085 = vunpack.c.l.b16 %v662
  %v2086 = vunpack.c.h.b16 %v662
  %v2087 = vunpack.c.l.b16 %v663
  %v2088 = vunpack.c.h.b16 %v663
  %v2089 = vunpack.c.l.b16 %v664
  %v2090 = vunpack.c.h.b16 %v664
  %v2091 = vunpack.c.l.b16 %v665
  %v2092 = vunpack.c.h.b16 %v665
  %v2093 = vunpack.c.l.b16 %v666
  %v2094 = vunpack.c.h.b16 %v666
  %v2095 = vunpack.c.l.b16 %v667
  %v2096 = vunpack.c.h.b16 %v667
  %v2097 = vunpack.c.l.b16 %v668
  %v2098 = vunpack.c.h.b16 %v668
  %v2099 = vunpack.c.l.b16 %v669
  %v2100 = vunpack.c.h.b16 %v669
  %v2101 = vunpack.c.l.b16 %v670
  %v2102 = vunpack.c.h.b16 %v670
  %v2103 = vunpack.c.l.b16 %v671
  %v2104 = vunpack.c.h.b16 %v671
  %v2105 = vunpack.c.l.b16 %v672
  %v2106 = vunpack.c.h.b16 %v672
  %v2107 = vunpack.c.l.b16 %v673
  %v2108 = vunpack.c.h.b16 %v673
  %v2109 = vunpack.c.l.b16 %v674
  %v2110 = vunpack.c.h.b16 %v674
  %v2111 = vunpack.c.l.b16 %v675
  %v2112 = vunpack.c.h.b16 %v675
  %v2113 = vunpack.c.l.b16 %v676
  %v2114 = vunpack.c.h.b16 %v676
  %v2115 = vunpack.c.l.b16 %v677
  %v2116 = vunpack.c.h.b16 %v677
  %v2117 = vunpack.c.l.b16 %v678
  %v2118 = vunpack.c.h.b16 %v678
  %v2119 = vunpack.c.l.b16 %v679
  %v2120 = vunpack.c.h.b16 %v679
  %v2121 = vunpack.c.l.b16 %v680
  %v2122 = vunpack.c.h.b16 %v680
  %v2123 = vunpack.c.l.b16 %v681
  %v2124 = vunpack.c.h.b16 %v681
  %v2125 = vunpack.c.l.b16 %v682
  %v2126 = vunpack.c.h.b16 %v682
  %v2127 = vunpack.c.l.b16 %v683
  %v2128 = vunpack.c.h.b16 %v683
  %v2129 = vunpack.c.l.b16 %v684
  %v2130 = vunpack.c.h.b16 %v684
  %v2131 = vunpack.c.l.b16 %v685
  %v2132 = vunpack.c.h.b16 %v685
  %v2133 = vunpack.c.l.b16 %v686
  %v2134 = vunpack.c.h.b16 %v686
  %v2135 = vunpack.c.l.b16 %v687
  %v2136 = vunpack.c.h.b16 %v687
  %v2137 = vunpack.c.l.b16 %v688
  %v2138 = vunpack.c.h.b16 %v688
  %v2139 = vunpack.c.l.b16 %v689
  %v2140 = vunpack.c.h.b16 %v689
  %v2141 = vunpack.c.l.b16 %v690
  %v2142 = vunpack.c.h.b16 %v690
  %v2143 = vunpack.c.l.b16 %v691
  %v2144 = vunpack.c.h.b16 %v691
  %v2145 = vunpack.c.l.b16 %v692
  %v2146 = vunpack.c.h.b16 %v692
  %v2147 = vunpack.c.l.b16 %v693
  %v2148 = vunpack.c.h.b16 %v693
  %v2149 = vunpack.c.l.b16 %v694
  %v2150 = vunpack.c.h.b16 %v694
  %v2151 = vunpack.c.l.b16 %v695
  %v2152 = vunpack.c.h.b16 %v695
  %v2153 = vunpack.c.l.b16 %v696
  %v2154 = vunpack.c.h.b16 %v696
  %v2155 = vunpack.c.l.b16 %v697
  %v2156 = vunpack.c.h.b16 %v697
  %v2157 = vunpack.c.l.b16 %v698
  %v2158 = vunpack.c.h.b16 %v698
  %v2159 = vunpack.c.l.b16 %v699
  %v2160 = vunpack.c.h.b16 %v699
  %v2161 = vunpack.c.l.b16 %v700
  %v2162 = vunpack.c.h.b16 %v700
  %v2163 = vunpack.c.l.b16 %v701
  %v2164 = vunpack.c.h.b16 %v701
  %v2165 = vunpack.c.l.b16 %v702
  %v2166 = vunpack.c.h.b16 %v702
  %v2167 = vunpack.c.l.b16 %v703
  %v2168 = vunpack.c.h.b16 %v703
  %v2169 = vunpack.c.l.b16 %v704
  %v2170 = vunpack.c.h.b16 %v704
  %v2171 = vunpack.c.l.b16 %v705
  %v2172 = vunpack.c.h.b16 %v705
  %v2173 = vunpack.c.l.b16 %v706
  %v2174 = vunpack.c.h.b16 %v706
  %v2175 = vunpack.c.l.b16 %v707
  %v2176 = vunpack.c.h.b16 %v707
  %v2177 = vunpack.c.l.b16 %v708
  %v2178 = vunpack.c.h.b16 %v708
  %v2179 = vunpack.c.l.b16 %v709
  %v2180 = vunpack.c.h.b16 %v709
  %v2181 = vunpack.c.l.b16 %v710
  %v2182 = vunpack.c.h.b16 %v710
  %v2183 = vunpack.c.l.b16 %v711
  %v2184 = vunpack.c.h.b16 %v711
  %v2185 = vunpack.c.l.b16 %v712
  %v2186 = vunpack.c.h.b16 %v712
  %v2187 = vunpack.c.l.b16 %v713
  %v2188 = vunpack.c.h.b16 %v713
  %v2189 = vunpack.c.l.b16 %v714
  %v2190 = vunpack.c.h.b16 %v714
  %v2191 = vunpack.c.l.b16 %v715
  %v2192 = vunpack.c.h.b16 %v715
  %v2193 = vunpack.c.l.b16 %v716
  %v2194 = vunpack.c.h.b16 %v716
  %v2195 = vunpack.c.l.b16 %v717
  %v2196 = vunpack.c.h.b16 %v717
  %v2197 = vunpack.c.l.b16 %v718
  %v2198 = vunpack.c.h.b16 %v718
  %v2199 = vunpack.c.l.b16 %v719
  %v2200 = vunpack.c.h.b16 %v719
  %v2201 = vunpack.c.l.b16 %v720
  %v2202 = vunpack.c.h.b16 %v720
  %v2203 = vunpack.c.l.b16 %v721
  %v2204 = vunpack.c.h.b16 %v721
  %v2205 = vunpack.c.l.b16 %v722
  %v2206 = vunpack.c.h.b16 %v722
  %v2207 = vunpack.c.l.b16 %v723
  %v2208 = vunpack.c.h.b16 %v723
  %v2209 = vunpack.c.l.b16 %v724
  %v2210 = vunpack.c.h.b16 %v724
  %v2211 = vunpack.c.l.b16 %v725
  %v2212 = vunpack.c.h.b16 %v725
  %v2213 = vunpack.c.l.b16 %v726
  %v2214 = vunpack.c.h.b16 %v726
  %v2215 = vunpack.c.l.b16 %v727
  %v2216 = vunpack.c.h.b16 %v727
  %v2217 = vunpack.c.l.b16 %v728
  %v2218 = vunpack.c.h.b16 %v728
  %v2219 = vunpack.c.l.b16 %v729
  %v2220 = vunpack.c.h.b16 %v729
  %v2221 = vunpack.c.l.b16 %v730
  %v2222 = vunpack.c.h.b16 %v730
  %v2223 = vunpack.c.l.b16 %v731
  %v2224 = vunpack.c.h.b16 %v731
  %v2225 = vunpack.c.l.b16 %v732
  %v2226 = vunpack.c.h.b16 %v732
  %v2227 = vunpack.c.l.b16 %v733
  %v2228 = vunpack.c.h.b16 %v733
  %v2229 = vunpack.c.l.b16 %v734
  %v2230 = vunpack.c.h.b16 %v734
  %v2231 = vunpack.c.l.b16 %v735
  %v2232 = vunpack.c.h.b16 %v735
  %v2233 = vunpack.c.l.b16 %v736
  %v2234 = vunpack.c.h.b16 %v736
  %v2235 = vunpack.c.l.b16 %v737
  %v2236 = vunpack.c.h.b16 %v737
  %v2237 = vunpack.c.l.b16 %v738
  %v2238 = vunpack.c.h.b16 %v738
  %v2239 = vunpack.c.l.b16 %v739
  %v2240 = vunpack.c.h.b16 %v739
  %v2241 = vunpack.c.l.b16 %v740
  %v2242 = vunpack.c.h.b16 %v740
  %v2243 = vunpack.c.l.b16 %v741
  %v2244 = vunpack.c.h.b16 %v741
  %v2245 = vunpack.c.l.b16 %v742
  %v2246 = vunpack.c.h.b16 %v742
  %v2247 = vunpack.c.l.b16 %v743
  %v2248 = vunpack.c.h.b16 %v743
  %v2249 = vunpack.c.l.b16 %v744
  %v2250 = vunpack.c.h.b16 %v744
  %v2251 = vunpack.c.l.b16 %v745
  %v2252 = vunpack.c.h.b16 %v745
  %v2253 = vunpack.c.l.b16 %v746
  %v2254 = vunpack.c.h.b16 %v746
  %v2255 = vunpack.c.l.b16 %v747
  %v2256 = vunpack.c.h.b16 %v747
  %v2257 = vunpack.c.l.b16 %v748
  %v2258 = vunpack.c.h.b16 %v748
  %v2259 = vunpack.c.l.b16 %v749
  %v2260 = vunpack.c.h.b16 %v749
  %v2261 = vunpack.c.l.b16 %v750
  %v2262 = vunpack.c.h.b16 %v750
  %v2263 = vunpack.c.l.b16 %v751
  %v2264 = vunpack.c.h.b16 %v751
  %v2265 = vunpack.c.l.b16 %v752
  %v2266 = vunpack.c.h.b16 %v752
  %v2267 = vunpack.c.l.b16 %v753
  %v2268 = vunpack.c.h.b16 %v753
  %v2269 = vunpack.c.l.b16 %v754
  %v2270 = vunpack.c.h.b16 %v754
  %v2271 = vunpack.c.l.b16 %v755
  %v2272 = vunpack.c.h.b16 %v755
  %v2273 = vunpack.c.l.b16 %v756
  %v2274 = vunpack.c.h.b16 %v756
  %v2275 = vunpack.c.l.b16 %v757
  %v2276 = vunpack.c.h.b16 %v757
  %v2277 = vunpack.c.l.b16 %v758
  %v2278 = vunpack.c.h.b16 %v758
  %v2279 = vunpack.c.l.b16 %v759
  %v2280 = vunpack.c.h.b16 %v759
  %v2281 = vunpack.c.l.b16 %v760
  %v2282 = vunpack.c.h.b16 %v760
  %v2283 = vunpack.c.l.b16 %v761
  %v2284 = vunpack.c.h.b16 %v761
  %v2285 = vunpack.c.l.b16 %v762
  %v2286 = vunpack.c.h.b16 %v762
  %v2287 = vunpack.c.l.b16 %v763
  %v2288 = vunpack.c.h.b16 %v763
  %v2289 = vunpack.c.l.b16 %v764
  %v2290 = vunpack.c.h.b16 %v764
  %v2291 = vunpack.c.l.b16 %v765
  %v2292 = vunpack.c.h.b16 %v765
  %v2293 = vunpack.c.l.b16 %v766
  %v2294 = vunpack.c.h.b16 %v766
  %v2295 = vunpack.c.l.b16 %v767
  %v2296 = vunpack.c.h.b16 %v767
  %v2297 = vunpack.c.l.b16 %v768
  %v2298 = vunpack.c.h.b16 %v768
  %v2299 = vunpack.c.l.b16 %v769
  %v2300 = vunpack.c.h.b16 %v769
  %v2301 = vunpack.c.l.b16 %v770
  %v2302 = vunpack.c.h.b16 %v770
  %v2303 = vunpack.c.l.b16 %v771
  %v2304 = vunpack.c.h.b16 %v771
  %v2305 = vunpack.c.l.b16 %v772
  %v2306 = vunpack.c.h.b16 %v772
  %v2307 = vunpack.c.l.b16 %v773
  %v2308 = vunpack.c.h.b16 %v773
  %v2309 = vunpack.c.l.b16 %v774
  %v2310 = vunpack.c.h.b16 %v774
  %v2311 = vunpack.c.l.b16 %v775
  %v2312 = vunpack.c.h.b16 %v775
  %v2313 = vunpack.c.l.b16 %v776
  %v2314 = vunpack.c.h.b16 %v776
  %v2315 = vunpack.c.l.b16 %v777
  %v2316 = vunpack.c.h.b16 %v777
  %v2317 = vunpack.c.l.b16 %v778
  %v2318 = vunpack.c.h.b16 %v778
  %v2319 = vunpack.c.l.b16 %v779
  %v2320 = vunpack.c.h.b16 %v779
  %v2321 = vunpack.c.l.b16 %v780
  %v2322 = vunpack.c.h.b16 %v780
  %v2323 = vunpack.c.l.b16 %v781
  %v2324 = vunpack.c.h.b16 %v781
  %v2325 = vunpack.c.l.b16 %v782
  %v2326 = vunpack.c.h.b16 %v782
  %v2327 = vunpack.c.l.b16 %v783
  %v2328 = vunpack.c.h.b16 %v783
  %v2329 = vunpack.c.l.b16 %v784
  %v2330 = vunpack.c.h.b16 %v784
  %v2331 = vunpack.c.l.b16 %v785
  %v2332 = vunpack.c.h.b16 %v785
  %v2333 = vunpack.c.l.b16 %v786
  %v2334 = vunpack.c.h.b16 %v786
  %v2335 = vunpack.c.l.b16 %v787
  %v2336 = vunpack.c.h.b16 %v787
  %v2337 = vunpack.c.l.b16 %v788
  %v2338 = vunpack.c.h.b16 %v788
  %v2339 = vunpack.c.l.b16 %v789
  %v2340 = vunpack.c.h.b16 %v789
  %v2341 = vunpack.c.l.b16 %v790
  %v2342 = vunpack.c.h.b16 %v790
  %v2343 = vunpack.c.l.b16 %v791
  %v2344 = vunpack.c.h.b16 %v791
  %v2345 = vunpack.c.l.b16 %v792
  %v2346 = vunpack.c.h.b16 %v792
  %v2347 = vunpack.c.l.b16 %v793
  %v2348 = vunpack.c.h.b16 %v793
  %v2349 = vunpack.c.l.b16 %v794
  %v2350 = vunpack.c.h.b16 %v794
  %v2351 = vunpack.c.l.b16 %v795
  %v2352 = vunpack.c.h.b16 %v795
  %v2353 = vunpack.c.l.b16 %v796
  %v2354 = vunpack.c.h.b16 %v796
  %v2355 = vunpack.c.l.b16 %v797
  %v2356 = vunpack.c.h.b16 %v797
  %v2357 = vunpack.c.l.b16 %v798
  %v2358 = vunpack.c.h.b16 %v798
  %v2359 = vunpack.c.l.b16 %v799
  %v2360 = vunpack.c.h.b16 %v799
  %v2361 = vunpack.c.l.b16 %v800
  %v2362 = vunpack.c.h.b16 %v800
  %v2363 = vunpack.c.l.b16 %v801
  %v2364 = vunpack.c.h.b16 %v801
  %v2365 = vunpack.c.l.b16 %v802
  %v2366 = vunpack.c.h.b16 %v802
  %v2367 = vunpack.c.l.b16 %v803
  %v2368 = vunpack.c.h.b16 %v803
  %v2369 = vunpack.c.l.b16 %v804
  %v2370 = vunpack.c.h.b16 %v804
  %v2371 = vunpack.c.l.b16 %v805
  %v2372 = vunpack.c.h.b16 %v805
  %v2373 = vunpack.c.l.b16 %v806
  %v2374 = vunpack.c.h.b16 %v806
  %v2375 = vunpack.c.l.b16 %v807
  %v2376 = vunpack.c.h.b16 %v807
  %v2377 = vunpack.c.l.b16 %v808
  %v2378 = vunpack.c.h.b16 %v808
  %v2379 = vunpack.c.l.b16 %v809
  %v2380 = vunpack.c.h.b16 %v809
  %v2381 = vunpack.c.l.b16 %v810
  %v2382 = vunpack.c.h.b16 %v810
  %v2383 = vunpack.c.l.b16 %v811
  %v2384 = vunpack.c.h.b16 %v811
  %v2385 = vunpack.c.l.b16 %v812
  %v2386 = vunpack.c.h.b16 %v812
  %v2387 = vunpack.c.l.b16 %v813
  %v2388 = vunpack.c.h.b16 %v813
  %v2389 = vunpack.c.l.b16 %v814
  %v2390 = vunpack.c.h.b16 %v814
  %v2391 = vunpack.c.l.b16 %v815
  %v2392 = vunpack.c.h.b16 %v815
  %v2393 = vunpack.c.l.b16 %v816
  %v2394 = vunpack.c.h.b16 %v816
  %v2395 = vunpack.c.l.b16 %v817
  %v2396 = vunpack.c.h.b16 %v817
  %v2397 = vunpack.c.l.b16 %v818
  %v2398 = vunpack.c.h.b16 %v818
  %v2399 = vunpack.c.l.b16 %v819
  %v2400 = vunpack.c.h.b16 %v819
  %v2401 = vunpack.c.l.b16 %v820
  %v2402 = vunpack.c.h.b16 %v820
  %v2403 = vunpack.c.l.b16 %v821
  %v2404 = vunpack.c.h.b16 %v821
  %v2405 = vunpack.c.l.b16 %v822
  %v2406 = vunpack.c.h.b16 %v822
  %v2407 = vunpack.c.l.b16 %v823
  %v2408 = vunpack.c.h.b16 %v823
  %v2409 = vunpack.c.l.b16 %v824
  %v2410 = vunpack.c.h.b16 %v824
  %v2411 = vunpack.c.l.b16 %v825
  %v2412 = vunpack.c.h.b16 %v825
  %v2413 = vunpack.c.l.b16 %v826
  %v2414 = vunpack.c.h.b16 %v826
  %v2415 = vunpack.c.l.b16 %v827
  %v2416 = vunpack.c.h.b16 %v827
  %v2417 = vunpack.c.l.b16 %v828
  %v2418 = vunpack.c.h.b16 %v828
  %v2419 = vunpack.c.l.b16 %v829
  %v2420 = vunpack.c.h.b16 %v829
  %v2421 = vunpack.c.l.b16 %v830
  %v2422 = vunpack.c.h.b16 %v830
  %v2423 = vunpack.c.l.b16 %v831
  %v2424 = vunpack.c.h.b16 %v831
  %v2425 = vunpack.c.l.b16 %v832
  %v2426 = vunpack.c.h.b16 %v832
  %v2427 = vunpack.c.l.b16 %v833
  %v2428 = vunpack.c.h.b16 %v833
  %v2429 = vunpack.c.l.b16 %v834
  %v2430 = vunpack.c.h.b16 %v834
  %v2431 = vunpack.c.l.b16 %v835
  %v2432 = vunpack.c.h.b16 %v835
  %v2433 = vunpack.c.l.b16 %v836
  %v2434 = vunpack.c.h.b16 %v836
  %v2435 = vunpack.c.l.b16 %v837
  %v2436 = vunpack.c.h.b16 %v837
  %v2437 = vunpack.c.l.b16 %v838
  %v2438 = vunpack.c.h.b16 %v838
  %v2439 = vunpack.c.l.b16 %v839
  %v2440 = vunpack.c.h.b16 %v839
  %v2441 = vunpack.c.l.b16 %v840
  %v2442 = vunpack.c.h.b16 %v840
  %v2443 = vunpack.c.l.b16 %v841
  %v2444 = vunpack.c.h.b16 %v841
  %v2445 = vunpack.c.l.b16 %v842
  %v2446 = vunpack.c.h.b16 %v842
  %v2447 = vunpack.c.l.b16 %v843
  %v2448 = vunpack.c.h.b16 %v843
  %v2449 = vunpack.c.l.b16 %v844
  %v2450 = vunpack.c.h.b16 %v844
  %v2451 = vunpack.c.l.b16 %v845
  %v2452 = vunpack.c.h.b16 %v845
  %v2453 = vunpack.c.l.b16 %v846
  %v2454 = vunpack.c.h.b16 %v846
  %v2455 = vunpack.c.l.b16 %v847
  %v2456 = vunpack.c.h.b16 %v847
  %v2457 = vunpack.c.l.b16 %v848
  %v2458 = vunpack.c.h.b16 %v848
  %v2459 = vunpack.c.l.b16 %v849
  %v2460 = vunpack.c.h.b16 %v849
  %v2461 = vunpack.c.l.b16 %v850
  %v2462 = vunpack.c.h.b16 %v850
  %v2463 = vunpack.c.l.b16 %v851
  %v2464 = vunpack.c.h.b16 %v851
  %v2465 = vunpack.c.l.b16 %v852
  %v2466 = vunpack.c.h.b16 %v852
  %v2467 = vunpack.c.l.b16 %v853
  %v2468 = vunpack.c.h.b16 %v853
  %v2469 = vunpack.c.l.b16 %v854
  %v2470 = vunpack.c.h.b16 %v854
  %v2471 = vunpack.c.l.b16 %v855
  %v2472 = vunpack.c.h.b16 %v855
  %v2473 = vunpack.c.l.b16 %v856
  %v2474 = vunpack.c.h.b16 %v856
  %v2475 = vunpack.c.l.b16 %v857
  %v2476 = vunpack.c.h.b16 %v857
  %v2477 = vunpack.c.l.b16 %v858
  %v2478 = vunpack.c.h.b16 %v858
  %v2479 = vpack.c.b16 %v1471, %v1455
  %v2480 = vpack.c.b16 %v1472, %v1456
  %v2481 = vpack.c.b16 %v1473, %v1457
  %v2482 = vpack.c.b16 %v1474, %v1458
  %v2483 = vpack.c.b16 %v1475, %v1459
  %v2484 = vpack.c.b16 %v1476, %v1460
  %v2485 = vpack.c.b16 %v1477, %v1461
  %v2486 = vpack.c.b16 %v1478, %v1462
  %v2487 = vpack.c.b16 %v1479, %v1463
  %v2488 = vpack.c.b16 %v1480, %v1464
  %v2489 = vpack.c.b16 %v1481, %v1465
  %v2490 = vpack.c.b16 %v1482, %v1466
  %v2491 = vpack.c.b16 %v1483, %v1467
  %v2492 = vpack.c.b16 %v1484, %v1468
  %v2493 = vpack.c.b16 %v1485, %v1469
  %v2494 = vpack.c.b16 %v1486, %v1470
  %v2495 = vpack.c.b16 %v1503, %v1487
  %v2496 = vpack.c.b16 %v1504, %v1488
  %v2497 = vpack.c.b16 %v1505, %v1489
  %v2498 = vpack.c.b16 %v1506, %v1490
  %v2499 = vpack.c.b16 %v1507, %v1491
  %v2500 = vpack.c.b16 %v1508, %v1492
  %v2501 = vpack.c.b16 %v1509, %v1493
  %v2502 = vpack.c.b16 %v1510, %v1494
  %v2503 = vpack.c.b16 %v1511, %v1495
  %v2504 = vpack.c.b16 %v1512, %v1496
  %v2505 = vpack.c.b16 %v1513, %v1497
  %v2506 = vpack.c.b16 %v1514, %v1498
  %v2507 = vpack.c.b16 %v1515, %v1499
  %v2508 = vpack.c.b16 %v1516, %v1500
  %v2509 = vpack.c.b16 %v1517, %v1501
  %v2510 = vpack.c.b16 %v1518, %v1502
  %v2511 = vpack.c.b16 %v1535, %v1519
  %v2512 = vpack.c.b16 %v1536, %v1520
  %v2513 = vpack.c.b16 %v1537, %v1521
  %v2514 = vpack.c.b16 %v1538, %v1522
  %v2515 = vpack.c.b16 %v1539, %v1523
  %v2516 = vpack.c.b16 %v1540, %v1524
  %v2517 = vpack.c.b16 %v1541, %v1525
  %v2518 = vpack.c.b16 %v1542, %v1526
  %v2519 = vpack.c.b16 %v1543, %v1527
  %v2520 = vpack.c.b16 %v1544, %v1528
  %v2521 = vpack.c.b16 %v1545, %v1529
  %v2522 = vpack.c.b16 %v1546, %v1530
  %v2523 = vpack.c.b16 %v1547, %v1531
  %v2524 = vpack.c.b16 %v1548, %v1532
  %v2525 = vpack.c.b16 %v1549, %v1533
  %v2526 = vpack.c.b16 %v1550, %v1534
  %v2527 = vpack.c.b16 %v1567, %v1551
  %v2528 = vpack.c.b16 %v1568, %v1552
  %v2529 = vpack.c.b16 %v1569, %v1553
  %v2530 = vpack.c.b16 %v1570, %v1554
  %v2531 = vpack.c.b16 %v1571, %v1555
  %v2532 = vpack.c.b16 %v1572, %v1556
  %v2533 = vpack.c.b16 %v1573, %v1557
  %v2534 = vpack.c.b16 %v1574, %v1558
  %v2535 = vpack.c.b16 %v1575, %v1559
  %v2536 = vpack.c.b16 %v1576, %v1560
  %v2537 = vpack.c.b16 %v1577, %v1561
  %v2538 = vpack.c.b16 %v1578, %v1562
  %v2539 = vpack.c.b16 %v1579, %v1563
  %v2540 = vpack.c.b16 %v1580, %v1564
  %v2541 = vpack.c.b16 %v1581, %v1565
  %v2542 = vpack.c.b16 %v1582, %v1566
  %v2543 = vpack.c.b16 %v1599, %v1583
  %v2544 = vpack.c.b16 %v1600, %v1584
  %v2545 = vpack.c.b16 %v1601, %v1585
  %v2546 = vpack.c.b16 %v1602, %v1586
  %v2547 = vpack.c.b16 %v1603, %v1587
  %v2548 = vpack.c.b16 %v1604, %v1588
  %v2549 = vpack.c.b16 %v1605, %v1589
  %v2550 = vpack.c.b16 %v1606, %v1590
  %v2551 = vpack.c.b16 %v1607, %v1591
  %v2552 = vpack.c.b16 %v1608, %v1592
  %v2553 = vpack.c.b16 %v1609, %v1593
  %v2554 = vpack.c.b16 %v1610, %v1594
  %v2555 = vpack.c.b16 %v1611, %v1595
  %v2556 = vpack.c.b16 %v1612, %v1596
  %v2557 = vpack.c.b16 %v1613, %v1597
  %v2558 = vpack.c.b16 %v1614, %v1598
  %v2559 = vpack.c.b16 %v1631, %v1615
  %v2560 = vpack.c.b16 %v1632, %v1616
  %v2561 = vpack.c.b16 %v1633, %v1617
  %v2562 = vpack.c.b16 %v1634, %v1618
  %v2563 = vpack.c.b16 %v1635, %v1619
  %v2564 = vpack.c.b16 %v1636, %v1620
  %v2565 = vpack.c.b16 %v1637, %v1621
  %v2566 = vpack.c.b16 %v1638, %v1622
  %v2567 = vpack.c.b16 %v1639, %v1623
  %v2568 = vpack.c.b16 %v1640, %v1624
  %v2569 = vpack.c.b16 %v1641, %v1625
  %v2570 = vpack.c.b16 %v1642, %v1626
  %v2571 = vpack.c.b16 %v1643, %v1627
  %v2572 = vpack.c.b16 %v1644, %v1628
  %v2573 = vpack.c.b16 %v1645, %v1629
  %v2574 = vpack.c.b16 %v1646, %v1630
  %v2575 = vpack.c.b16 %v1663, %v1647
  %v2576 = vpack.c.b16 %v1664, %v1648
  %v2577 = vpack.c.b16 %v1665, %v1649
  %v2578 = vpack.c.b16 %v1666, %v1650
  %v2579 = vpack.c.b16 %v1667, %v1651
  %v2580 = vpack.c.b16 %v1668, %v1652
  %v2581 = vpack.c.b16 %v1669, %v1653
  %v2582 = vpack.c.b16 %v1670, %v1654
  %v2583 = vpack.c.b16 %v1671, %v1655
  %v2584 = vpack.c.b16 %v1672, %v1656
  %v2585 = vpack.c.b16 %v1673, %v1657
  %v2586 = vpack.c.b16 %v1674, %v1658
  %v2587 = vpack.c.b16 %v1675, %v1659
  %v2588 = vpack.c.b16 %v1676, %v1660
  %v2589 = vpack.c.b16 %v1677, %v1661
  %v2590 = vpack.c.b16 %v1678, %v1662
  %v2591 = vpack.c.b16 %v1695, %v1679
  %v2592 = vpack.c.b16 %v1696, %v1680
  %v2593 = vpack.c.b16 %v1697, %v1681
  %v2594 = vpack.c.b16 %v1698, %v1682
  %v2595 = vpack.c.b16 %v1699, %v1683
  %v2596 = vpack.c.b16 %v1700, %v1684
  %v2597 = vpack.c.b16 %v1701, %v1685
  %v2598 = vpack.c.b16 %v1702, %v1686
  %v2599 = vpack.c.b16 %v1703, %v1687
  %v2600 = vpack.c.b16 %v1704, %v1688
  %v2601 = vpack.c.b16 %v1705, %v1689
  %v2602 = vpack.c.b16 %v1706, %v1690
  %v2603 = vpack.c.b16 %v1707, %v1691
  %v2604 = vpack.c.b16 %v1708, %v1692
  %v2605 = vpack.c.b16 %v1709, %v1693
  %v2606 = vpack.c.b16 %v1710, %v1694
  %v2607 = vpack.c.b16 %v1727, %v1711
  %v2608 = vpack.c.b16 %v1728, %v1712
  %v2609 = vpack.c.b16 %v1729, %v1713
  %v2610 = vpack.c.b16 %v1730, %v1714
  %v2611 = vpack.c.b16 %v1731, %v1715
  %v2612 = vpack.c.b16 %v1732, %v1716
  %v2613 = vpack.c.b16 %v1733, %v1717
  %v2614 = vpack.c.b16 %v1734, %v1718
  %v2615 = vpack.c.b16 %v1735, %v1719
  %v2616 = vpack.c.b16 %v1736, %v1720
  %v2617 = vpack.c.b16 %v1737, %v1721
  %v2618 = vpack.c.b16 %v1738, %v1722
  %v2619 = vpack.c.b16 %v1739, %v1723
  %v2620 = vpack.c.b16 %v1740, %v1724
  %v2621 = vpack.c.b16 %v1741, %v1725
  %v2622 = vpack.c.b16 %v1742, %v1726
  %v2623 = vpack.c.b16 %v1759, %v1743
  %v2624 = vpack.c.b16 %v1760, %v1744
  %v2625 = vpack.c.b16 %v1761, %v1745
  %v2626 = vpack.c.b16 %v1762, %v1746
  %v2627 = vpack.c.b16 %v1763, %v1747
  %v2628 = vpack.c.b16 %v1764, %v1748
  %v2629 = vpack.c.b16 %v1765, %v1749
  %v2630 = vpack.c.b16 %v1766, %v1750
  %v2631 = vpack.c.b16 %v1767, %v1751
  %v2632 = vpack.c.b16 %v1768, %v1752
  %v2633 = vpack.c.b16 %v1769, %v1753
  %v2634 = vpack.c.b16 %v1770, %v1754
  %v2635 = vpack.c.b16 %v1771, %v1755
  %v2636 = vpack.c.b16 %v1772, %v1756
  %v2637 = vpack.c.b16 %v1773, %v1757
  %v2638 = vpack.c.b16 %v1774, %v1758
  %v2639 = vpack.c.b16 %v1791, %v1775
  %v2640 = vpack.c.b16 %v1792, %v1776
  %v2641 = vpack.c.b16 %v1793, %v1777
  %v2642 = vpack.c.b16 %v1794, %v1778
  %v2643 = vpack.c.b16 %v1795, %v1779
  %v2644 = vpack.c.b16 %v1796, %v1780
  %v2645 = vpack.c.b16 %v1797, %v1781
  %v2646 = vpack.c.b16 %v1798, %v1782
  %v2647 = vpack.c.b16 %v1799, %v1783
  %v2648 = vpack.c.b16 %v1800, %v1784
  %v2649 = vpack.c.b16 %v1801, %v1785
  %v2650 = vpack.c.b16 %v1802, %v1786
  %v2651 = vpack.c.b16 %v1803, %v1787
  %v2652 = vpack.c.b16 %v1804, %v1788
  %v2653 = vpack.c.b16 %v1805, %v1789
  %v2654 = vpack.c.b16 %v1806, %v1790
  %v2655 = vpack.c.b16 %v1823, %v1807
  %v2656 = vpack.c.b16 %v1824, %v1808
  %v2657 = vpack.c.b16 %v1825, %v1809
  %v2658 = vpack.c.b16 %v1826, %v1810
  %v2659 = vpack.c.b16 %v1827, %v1811
  %v2660 = vpack.c.b16 %v1828, %v1812
  %v2661 = vpack.c.b16 %v1829, %v1813
  %v2662 = vpack.c.b16 %v1830, %v1814
  %v2663 = vpack.c.b16 %v1831, %v1815
  %v2664 = vpack.c.b16 %v1832, %v1816
  %v2665 = vpack.c.b16 %v1833, %v1817
  %v2666 = vpack.c.b16 %v1834, %v1818
  %v2667 = vpack.c.b16 %v1835, %v1819
  %v2668 = vpack.c.b16 %v1836, %v1820
  %v2669 = vpack.c.b16 %v1837, %v1821
  %v2670 = vpack.c.b16 %v1838, %v1822
  %v2671 = vpack.c.b16 %v1855, %v1839
  %v2672 = vpack.c.b16 %v1856, %v1840
  %v2673 = vpack.c.b16 %v1857, %v1841
  %v2674 = vpack.c.b16 %v1858, %v1842
  %v2675 = vpack.c.b16 %v1859, %v1843
  %v2676 = vpack.c.b16 %v1860, %v1844
  %v2677 = vpack.c.b16 %v1861, %v1845
  %v2678 = vpack.c.b16 %v1862, %v1846
  %v2679 = vpack.c.b16 %v1863, %v1847
  %v2680 = vpack.c.b16 %v1864, %v1848
  %v2681 = vpack.c.b16 %v1865, %v1849
  %v2682 = vpack.c.b16 %v1866, %v1850
  %v2683 = vpack.c.b16 %v1867, %v1851
  %v2684 = vpack.c.b16 %v1868, %v1852
  %v2685 = vpack.c.b16 %v1869, %v1853
  %v2686 = vpack.c.b16 %v1870, %v1854
  %v2687 = vpack.c.b16 %v1887, %v1871
  %v2688 = vpack.c.b16 %v1888, %v1872
  %v2689 = vpack.c.b16 %v1889, %v1873
  %v2690 = vpack.c.b16 %v1890, %v1874
  %v2691 = vpack.c.b16 %v1891, %v1875
  %v2692 = vpack.c.b16 %v1892, %v1876
  %v2693 = vpack.c.b16 %v1893, %v1877
  %v2694 = vpack.c.b16 %v1894, %v1878
  %v2695 = vpack.c.b16 %v1895, %v1879
  %v2696 = vpack.c.b16 %v1896, %v1880
  %v2697 = vpack.c.b16 %v1897, %v1881
  %v2698 = vpack.c.b16 %v1898, %v1882
  %v2699 = vpack.c.b16 %v1899, %v1883
  %v2700 = vpack.c.b16 %v1900, %v1884
  %v2701 = vpack.c.b16 %v1901, %v1885
  %v2702 = vpack.c.b16 %v1902, %v1886
  %v2703 = vpack.c.b16 %v1919, %v1903
  %v2704 = vpack.c.b16 %v1920, %v1904
  %v2705 = vpack.c.b16 %v1921, %v1905
  %v2706 = vpack.c.b16 %v1922, %v1906
  %v2707 = vpack.c.b16 %v1923, %v1907
  %v2708 = vpack.c.b16 %v1924, %v1908
  %v2709 = vpack.c.b16 %v1925, %v1909
  %v2710 = vpack.c.b16 %v1926, %v1910
  %v2711 = vpack.c.b16 %v1927, %v1911
  %v2712 = vpack.c.b16 %v1928, %v1912
  %v2713 = vpack.c.b16 %v1929, %v1913
  %v2714 = vpack.c.b16 %v1930, %v1914
  %v2715 = vpack.c.b16 %v1931, %v1915
  %v2716 = vpack.c.b16 %v1932, %v1916
  %v2717 = vpack.c.b16 %v1933, %v1917
  %v2718 = vpack.c.b16 %v1934, %v1918
  %v2719 = vpack.c.b16 %v1951, %v1935
  %v2720 = vpack.c.b16 %v1952, %v1936
  %v2721 = vpack.c.b16 %v1953, %v1937
  %v2722 = vpack.c.b16 %v1954, %v1938
  %v2723 = vpack.c.b16 %v1955, %v1939
  %v2724 = vpack.c.b16 %v1956, %v1940
  %v2725 = vpack.c.b16 %v1957, %v1941
  %v2726 = vpack.c.b16 %v1958, %v1942
  %v2727 = vpack.c.b16 %v1959, %v1943
  %v2728 = vpack.c.b16 %v1960, %v1944
  %v2729 = vpack.c.b16 %v1961, %v1945
  %v2730 = vpack.c.b16 %v1962, %v1946
  %v2731 = vpack.c.b16 %v1963, %v1947
  %v2732 = vpack.c.b16 %v1964, %v1948
  %v2733 = vpack.c.b16 %v1965, %v1949
  %v2734 = vpack.c.b16 %v1966, %v1950
  %v2735 = vpack.c.b16 %v1983, %v1967
  %v2736 = vpack.c.b16 %v1984, %v1968
  %v2737 = vpack.c.b16 %v1985, %v1969
  %v2738 = vpack.c.b16 %v1986, %v1970
  %v2739 = vpack.c.b16 %v1987, %v1971
  %v2740 = vpack.c.b16 %v1988, %v1972
  %v2741 = vpack.c.b16 %v1989, %v1973
  %v2742 = vpack.c.b16 %v1990, %v1974
  %v2743 = vpack.c.b16 %v1991, %v1975
  %v2744 = vpack.c.b16 %v1992, %v1976
  %v2745 = vpack.c.b16 %v1993, %v1977
  %v2746 = vpack.c.b16 %v1994, %v1978
  %v2747 = vpack.c.b16 %v1995, %v1979
  %v2748 = vpack.c.b16 %v1996, %v1980
  %v2749 = vpack.c.b16 %v1997, %v1981
  %v2750 = vpack.c.b16 %v1998, %v1982
  %v2751 = vpack.c.b16 %v2015, %v1999
  %v2752 = vpack.c.b16 %v2016, %v2000
  %v2753 = vpack.c.b16 %v2017, %v2001
  %v2754 = vpack.c.b16 %v2018, %v2002
  %v2755 = vpack.c.b16 %v2019, %v2003
  %v2756 = vpack.c.b16 %v2020, %v2004
  %v2757 = vpack.c.b16 %v2021, %v2005
  %v2758 = vpack.c.b16 %v2022, %v2006
  %v2759 = vpack.c.b16 %v2023, %v2007
  %v2760 = vpack.c.b16 %v2024, %v2008
  %v2761 = vpack.c.b16 %v2025, %v2009
  %v2762 = vpack.c.b16 %v2026, %v2010
  %v2763 = vpack.c.b16 %v2027, %v2011
  %v2764 = vpack.c.b16 %v2028, %v2012
  %v2765 = vpack.c.b16 %v2029, %v2013
  %v2766 = vpack.c.b16 %v2030, %v2014
  %v2767 = vpack.c.b16 %v2047, %v2031
  %v2768 = vpack.c.b16 %v2048, %v2032
  %v2769 = vpack.c.b16 %v2049, %v2033
  %v2770 = vpack.c.b16 %v2050, %v2034
  %v2771 = vpack.c.b16 %v2051, %v2035
  %v2772 = vpack.c.b16 %v2052, %v2036
  %v2773 = vpack.c.b16 %v2053, %v2037
  %v2774 = vpack.c.b16 %v2054, %v2038
  %v2775 = vpack.c.b16 %v2055, %v2039
  %v2776 = vpack.c.b16 %v2056, %v2040
  %v2777 = vpack.c.b16 %v2057, %v2041
  %v2778 = vpack.c.b16 %v2058, %v2042
  %v2779 = vpack.c.b16 %v2059, %v2043
  %v2780 = vpack.c.b16 %v2060, %v2044
  %v2781 = vpack.c.b16 %v2061, %v2045
  %v2782 = vpack.c.b16 %v2062, %v2046
  %v2783 = vpack.c.b16 %v2079, %v2063
  %v2784 = vpack.c.b16 %v2080, %v2064
  %v2785 = vpack.c.b16 %v2081, %v2065
  %v2786 = vpack.c.b16 %v2082, %v2066
  %v2787 = vpack.c.b16 %v2083, %v2067
  %v2788 = vpack.c.b16 %v2084, %v2068
  %v2789 = vpack.c.b16 %v2085, %v2069
  %v2790 = vpack.c.b16 %v2086, %v2070
  %v2791 = vpack.c.b16 %v2087, %v2071
  %v2792 = vpack.c.b16 %v2088, %v2072
  %v2793 = vpack.c.b16 %v2089, %v2073
  %v2794 = vpack.c.b16 %v2090, %v2074
  %v2795 = vpack.c.b16 %v2091, %v2075
  %v2796 = vpack.c.b16 %v2092, %v2076
  %v2797 = vpack.c.b16 %v2093, %v2077
  %v2798 = vpack.c.b16 %v2094, %v2078
  %v2799 = vpack.c.b16 %v2111, %v2095
  %v2800 = vpack.c.b16 %v2112, %v2096
  %v2801 = vpack.c.b16 %v2113, %v2097
  %v2802 = vpack.c.b16 %v2114, %v2098
  %v2803 = vpack.c.b16 %v2115, %v2099
  %v2804 = vpack.c.b16 %v2116, %v2100
  %v2805 = vpack.c.b16 %v2117, %v2101
  %v2806 = vpack.c.b16 %v2118, %v2102
  %v2807 = vpack.c.b16 %v2119, %v2103
  %v2808 = vpack.c.b16 %v2120, %v2104
  %v2809 = vpack.c.b16 %v2121, %v2105
  %v2810 = vpack.c.b16 %v2122, %v2106
  %v2811 = vpack.c.b16 %v2123, %v2107
  %v2812 = vpack.c.b16 %v2124, %v2108
  %v2813 = vpack.c.b16 %v2125, %v2109
  %v2814 = vpack.c.b16 %v2126, %v2110
  %v2815 = vpack.c.b16 %v2143, %v2127
  %v2816 = vpack.c.b16 %v2144, %v2128
  %v2817 = vpack.c.b16 %v2145, %v2129
  %v2818 = vpack.c.b16 %v2146, %v2130
  %v2819 = vpack.c.b16 %v2147, %v2131
  %v2820 = vpack.c.b16 %v2148, %v2132
  %v2821 = vpack.c.b16 %v2149, %v2133
  %v2822 = vpack.c.b16 %v2150, %v2134
  %v2823 = vpack.c.b16 %v2151, %v2135
  %v2824 = vpack.c.b16 %v2152, %v2136
  %v2825 = vpack.c.b16 %v2153, %v2137
  %v2826 = vpack.c.b16 %v2154, %v2138
  %v2827 = vpack.c.b16 %v2155, %v2139
  %v2828 = vpack.c.b16 %v2156, %v2140
  %v2829 = vpack.c.b16 %v2157, %v2141
  %v2830 = vpack.c.b16 %v2158, %v2142
  %v2831 = vpack.c.b16 %v2175, %v2159
  %v2832 = vpack.c.b16 %v2176, %v2160
  %v2833 = vpack.c.b16 %v2177, %v2161
  %v2834 = vpack.c.b16 %v2178, %v2162
  %v2835 = vpack.c.b16 %v2179, %v2163
  %v2836 = vpack.c.b16 %v2180, %v2164
  %v2837 = vpack.c.b16 %v2181, %v2165
  %v2838 = vpack.c.b16 %v2182, %v2166
  %v2839 = vpack.c.b16 %v2183, %v2167
  %v2840 = vpack.c.b16 %v2184, %v2168
  %v2841 = vpack.c.b16 %v2185, %v2169
  %v2842 = vpack.c.b16 %v2186, %v2170
  %v2843 = vpack.c.b16 %v2187, %v2171
  %v2844 = vpack.c.b16 %v2188, %v2172
  %v2845 = vpack.c.b16 %v2189, %v2173
  %v2846 = vpack.c.b16 %v2190, %v2174
  %v2847 = vpack.c.b16 %v2207, %v2191
  %v2848 = vpack.c.b16 %v2208, %v2192
  %v2849 = vpack.c.b16 %v2209, %v2193
  %v2850 = vpack.c.b16 %v2210, %v2194
  %v2851 = vpack.c.b16 %v2211, %v2195
  %v2852 = vpack.c.b16 %v2212, %v2196
  %v2853 = vpack.c.b16 %v2213, %v2197
  %v2854 = vpack.c.b16 %v2214, %v2198
  %v2855 = vpack.c.b16 %v2215, %v2199
  %v2856 = vpack.c.b16 %v2216, %v2200
  %v2857 = vpack.c.b16 %v2217, %v2201
  %v2858 = vpack.c.b16 %v2218, %v2202
  %v2859 = vpack.c.b16 %v2219, %v2203
  %v2860 = vpack.c.b16 %v2220, %v2204
  %v2861 = vpack.c.b16 %v2221, %v2205
  %v2862 = vpack.c.b16 %v2222, %v2206
  %v2863 = vpack.c.b16 %v2239, %v2223
  %v2864 = vpack.c.b16 %v2240, %v2224
  %v2865 = vpack.c.b16 %v2241, %v2225
  %v2866 = vpack.c.b16 %v2242, %v2226
  %v2867 = vpack.c.b16 %v2243, %v2227
  %v2868 = vpack.c.b16 %v2244, %v2228
  %v2869 = vpack.c.b16 %v2245, %v2229
  %v2870 = vpack.c.b16 %v2246, %v2230
  %v2871 = vpack.c.b16 %v2247, %v2231
  %v2872 = vpack.c.b16 %v2248, %v2232
  %v2873 = vpack.c.b16 %v2249, %v2233
  %v2874 = vpack.c.b16 %v2250, %v2234
  %v2875 = vpack.c.b16 %v2251, %v2235
  %v2876 = vpack.c.b16 %v2252, %v2236
  %v2877 = vpack.c.b16 %v2253, %v2237
  %v2878 = vpack.c.b16 %v2254, %v2238
  %v2879 = vpack.c.b16 %v2271, %v2255
  %v2880 = vpack.c.b16 %v2272, %v2256
  %v2881 = vpack.c.b16 %v2273, %v2257
  %v2882 = vpack.c.b16 %v2274, %v2258
  %v2883 = vpack.c.b16 %v2275, %v2259
  %v2884 = vpack.c.b16 %v2276, %v2260
  %v2885 = vpack.c.b16 %v2277, %v2261
  %v2886 = vpack.c.b16 %v2278, %v2262
  %v2887 = vpack.c.b16 %v2279, %v2263
  %v2888 = vpack.c.b16 %v2280, %v2264
  %v2889 = vpack.c.b16 %v2281, %v2265
  %v2890 = vpack.c.b16 %v2282, %v2266
  %v2891 = vpack.c.b16 %v2283, %v2267
  %v2892 = vpack.c.b16 %v2284, %v2268
  %v2893 = vpack.c.b16 %v2285, %v2269
  %v2894 = vpack.c.b16 %v2286, %v2270
  %v2895 = vpack.c.b16 %v2303, %v2287
  %v2896 = vpack.c.b16 %v2304, %v2288
  %v2897 = vpack.c.b16 %v2305, %v2289
  %v2898 = vpack.c.b16 %v2306, %v2290
  %v2899 = vpack.c.b16 %v2307, %v2291
  %v2900 = vpack.c.b16 %v2308, %v2292
  %v2901 = vpack.c.b16 %v2309, %v2293
  %v2902 = vpack.c.b16 %v2310, %v2294
  %v2903 = vpack.c.b16 %v2311, %v2295
  %v2904 = vpack.c.b16 %v2312, %v2296
  %v2905 = vpack.c.b16 %v2313, %v2297
  %v2906 = vpack.c.b16 %v2314, %v2298
  %v2907 = vpack.c.b16 %v2315, %v2299
  %v2908 = vpack.c.b16 %v2316, %v2300
  %v2909 = vpack.c.b16 %v2317, %v2301
  %v2910 = vpack.c.b16 %v2318, %v2302
  %v2911 = vpack.c.b16 %v2335, %v2319
  %v2912 = vpack.c.b16 %v2336, %v2320
  %v2913 = vpack.c.b16 %v2337, %v2321
  %v2914 = vpack.c.b16 %v2338, %v2322
  %v2915 = vpack.c.b16 %v2339, %v2323
  %v2916 = vpack.c.b16 %v2340, %v2324
  %v2917 = vpack.c.b16 %v2341, %v2325
  %v2918 = vpack.c.b16 %v2342, %v2326
  %v2919 = vpack.c.b16 %v2343, %v2327
  %v2920 = vpack.c.b16 %v2344, %v2328
  %v2921 = vpack.c.b16 %v2345, %v2329
  %v2922 = vpack.c.b16 %v2346, %v2330
  %v2923 = vpack.c.b16 %v2347, %v2331
  %v2924 = vpack.c.b16 %v2348, %v2332
  %v2925 = vpack.c.b16 %v2349, %v2333
  %v2926 = vpack.c.b16 %v2350, %v2334
  %v2927 = vpack.c.b16 %v2367, %v2351
  %v2928 = vpack.c.b16 %v2368, %v2352
  %v2929 = vpack.c.b16 %v2369, %v2353
  %v2930 = vpack.c.b16 %v2370, %v2354
  %v2931 = vpack.c.b16 %v2371, %v2355
  %v2932 = vpack.c.b16 %v2372, %v2356
  %v2933 = vpack.c.b16 %v2373, %v2357
  %v2934 = vpack.c.b16 %v2374, %v2358
  %v2935 = vpack.c.b16 %v2375, %v2359
  %v2936 = vpack.c.b16 %v2376, %v2360
  %v2937 = vpack.c.b16 %v2377, %v2361
  %v2938 = vpack.c.b16 %v2378, %v2362
  %v2939 = vpack.c.b16 %v2379, %v2363
  %v2940 = vpack.c.b16 %v2380, %v2364
  %v2941 = vpack.c.b16 %v2381, %v2365
  %v2942 = vpack.c.b16 %v2382, %v2366
  %v2943 = vpack.c.b16 %v2399, %v2383
  %v2944 = vpack.c.b16 %v2400, %v2384
  %v2945 = vpack.c.b16 %v2401, %v2385
  %v2946 = vpack.c.b16 %v2402, %v2386
  %v2947 = vpack.c.b16 %v2403, %v2387
  %v2948 = vpack.c.b16 %v2404, %v2388
  %v2949 = vpack.c.b16 %v2405, %v2389
  %v2950 = vpack.c.b16 %v2406, %v2390
  %v2951 = vpack.c.b16 %v2407, %v2391
  %v2952 = vpack.c.b16 %v2408, %v2392
  %v2953 = vpack.c.b16 %v2409, %v2393
  %v2954 = vpack.c.b16 %v2410, %v2394
  %v2955 = vpack.c.b16 %v2411, %v2395
  %v2956 = vpack.c.b16 %v2412, %v2396
  %v2957 = vpack.c.b16 %v2413, %v2397
  %v2958 = vpack.c.b16 %v2414, %v2398
  %v2959 = vpack.c.b16 %v2431, %v2415
  %v2960 = vpack.c.b16 %v2432, %v2416
  %v2961 = vpack.c.b16 %v2433, %v2417
  %v2962 = vpack.c.b16 %v2434, %v2418
  %v2963 = vpack.c.b16 %v2435, %v2419
  %v2964 = vpack.c.b16 %v2436, %v2420
  %v2965 = vpack.c.b16 %v2437, %v2421
  %v2966 = vpack.c.b16 %v2438, %v2422
  %v2967 = vpack.c.b16 %v2439, %v2423
  %v2968 = vpack.c.b16 %v2440, %v2424
  %v2969 = vpack.c.b16 %v2441, %v2425
  %v2970 = vpack.c.b16 %v2442, %v2426
  %v2971 = vpack.c.b16 %v2443, %v2427
  %v2972 = vpack.c.b16 %v2444, %v2428
  %v2973 = vpack.c.b16 %v2445, %v2429
  %v2974 = vpack.c.b16 %v2446, %v2430
  %v2975 = vpack.c.b16 %v2463, %v2447
  %v2976 = vpack.c.b16 %v2464, %v2448
  %v2977 = vpack.c.b16 %v2465, %v2449
  %v2978 = vpack.c.b16 %v2466, %v2450
  %v2979 = vpack.c.b16 %v2467, %v2451
  %v2980 = vpack.c.b16 %v2468, %v2452
  %v2981 = vpack.c.b16 %v2469, %v2453
  %v2982 = vpack.c.b16 %v2470, %v2454
  %v2983 = vpack.c.b16 %v2471, %v2455
  %v2984 = vpack.c.b16 %v2472, %v2456
  %v2985 = vpack.c.b16 %v2473, %v2457
  %v2986 = vpack.c.b16 %v2474, %v2458
  %v2987 = vpack.c.b16 %v2475, %v2459
  %v2988 = vpack.c.b16 %v2476, %v2460
  %v2989 = vpack.c.b16 %v2477, %v2461
  %v2990 = vpack.c.b16 %v2478, %v2462
  %3503 = vmatprep.subr.bf16.mxu0 %v2480
  %3504 = vmatpush1.bf16.msra.mxu0 %v2479
  %3505 = vmatprep.subr.bf16.mxu0 %v2496
  %3506 = vmatpush1.bf16.msra.mxu0 %v2495
  %3507 = vmatprep.subr.bf16.mxu0 %v2512
  %3508 = vmatpush1.bf16.msra.mxu0 %v2511
  %3509 = vmatprep.subr.bf16.mxu0 %v2528
  %3510 = vmatpush1.bf16.msra.mxu0 %v2527
  %3511 = vmatprep.subr.bf16.mxu0 %v2544
  %3512 = vmatpush1.bf16.msra.mxu0 %v2543
  %3513 = vmatprep.subr.bf16.mxu0 %v2560
  %3514 = vmatpush1.bf16.msra.mxu0 %v2559
  %3515 = vmatprep.subr.bf16.mxu0 %v2576
  %3516 = vmatpush1.bf16.msra.mxu0 %v2575
  %3517 = vmatprep.subr.bf16.mxu0 %v2592
  %3518 = vmatpush1.bf16.msra.mxu0 %v2591
  %3519 = vmatprep.subr.bf16.mxu0 %v2608
  %3520 = vmatpush1.bf16.msra.mxu0 %v2607
  %3521 = vmatprep.subr.bf16.mxu0 %v2624
  %3522 = vmatpush1.bf16.msra.mxu0 %v2623
  %3523 = vmatprep.subr.bf16.mxu0 %v2640
  %3524 = vmatpush1.bf16.msra.mxu0 %v2639
  %3525 = vmatprep.subr.bf16.mxu0 %v2656
  %3526 = vmatpush1.bf16.msra.mxu0 %v2655
  %3527 = vmatprep.subr.bf16.mxu0 %v2672
  %3528 = vmatpush1.bf16.msra.mxu0 %v2671
  %3529 = vmatprep.subr.bf16.mxu0 %v2688
  %3530 = vmatpush1.bf16.msra.mxu0 %v2687
  %3531 = vmatprep.subr.bf16.mxu0 %v2704
  %3532 = vmatpush1.bf16.msra.mxu0 %v2703
  %3533 = vmatprep.subr.bf16.mxu0 %v2720
  %3534 = vmatpush1.bf16.msra.mxu0 %v2719
  %3535 = vmatprep.mubr.bf16.mxu0 %v344
  %3536 = vmatmul.mubr.bf16.gmra.mrb[0].mxu0 %v343
  %v3537 = vpop.f32.mrb[0].mxu0
  %v3538 = vadd.f32 %v866, %v3537
  %v3539 = vpop.f32.mrb[0].mxu0
  %v3540 = vadd.f32 %v870, %v3539
  %v3541 = vpop.f32.mrb[0].mxu0
  %v3542 = vadd.f32 %v866, %v3541
  %v3543 = vpop.f32.mrb[0].mxu0
  %v3544 = vadd.f32 %v870, %v3543
  %3545 = vdwg.mxu0
  %3546 = vmatprep.subr.bf16.mxu0 %v2736
  %3547 = vmatpush1.bf16.msra.mxu0 %v2735
  %3548 = vmatprep.subr.bf16.mxu0 %v2752
  %3549 = vmatpush1.bf16.msra.mxu0 %v2751
  %3550 = vmatprep.subr.bf16.mxu0 %v2768
  %3551 = vmatpush1.bf16.msra.mxu0 %v2767
  %3552 = vmatprep.subr.bf16.mxu0 %v2784
  %3553 = vmatpush1.bf16.msra.mxu0 %v2783
  %3554 = vmatprep.subr.bf16.mxu0 %v2800
  %3555 = vmatpush1.bf16.msra.mxu0 %v2799
  %3556 = vmatprep.subr.bf16.mxu0 %v2816
  %3557 = vmatpush1.bf16.msra.mxu0 %v2815
  %3558 = vmatprep.subr.bf16.mxu0 %v2832
  %3559 = vmatpush1.bf16.msra.mxu0 %v2831
  %3560 = vmatprep.subr.bf16.mxu0 %v2848
  %3561 = vmatpush1.bf16.msra.mxu0 %v2847
  %3562 = vmatprep.subr.bf16.mxu0 %v2864
  %3563 = vmatpush1.bf16.msra.mxu0 %v2863
  %3564 = vmatprep.subr.bf16.mxu0 %v2880
  %3565 = vmatpush1.bf16.msra.mxu0 %v2879
  %3566 = vmatprep.subr.bf16.mxu0 %v2896
  %3567 = vmatpush1.bf16.msra.mxu0 %v2895
  %3568 = vmatprep.subr.bf16.mxu0 %v2912
  %3569 = vmatpush1.bf16.msra.mxu0 %v2911
  %3570 = vmatprep.subr.bf16.mxu0 %v2928
  %3571 = vmatpush1.bf16.msra.mxu0 %v2927
  %3572 = vmatprep.subr.bf16.mxu0 %v2944
  %3573 = vmatpush1.bf16.msra.mxu0 %v2943
  %3574 = vmatprep.subr.bf16.mxu0 %v2960
  %3575 = vmatpush1.bf16.msra.mxu0 %v2959
  %3576 = vmatprep.subr.bf16.mxu0 %v2976
  %3577 = vmatpush1.bf16.msra.mxu0 %v2975
  %3578 = vmatprep.mubr.bf16.mxu0 %v346
  %3579 = vmatmul.mubr.bf16.gmra.mrb[0].mxu0 %v345
  %v3580 = vpop.f32.mrb[0].mxu0
  %v3581 = vadd.f32 %v3538, %v3580
  %v3582 = vpop.f32.mrb[0].mxu0
  %v3583 = vadd.f32 %v3540, %v3582
  %v3584 = vpop.f32.mrb[0].mxu0
  %v3585 = vadd.f32 %v3542, %v3584
  %v3586 = vpop.f32.mrb[0].mxu0
  %v3587 = vadd.f32 %v3544, %v3586
  %3588 = vdwg.mxu0
  %3589 = vmatprep.subr.bf16.mxu0 %v2482
  %3590 = vmatpush1.bf16.msra.mxu0 %v2481
  %3591 = vmatprep.subr.bf16.mxu0 %v2498
  %3592 = vmatpush1.bf16.msra.mxu0 %v2497
  %3593 = vmatprep.subr.bf16.mxu0 %v2514
  %3594 = vmatpush1.bf16.msra.mxu0 %v2513
  %3595 = vmatprep.subr.bf16.mxu0 %v2530
  %3596 = vmatpush1.bf16.msra.mxu0 %v2529
  %3597 = vmatprep.subr.bf16.mxu0 %v2546
  %3598 = vmatpush1.bf16.msra.mxu0 %v2545
  %3599 = vmatprep.subr.bf16.mxu0 %v2562
  %3600 = vmatpush1.bf16.msra.mxu0 %v2561
  %3601 = vmatprep.subr.bf16.mxu0 %v2578
  %3602 = vmatpush1.bf16.msra.mxu0 %v2577
  %3603 = vmatprep.subr.bf16.mxu0 %v2594
  %3604 = vmatpush1.bf16.msra.mxu0 %v2593
  %3605 = vmatprep.subr.bf16.mxu0 %v2610
  %3606 = vmatpush1.bf16.msra.mxu0 %v2609
  %3607 = vmatprep.subr.bf16.mxu0 %v2626
  %3608 = vmatpush1.bf16.msra.mxu0 %v2625
  %3609 = vmatprep.subr.bf16.mxu0 %v2642
  %3610 = vmatpush1.bf16.msra.mxu0 %v2641
  %3611 = vmatprep.subr.bf16.mxu0 %v2658
  %3612 = vmatpush1.bf16.msra.mxu0 %v2657
  %3613 = vmatprep.subr.bf16.mxu0 %v2674
  %3614 = vmatpush1.bf16.msra.mxu0 %v2673
  %3615 = vmatprep.subr.bf16.mxu0 %v2690
  %3616 = vmatpush1.bf16.msra.mxu0 %v2689
  %3617 = vmatprep.subr.bf16.mxu0 %v2706
  %3618 = vmatpush1.bf16.msra.mxu0 %v2705
  %3619 = vmatprep.subr.bf16.mxu0 %v2722
  %3620 = vmatpush1.bf16.msra.mxu0 %v2721
  %3621 = vmatprep.mubr.bf16.mxu0 %v344
  %3622 = vmatmul.mubr.bf16.gmra.mrb[0].mxu0 %v343
  %v3623 = vpop.f32.mrb[0].mxu0
  %v3624 = vadd.f32 %v874, %v3623
  %v3625 = vpop.f32.mrb[0].mxu0
  %v3626 = vadd.f32 %v878, %v3625
  %v3627 = vpop.f32.mrb[0].mxu0
  %v3628 = vadd.f32 %v874, %v3627
  %v3629 = vpop.f32.mrb[0].mxu0
  %v3630 = vadd.f32 %v878, %v3629
  %3631 = vdwg.mxu0
  %3632 = vmatprep.subr.bf16.mxu0 %v2738
  %3633 = vmatpush1.bf16.msra.mxu0 %v2737
  %3634 = vmatprep.subr.bf16.mxu0 %v2754
  %3635 = vmatpush1.bf16.msra.mxu0 %v2753
  %3636 = vmatprep.subr.bf16.mxu0 %v2770
  %3637 = vmatpush1.bf16.msra.mxu0 %v2769
  %3638 = vmatprep.subr.bf16.mxu0 %v2786
  %3639 = vmatpush1.bf16.msra.mxu0 %v2785
  %3640 = vmatprep.subr.bf16.mxu0 %v2802
  %3641 = vmatpush1.bf16.msra.mxu0 %v2801
  %3642 = vmatprep.subr.bf16.mxu0 %v2818
  %3643 = vmatpush1.bf16.msra.mxu0 %v2817
  %3644 = vmatprep.subr.bf16.mxu0 %v2834
  %3645 = vmatpush1.bf16.msra.mxu0 %v2833
  %3646 = vmatprep.subr.bf16.mxu0 %v2850
  %3647 = vmatpush1.bf16.msra.mxu0 %v2849
  %3648 = vmatprep.subr.bf16.mxu0 %v2866
  %3649 = vmatpush1.bf16.msra.mxu0 %v2865
  %3650 = vmatprep.subr.bf16.mxu0 %v2882
  %3651 = vmatpush1.bf16.msra.mxu0 %v2881
  %3652 = vmatprep.subr.bf16.mxu0 %v2898
  %3653 = vmatpush1.bf16.msra.mxu0 %v2897
  %3654 = vmatprep.subr.bf16.mxu0 %v2914
  %3655 = vmatpush1.bf16.msra.mxu0 %v2913
  %3656 = vmatprep.subr.bf16.mxu0 %v2930
  %3657 = vmatpush1.bf16.msra.mxu0 %v2929
  %3658 = vmatprep.subr.bf16.mxu0 %v2946
  %3659 = vmatpush1.bf16.msra.mxu0 %v2945
  %3660 = vmatprep.subr.bf16.mxu0 %v2962
  %3661 = vmatpush1.bf16.msra.mxu0 %v2961
  %3662 = vmatprep.subr.bf16.mxu0 %v2978
  %3663 = vmatpush1.bf16.msra.mxu0 %v2977
  %3664 = vmatprep.mubr.bf16.mxu0 %v346
  %3665 = vmatmul.mubr.bf16.gmra.mrb[0].mxu0 %v345
  %v3666 = vpop.f32.mrb[0].mxu0
  %v3667 = vadd.f32 %v3624, %v3666
  %v3668 = vpop.f32.mrb[0].mxu0
  %v3669 = vadd.f32 %v3626, %v3668
  %v3670 = vpop.f32.mrb[0].mxu0
  %v3671 = vadd.f32 %v3628, %v3670
  %v3672 = vpop.f32.mrb[0].mxu0
  %v3673 = vadd.f32 %v3630, %v3672
  %3674 = vdwg.mxu0
  %3675 = vmatprep.subr.bf16.mxu0 %v2484
  %3676 = vmatpush1.bf16.msra.mxu0 %v2483
  %3677 = vmatprep.subr.bf16.mxu0 %v2500
  %3678 = vmatpush1.bf16.msra.mxu0 %v2499
  %3679 = vmatprep.subr.bf16.mxu0 %v2516
  %3680 = vmatpush1.bf16.msra.mxu0 %v2515
  %3681 = vmatprep.subr.bf16.mxu0 %v2532
  %3682 = vmatpush1.bf16.msra.mxu0 %v2531
  %3683 = vmatprep.subr.bf16.mxu0 %v2548
  %3684 = vmatpush1.bf16.msra.mxu0 %v2547
  %3685 = vmatprep.subr.bf16.mxu0 %v2564
  %3686 = vmatpush1.bf16.msra.mxu0 %v2563
  %3687 = vmatprep.subr.bf16.mxu0 %v2580
  %3688 = vmatpush1.bf16.msra.mxu0 %v2579
  %3689 = vmatprep.subr.bf16.mxu0 %v2596
  %3690 = vmatpush1.bf16.msra.mxu0 %v2595
  %3691 = vmatprep.subr.bf16.mxu0 %v2612
  %3692 = vmatpush1.bf16.msra.mxu0 %v2611
  %3693 = vmatprep.subr.bf16.mxu0 %v2628
  %3694 = vmatpush1.bf16.msra.mxu0 %v2627
  %3695 = vmatprep.subr.bf16.mxu0 %v2644
  %3696 = vmatpush1.bf16.msra.mxu0 %v2643
  %3697 = vmatprep.subr.bf16.mxu0 %v2660
  %3698 = vmatpush1.bf16.msra.mxu0 %v2659
  %3699 = vmatprep.subr.bf16.mxu0 %v2676
  %3700 = vmatpush1.bf16.msra.mxu0 %v2675
  %3701 = vmatprep.subr.bf16.mxu0 %v2692
  %3702 = vmatpush1.bf16.msra.mxu0 %v2691
  %3703 = vmatprep.subr.bf16.mxu0 %v2708
  %3704 = vmatpush1.bf16.msra.mxu0 %v2707
  %3705 = vmatprep.subr.bf16.mxu0 %v2724
  %3706 = vmatpush1.bf16.msra.mxu0 %v2723
  %3707 = vmatprep.mubr.bf16.mxu0 %v344
  %3708 = vmatmul.mubr.bf16.gmra.mrb[0].mxu0 %v343
  %v3709 = vpop.f32.mrb[0].mxu0
  %v3710 = vadd.f32 %v882, %v3709
  %v3711 = vpop.f32.mrb[0].mxu0
  %v3712 = vadd.f32 %v886, %v3711
  %v3713 = vpop.f32.mrb[0].mxu0
  %v3714 = vadd.f32 %v882, %v3713
  %v3715 = vpop.f32.mrb[0].mxu0
  %v3716 = vadd.f32 %v886, %v3715
  %3717 = vdwg.mxu0
  %3718 = vmatprep.subr.bf16.mxu0 %v2740
  %3719 = vmatpush1.bf16.msra.mxu0 %v2739
  %3720 = vmatprep.subr.bf16.mxu0 %v2756
  %3721 = vmatpush1.bf16.msra.mxu0 %v2755
  %3722 = vmatprep.subr.bf16.mxu0 %v2772
  %3723 = vmatpush1.bf16.msra.mxu0 %v2771
  %3724 = vmatprep.subr.bf16.mxu0 %v2788
  %3725 = vmatpush1.bf16.msra.mxu0 %v2787
  %3726 = vmatprep.subr.bf16.mxu0 %v2804
  %3727 = vmatpush1.bf16.msra.mxu0 %v2803
  %3728 = vmatprep.subr.bf16.mxu0 %v2820
  %3729 = vmatpush1.bf16.msra.mxu0 %v2819
  %3730 = vmatprep.subr.bf16.mxu0 %v2836
  %3731 = vmatpush1.bf16.msra.mxu0 %v2835
  %3732 = vmatprep.subr.bf16.mxu0 %v2852
  %3733 = vmatpush1.bf16.msra.mxu0 %v2851
  %3734 = vmatprep.subr.bf16.mxu0 %v2868
  %3735 = vmatpush1.bf16.msra.mxu0 %v2867
  %3736 = vmatprep.subr.bf16.mxu0 %v2884
  %3737 = vmatpush1.bf16.msra.mxu0 %v2883
  %3738 = vmatprep.subr.bf16.mxu0 %v2900
  %3739 = vmatpush1.bf16.msra.mxu0 %v2899
  %3740 = vmatprep.subr.bf16.mxu0 %v2916
  %3741 = vmatpush1.bf16.msra.mxu0 %v2915
  %3742 = vmatprep.subr.bf16.mxu0 %v2932
  %3743 = vmatpush1.bf16.msra.mxu0 %v2931
  %3744 = vmatprep.subr.bf16.mxu0 %v2948
  %3745 = vmatpush1.bf16.msra.mxu0 %v2947
  %3746 = vmatprep.subr.bf16.mxu0 %v2964
  %3747 = vmatpush1.bf16.msra.mxu0 %v2963
  %3748 = vmatprep.subr.bf16.mxu0 %v2980
  %3749 = vmatpush1.bf16.msra.mxu0 %v2979
  %3750 = vmatprep.mubr.bf16.mxu0 %v346
  %3751 = vmatmul.mubr.bf16.gmra.mrb[0].mxu0 %v345
  %v3752 = vpop.f32.mrb[0].mxu0
  %v3753 = vadd.f32 %v3710, %v3752
  %v3754 = vpop.f32.mrb[0].mxu0
  %v3755 = vadd.f32 %v3712, %v3754
  %v3756 = vpop.f32.mrb[0].mxu0
  %v3757 = vadd.f32 %v3714, %v3756
  %v3758 = vpop.f32.mrb[0].mxu0
  %v3759 = vadd.f32 %v3716, %v3758
  %3760 = vdwg.mxu0
  %3761 = vmatprep.subr.bf16.mxu0 %v2486
  %3762 = vmatpush1.bf16.msra.mxu0 %v2485
  %3763 = vmatprep.subr.bf16.mxu0 %v2502
  %3764 = vmatpush1.bf16.msra.mxu0 %v2501
  %3765 = vmatprep.subr.bf16.mxu0 %v2518
  %3766 = vmatpush1.bf16.msra.mxu0 %v2517
  %3767 = vmatprep.subr.bf16.mxu0 %v2534
  %3768 = vmatpush1.bf16.msra.mxu0 %v2533
  %3769 = vmatprep.subr.bf16.mxu0 %v2550
  %3770 = vmatpush1.bf16.msra.mxu0 %v2549
  %3771 = vmatprep.subr.bf16.mxu0 %v2566
  %3772 = vmatpush1.bf16.msra.mxu0 %v2565
  %3773 = vmatprep.subr.bf16.mxu0 %v2582
  %3774 = vmatpush1.bf16.msra.mxu0 %v2581
  %3775 = vmatprep.subr.bf16.mxu0 %v2598
  %3776 = vmatpush1.bf16.msra.mxu0 %v2597
  %3777 = vmatprep.subr.bf16.mxu0 %v2614
  %3778 = vmatpush1.bf16.msra.mxu0 %v2613
  %3779 = vmatprep.subr.bf16.mxu0 %v2630
  %3780 = vmatpush1.bf16.msra.mxu0 %v2629
  %3781 = vmatprep.subr.bf16.mxu0 %v2646
  %3782 = vmatpush1.bf16.msra.mxu0 %v2645
  %3783 = vmatprep.subr.bf16.mxu0 %v2662
  %3784 = vmatpush1.bf16.msra.mxu0 %v2661
  %3785 = vmatprep.subr.bf16.mxu0 %v2678
  %3786 = vmatpush1.bf16.msra.mxu0 %v2677
  %3787 = vmatprep.subr.bf16.mxu0 %v2694
  %3788 = vmatpush1.bf16.msra.mxu0 %v2693
  %3789 = vmatprep.subr.bf16.mxu0 %v2710
  %3790 = vmatpush1.bf16.msra.mxu0 %v2709
  %3791 = vmatprep.subr.bf16.mxu0 %v2726
  %3792 = vmatpush1.bf16.msra.mxu0 %v2725
  %3793 = vmatprep.mubr.bf16.mxu0 %v344
  %3794 = vmatmul.mubr.bf16.gmra.mrb[0].mxu0 %v343
  %v3795 = vpop.f32.mrb[0].mxu0
  %v3796 = vadd.f32 %v890, %v3795
  %v3797 = vpop.f32.mrb[0].mxu0
  %v3798 = vadd.f32 %v894, %v3797
  %v3799 = vpop.f32.mrb[0].mxu0
  %v3800 = vadd.f32 %v890, %v3799
  %v3801 = vpop.f32.mrb[0].mxu0
  %v3802 = vadd.f32 %v894, %v3801
  %3803 = vdwg.mxu0
  %3804 = vmatprep.subr.bf16.mxu0 %v2742
  %3805 = vmatpush1.bf16.msra.mxu0 %v2741
  %3806 = vmatprep.subr.bf16.mxu0 %v2758
  %3807 = vmatpush1.bf16.msra.mxu0 %v2757
  %3808 = vmatprep.subr.bf16.mxu0 %v2774
  %3809 = vmatpush1.bf16.msra.mxu0 %v2773
  %3810 = vmatprep.subr.bf16.mxu0 %v2790
  %3811 = vmatpush1.bf16.msra.mxu0 %v2789
  %3812 = vmatprep.subr.bf16.mxu0 %v2806
  %3813 = vmatpush1.bf16.msra.mxu0 %v2805
  %3814 = vmatprep.subr.bf16.mxu0 %v2822
  %3815 = vmatpush1.bf16.msra.mxu0 %v2821
  %3816 = vmatprep.subr.bf16.mxu0 %v2838
  %3817 = vmatpush1.bf16.msra.mxu0 %v2837
  %3818 = vmatprep.subr.bf16.mxu0 %v2854
  %3819 = vmatpush1.bf16.msra.mxu0 %v2853
  %3820 = vmatprep.subr.bf16.mxu0 %v2870
  %3821 = vmatpush1.bf16.msra.mxu0 %v2869
  %3822 = vmatprep.subr.bf16.mxu0 %v2886
  %3823 = vmatpush1.bf16.msra.mxu0 %v2885
  %3824 = vmatprep.subr.bf16.mxu0 %v2902
  %3825 = vmatpush1.bf16.msra.mxu0 %v2901
  %3826 = vmatprep.subr.bf16.mxu0 %v2918
  %3827 = vmatpush1.bf16.msra.mxu0 %v2917
  %3828 = vmatprep.subr.bf16.mxu0 %v2934
  %3829 = vmatpush1.bf16.msra.mxu0 %v2933
  %3830 = vmatprep.subr.bf16.mxu0 %v2950
  %3831 = vmatpush1.bf16.msra.mxu0 %v2949
  %3832 = vmatprep.subr.bf16.mxu0 %v2966
  %3833 = vmatpush1.bf16.msra.mxu0 %v2965
  %3834 = vmatprep.subr.bf16.mxu0 %v2982
  %3835 = vmatpush1.bf16.msra.mxu0 %v2981
  %3836 = vmatprep.mubr.bf16.mxu0 %v346
  %3837 = vmatmul.mubr.bf16.gmra.mrb[0].mxu0 %v345
  %v3838 = vpop.f32.mrb[0].mxu0
  %v3839 = vadd.f32 %v3796, %v3838
  %v3840 = vpop.f32.mrb[0].mxu0
  %v3841 = vadd.f32 %v3798, %v3840
  %v3842 = vpop.f32.mrb[0].mxu0
  %v3843 = vadd.f32 %v3800, %v3842
  %v3844 = vpop.f32.mrb[0].mxu0
  %v3845 = vadd.f32 %v3802, %v3844
  %3846 = vdwg.mxu0
  %3847 = vmatprep.subr.bf16.mxu0 %v2488
  %3848 = vmatpush1.bf16.msra.mxu0 %v2487
  %3849 = vmatprep.subr.bf16.mxu0 %v2504
  %3850 = vmatpush1.bf16.msra.mxu0 %v2503
  %3851 = vmatprep.subr.bf16.mxu0 %v2520
  %3852 = vmatpush1.bf16.msra.mxu0 %v2519
  %3853 = vmatprep.subr.bf16.mxu0 %v2536
  %3854 = vmatpush1.bf16.msra.mxu0 %v2535
  %3855 = vmatprep.subr.bf16.mxu0 %v2552
  %3856 = vmatpush1.bf16.msra.mxu0 %v2551
  %3857 = vmatprep.subr.bf16.mxu0 %v2568
  %3858 = vmatpush1.bf16.msra.mxu0 %v2567
  %3859 = vmatprep.subr.bf16.mxu0 %v2584
  %3860 = vmatpush1.bf16.msra.mxu0 %v2583
  %3861 = vmatprep.subr.bf16.mxu0 %v2600
  %3862 = vmatpush1.bf16.msra.mxu0 %v2599
  %3863 = vmatprep.subr.bf16.mxu0 %v2616
  %3864 = vmatpush1.bf16.msra.mxu0 %v2615
  %3865 = vmatprep.subr.bf16.mxu0 %v2632
  %3866 = vmatpush1.bf16.msra.mxu0 %v2631
  %3867 = vmatprep.subr.bf16.mxu0 %v2648
  %3868 = vmatpush1.bf16.msra.mxu0 %v2647
  %3869 = vmatprep.subr.bf16.mxu0 %v2664
  %3870 = vmatpush1.bf16.msra.mxu0 %v2663
  %3871 = vmatprep.subr.bf16.mxu0 %v2680
  %3872 = vmatpush1.bf16.msra.mxu0 %v2679
  %3873 = vmatprep.subr.bf16.mxu0 %v2696
  %3874 = vmatpush1.bf16.msra.mxu0 %v2695
  %3875 = vmatprep.subr.bf16.mxu0 %v2712
  %3876 = vmatpush1.bf16.msra.mxu0 %v2711
  %3877 = vmatprep.subr.bf16.mxu0 %v2728
  %3878 = vmatpush1.bf16.msra.mxu0 %v2727
  %3879 = vmatprep.mubr.bf16.mxu0 %v344
  %3880 = vmatmul.mubr.bf16.gmra.mrb[0].mxu0 %v343
  %v3881 = vpop.f32.mrb[0].mxu0
  %v3882 = vadd.f32 %v898, %v3881
  %v3883 = vpop.f32.mrb[0].mxu0
  %v3884 = vadd.f32 %v902, %v3883
  %v3885 = vpop.f32.mrb[0].mxu0
  %v3886 = vadd.f32 %v898, %v3885
  %v3887 = vpop.f32.mrb[0].mxu0
  %v3888 = vadd.f32 %v902, %v3887
  %3889 = vdwg.mxu0
  %3890 = vmatprep.subr.bf16.mxu0 %v2744
  %3891 = vmatpush1.bf16.msra.mxu0 %v2743
  %3892 = vmatprep.subr.bf16.mxu0 %v2760
  %3893 = vmatpush1.bf16.msra.mxu0 %v2759
  %3894 = vmatprep.subr.bf16.mxu0 %v2776
  %3895 = vmatpush1.bf16.msra.mxu0 %v2775
  %3896 = vmatprep.subr.bf16.mxu0 %v2792
  %3897 = vmatpush1.bf16.msra.mxu0 %v2791
  %3898 = vmatprep.subr.bf16.mxu0 %v2808
  %3899 = vmatpush1.bf16.msra.mxu0 %v2807
  %3900 = vmatprep.subr.bf16.mxu0 %v2824
  %3901 = vmatpush1.bf16.msra.mxu0 %v2823
  %3902 = vmatprep.subr.bf16.mxu0 %v2840
  %3903 = vmatpush1.bf16.msra.mxu0 %v2839
  %3904 = vmatprep.subr.bf16.mxu0 %v2856
  %3905 = vmatpush1.bf16.msra.mxu0 %v2855
  %3906 = vmatprep.subr.bf16.mxu0 %v2872
  %3907 = vmatpush1.bf16.msra.mxu0 %v2871
  %3908 = vmatprep.subr.bf16.mxu0 %v2888
  %3909 = vmatpush1.bf16.msra.mxu0 %v2887
  %3910 = vmatprep.subr.bf16.mxu0 %v2904
  %3911 = vmatpush1.bf16.msra.mxu0 %v2903
  %3912 = vmatprep.subr.bf16.mxu0 %v2920
  %3913 = vmatpush1.bf16.msra.mxu0 %v2919
  %3914 = vmatprep.subr.bf16.mxu0 %v2936
  %3915 = vmatpush1.bf16.msra.mxu0 %v2935
  %3916 = vmatprep.subr.bf16.mxu0 %v2952
  %3917 = vmatpush1.bf16.msra.mxu0 %v2951
  %3918 = vmatprep.subr.bf16.mxu0 %v2968
  %3919 = vmatpush1.bf16.msra.mxu0 %v2967
  %3920 = vmatprep.subr.bf16.mxu0 %v2984
  %3921 = vmatpush1.bf16.msra.mxu0 %v2983
  %3922 = vmatprep.mubr.bf16.mxu0 %v346
  %3923 = vmatmul.mubr.bf16.gmra.mrb[0].mxu0 %v345
  %v3924 = vpop.f32.mrb[0].mxu0
  %v3925 = vadd.f32 %v3882, %v3924
  %v3926 = vpop.f32.mrb[0].mxu0
  %v3927 = vadd.f32 %v3884, %v3926
  %v3928 = vpop.f32.mrb[0].mxu0
  %v3929 = vadd.f32 %v3886, %v3928
  %v3930 = vpop.f32.mrb[0].mxu0
  %v3931 = vadd.f32 %v3888, %v3930
  %3932 = vdwg.mxu0
  %3933 = vmatprep.subr.bf16.mxu0 %v2490
  %3934 = vmatpush1.bf16.msra.mxu0 %v2489
  %3935 = vmatprep.subr.bf16.mxu0 %v2506
  %3936 = vmatpush1.bf16.msra.mxu0 %v2505
  %3937 = vmatprep.subr.bf16.mxu0 %v2522
  %3938 = vmatpush1.bf16.msra.mxu0 %v2521
  %3939 = vmatprep.subr.bf16.mxu0 %v2538
  %3940 = vmatpush1.bf16.msra.mxu0 %v2537
  %3941 = vmatprep.subr.bf16.mxu0 %v2554
  %3942 = vmatpush1.bf16.msra.mxu0 %v2553
  %3943 = vmatprep.subr.bf16.mxu0 %v2570
  %3944 = vmatpush1.bf16.msra.mxu0 %v2569
  %3945 = vmatprep.subr.bf16.mxu0 %v2586
  %3946 = vmatpush1.bf16.msra.mxu0 %v2585
  %3947 = vmatprep.subr.bf16.mxu0 %v2602
  %3948 = vmatpush1.bf16.msra.mxu0 %v2601
  %3949 = vmatprep.subr.bf16.mxu0 %v2618
  %3950 = vmatpush1.bf16.msra.mxu0 %v2617
  %3951 = vmatprep.subr.bf16.mxu0 %v2634
  %3952 = vmatpush1.bf16.msra.mxu0 %v2633
  %3953 = vmatprep.subr.bf16.mxu0 %v2650
  %3954 = vmatpush1.bf16.msra.mxu0 %v2649
  %3955 = vmatprep.subr.bf16.mxu0 %v2666
  %3956 = vmatpush1.bf16.msra.mxu0 %v2665
  %3957 = vmatprep.subr.bf16.mxu0 %v2682
  %3958 = vmatpush1.bf16.msra.mxu0 %v2681
  %3959 = vmatprep.subr.bf16.mxu0 %v2698
  %3960 = vmatpush1.bf16.msra.mxu0 %v2697
  %3961 = vmatprep.subr.bf16.mxu0 %v2714
  %3962 = vmatpush1.bf16.msra.mxu0 %v2713
  %3963 = vmatprep.subr.bf16.mxu0 %v2730
  %3964 = vmatpush1.bf16.msra.mxu0 %v2729
  %3965 = vmatprep.mubr.bf16.mxu0 %v344
  %3966 = vmatmul.mubr.bf16.gmra.mrb[0].mxu0 %v343
  %v3967 = vpop.f32.mrb[0].mxu0
  %v3968 = vadd.f32 %v906, %v3967
  %v3969 = vpop.f32.mrb[0].mxu0
  %v3970 = vadd.f32 %v910, %v3969
  %v3971 = vpop.f32.mrb[0].mxu0
  %v3972 = vadd.f32 %v906, %v3971
  %v3973 = vpop.f32.mrb[0].mxu0
  %v3974 = vadd.f32 %v910, %v3973
  %3975 = vdwg.mxu0
  %3976 = vmatprep.subr.bf16.mxu0 %v2746
  %3977 = vmatpush1.bf16.msra.mxu0 %v2745
  %3978 = vmatprep.subr.bf16.mxu0 %v2762
  %3979 = vmatpush1.bf16.msra.mxu0 %v2761
  %3980 = vmatprep.subr.bf16.mxu0 %v2778
  %3981 = vmatpush1.bf16.msra.mxu0 %v2777
  %3982 = vmatprep.subr.bf16.mxu0 %v2794
  %3983 = vmatpush1.bf16.msra.mxu0 %v2793
  %3984 = vmatprep.subr.bf16.mxu0 %v2810
  %3985 = vmatpush1.bf16.msra.mxu0 %v2809
  %3986 = vmatprep.subr.bf16.mxu0 %v2826
  %3987 = vmatpush1.bf16.msra.mxu0 %v2825
  %3988 = vmatprep.subr.bf16.mxu0 %v2842
  %3989 = vmatpush1.bf16.msra.mxu0 %v2841
  %3990 = vmatprep.subr.bf16.mxu0 %v2858
  %3991 = vmatpush1.bf16.msra.mxu0 %v2857
  %3992 = vmatprep.subr.bf16.mxu0 %v2874
  %3993 = vmatpush1.bf16.msra.mxu0 %v2873
  %3994 = vmatprep.subr.bf16.mxu0 %v2890
  %3995 = vmatpush1.bf16.msra.mxu0 %v2889
  %3996 = vmatprep.subr.bf16.mxu0 %v2906
  %3997 = vmatpush1.bf16.msra.mxu0 %v2905
  %3998 = vmatprep.subr.bf16.mxu0 %v2922
  %3999 = vmatpush1.bf16.msra.mxu0 %v2921
  %4000 = vmatprep.subr.bf16.mxu0 %v2938
  %4001 = vmatpush1.bf16.msra.mxu0 %v2937
  %4002 = vmatprep.subr.bf16.mxu0 %v2954
  %4003 = vmatpush1.bf16.msra.mxu0 %v2953
  %4004 = vmatprep.subr.bf16.mxu0 %v2970
  %4005 = vmatpush1.bf16.msra.mxu0 %v2969
  %4006 = vmatprep.subr.bf16.mxu0 %v2986
  %4007 = vmatpush1.bf16.msra.mxu0 %v2985
  %4008 = vmatprep.mubr.bf16.mxu0 %v346
  %4009 = vmatmul.mubr.bf16.gmra.mrb[0].mxu0 %v345
  %v4010 = vpop.f32.mrb[0].mxu0
  %v4011 = vadd.f32 %v3968, %v4010
  %v4012 = vpop.f32.mrb[0].mxu0
  %v4013 = vadd.f32 %v3970, %v4012
  %v4014 = vpop.f32.mrb[0].mxu0
  %v4015 = vadd.f32 %v3972, %v4014
  %v4016 = vpop.f32.mrb[0].mxu0
  %v4017 = vadd.f32 %v3974, %v4016
  %4018 = vdwg.mxu0
  %4019 = vmatprep.subr.bf16.mxu0 %v2492
  %4020 = vmatpush1.bf16.msra.mxu0 %v2491
  %4021 = vmatprep.subr.bf16.mxu0 %v2508
  %4022 = vmatpush1.bf16.msra.mxu0 %v2507
  %4023 = vmatprep.subr.bf16.mxu0 %v2524
  %4024 = vmatpush1.bf16.msra.mxu0 %v2523
  %4025 = vmatprep.subr.bf16.mxu0 %v2540
  %4026 = vmatpush1.bf16.msra.mxu0 %v2539
  %4027 = vmatprep.subr.bf16.mxu0 %v2556
  %4028 = vmatpush1.bf16.msra.mxu0 %v2555
  %4029 = vmatprep.subr.bf16.mxu0 %v2572
  %4030 = vmatpush1.bf16.msra.mxu0 %v2571
  %4031 = vmatprep.subr.bf16.mxu0 %v2588
  %4032 = vmatpush1.bf16.msra.mxu0 %v2587
  %4033 = vmatprep.subr.bf16.mxu0 %v2604
  %4034 = vmatpush1.bf16.msra.mxu0 %v2603
  %4035 = vmatprep.subr.bf16.mxu0 %v2620
  %4036 = vmatpush1.bf16.msra.mxu0 %v2619
  %4037 = vmatprep.subr.bf16.mxu0 %v2636
  %4038 = vmatpush1.bf16.msra.mxu0 %v2635
  %4039 = vmatprep.subr.bf16.mxu0 %v2652
  %4040 = vmatpush1.bf16.msra.mxu0 %v2651
  %4041 = vmatprep.subr.bf16.mxu0 %v2668
  %4042 = vmatpush1.bf16.msra.mxu0 %v2667
  %4043 = vmatprep.subr.bf16.mxu0 %v2684
  %4044 = vmatpush1.bf16.msra.mxu0 %v2683
  %4045 = vmatprep.subr.bf16.mxu0 %v2700
  %4046 = vmatpush1.bf16.msra.mxu0 %v2699
  %4047 = vmatprep.subr.bf16.mxu0 %v2716
  %4048 = vmatpush1.bf16.msra.mxu0 %v2715
  %4049 = vmatprep.subr.bf16.mxu0 %v2732
  %4050 = vmatpush1.bf16.msra.mxu0 %v2731
  %4051 = vmatprep.mubr.bf16.mxu0 %v344
  %4052 = vmatmul.mubr.bf16.gmra.mrb[0].mxu0 %v343
  %v4053 = vpop.f32.mrb[0].mxu0
  %v4054 = vadd.f32 %v914, %v4053
  %v4055 = vpop.f32.mrb[0].mxu0
  %v4056 = vadd.f32 %v918, %v4055
  %v4057 = vpop.f32.mrb[0].mxu0
  %v4058 = vadd.f32 %v914, %v4057
  %v4059 = vpop.f32.mrb[0].mxu0
  %v4060 = vadd.f32 %v918, %v4059
  %4061 = vdwg.mxu0
  %4062 = vmatprep.subr.bf16.mxu0 %v2748
  %4063 = vmatpush1.bf16.msra.mxu0 %v2747
  %4064 = vmatprep.subr.bf16.mxu0 %v2764
  %4065 = vmatpush1.bf16.msra.mxu0 %v2763
  %4066 = vmatprep.subr.bf16.mxu0 %v2780
  %4067 = vmatpush1.bf16.msra.mxu0 %v2779
  %4068 = vmatprep.subr.bf16.mxu0 %v2796
  %4069 = vmatpush1.bf16.msra.mxu0 %v2795
  %4070 = vmatprep.subr.bf16.mxu0 %v2812
  %4071 = vmatpush1.bf16.msra.mxu0 %v2811
  %4072 = vmatprep.subr.bf16.mxu0 %v2828
  %4073 = vmatpush1.bf16.msra.mxu0 %v2827
  %4074 = vmatprep.subr.bf16.mxu0 %v2844
  %4075 = vmatpush1.bf16.msra.mxu0 %v2843
  %4076 = vmatprep.subr.bf16.mxu0 %v2860
  %4077 = vmatpush1.bf16.msra.mxu0 %v2859
  %4078 = vmatprep.subr.bf16.mxu0 %v2876
  %4079 = vmatpush1.bf16.msra.mxu0 %v2875
  %4080 = vmatprep.subr.bf16.mxu0 %v2892
  %4081 = vmatpush1.bf16.msra.mxu0 %v2891
  %4082 = vmatprep.subr.bf16.mxu0 %v2908
  %4083 = vmatpush1.bf16.msra.mxu0 %v2907
  %4084 = vmatprep.subr.bf16.mxu0 %v2924
  %4085 = vmatpush1.bf16.msra.mxu0 %v2923
  %4086 = vmatprep.subr.bf16.mxu0 %v2940
  %4087 = vmatpush1.bf16.msra.mxu0 %v2939
  %4088 = vmatprep.subr.bf16.mxu0 %v2956
  %4089 = vmatpush1.bf16.msra.mxu0 %v2955
  %4090 = vmatprep.subr.bf16.mxu0 %v2972
  %4091 = vmatpush1.bf16.msra.mxu0 %v2971
  %4092 = vmatprep.subr.bf16.mxu0 %v2988
  %4093 = vmatpush1.bf16.msra.mxu0 %v2987
  %4094 = vmatprep.mubr.bf16.mxu0 %v346
  %4095 = vmatmul.mubr.bf16.gmra.mrb[0].mxu0 %v345
  %v4096 = vpop.f32.mrb[0].mxu0
  %v4097 = vadd.f32 %v4054, %v4096
  %v4098 = vpop.f32.mrb[0].mxu0
  %v4099 = vadd.f32 %v4056, %v4098
  %v4100 = vpop.f32.mrb[0].mxu0
  %v4101 = vadd.f32 %v4058, %v4100
  %v4102 = vpop.f32.mrb[0].mxu0
  %v4103 = vadd.f32 %v4060, %v4102
  %4104 = vdwg.mxu0
  %4105 = vmatprep.subr.bf16.mxu0 %v2494
  %4106 = vmatpush1.bf16.msra.mxu0 %v2493
  %4107 = vmatprep.subr.bf16.mxu0 %v2510
  %4108 = vmatpush1.bf16.msra.mxu0 %v2509
  %4109 = vmatprep.subr.bf16.mxu0 %v2526
  %4110 = vmatpush1.bf16.msra.mxu0 %v2525
  %4111 = vmatprep.subr.bf16.mxu0 %v2542
  %4112 = vmatpush1.bf16.msra.mxu0 %v2541
  %4113 = vmatprep.subr.bf16.mxu0 %v2558
  %4114 = vmatpush1.bf16.msra.mxu0 %v2557
  %4115 = vmatprep.subr.bf16.mxu0 %v2574
  %4116 = vmatpush1.bf16.msra.mxu0 %v2573
  %4117 = vmatprep.subr.bf16.mxu0 %v2590
  %4118 = vmatpush1.bf16.msra.mxu0 %v2589
  %4119 = vmatprep.subr.bf16.mxu0 %v2606
  %4120 = vmatpush1.bf16.msra.mxu0 %v2605
  %4121 = vmatprep.subr.bf16.mxu0 %v2622
  %4122 = vmatpush1.bf16.msra.mxu0 %v2621
  %4123 = vmatprep.subr.bf16.mxu0 %v2638
  %4124 = vmatpush1.bf16.msra.mxu0 %v2637
  %4125 = vmatprep.subr.bf16.mxu0 %v2654
  %4126 = vmatpush1.bf16.msra.mxu0 %v2653
  %4127 = vmatprep.subr.bf16.mxu0 %v2670
  %4128 = vmatpush1.bf16.msra.mxu0 %v2669
  %4129 = vmatprep.subr.bf16.mxu0 %v2686
  %4130 = vmatpush1.bf16.msra.mxu0 %v2685
  %4131 = vmatprep.subr.bf16.mxu0 %v2702
  %4132 = vmatpush1.bf16.msra.mxu0 %v2701
  %4133 = vmatprep.subr.bf16.mxu0 %v2718
  %4134 = vmatpush1.bf16.msra.mxu0 %v2717
  %4135 = vmatprep.subr.bf16.mxu0 %v2734
  %4136 = vmatpush1.bf16.msra.mxu0 %v2733
  %4137 = vmatprep.mubr.bf16.mxu0 %v344
  %4138 = vmatmul.mubr.bf16.gmra.mrb[0].mxu0 %v343
  %v4139 = vpop.f32.mrb[0].mxu0
  %v4140 = vadd.f32 %v922, %v4139
  %v4141 = vpop.f32.mrb[0].mxu0
  %v4142 = vadd.f32 %v926, %v4141
  %v4143 = vpop.f32.mrb[0].mxu0
  %v4144 = vadd.f32 %v922, %v4143
  %v4145 = vpop.f32.mrb[0].mxu0
  %v4146 = vadd.f32 %v926, %v4145
  %4147 = vdwg.mxu0
  %4148 = vmatprep.subr.bf16.mxu0 %v2750
  %4149 = vmatpush1.bf16.msra.mxu0 %v2749
  %4150 = vmatprep.subr.bf16.mxu0 %v2766
  %4151 = vmatpush1.bf16.msra.mxu0 %v2765
  %4152 = vmatprep.subr.bf16.mxu0 %v2782
  %4153 = vmatpush1.bf16.msra.mxu0 %v2781
  %4154 = vmatprep.subr.bf16.mxu0 %v2798
  %4155 = vmatpush1.bf16.msra.mxu0 %v2797
  %4156 = vmatprep.subr.bf16.mxu0 %v2814
  %4157 = vmatpush1.bf16.msra.mxu0 %v2813
  %4158 = vmatprep.subr.bf16.mxu0 %v2830
  %4159 = vmatpush1.bf16.msra.mxu0 %v2829
  %4160 = vmatprep.subr.bf16.mxu0 %v2846
  %4161 = vmatpush1.bf16.msra.mxu0 %v2845
  %4162 = vmatprep.subr.bf16.mxu0 %v2862
  %4163 = vmatpush1.bf16.msra.mxu0 %v2861
  %4164 = vmatprep.subr.bf16.mxu0 %v2878
  %4165 = vmatpush1.bf16.msra.mxu0 %v2877
  %4166 = vmatprep.subr.bf16.mxu0 %v2894
  %4167 = vmatpush1.bf16.msra.mxu0 %v2893
  %4168 = vmatprep.subr.bf16.mxu0 %v2910
  %4169 = vmatpush1.bf16.msra.mxu0 %v2909
  %4170 = vmatprep.subr.bf16.mxu0 %v2926
  %4171 = vmatpush1.bf16.msra.mxu0 %v2925
  %4172 = vmatprep.subr.bf16.mxu0 %v2942
  %4173 = vmatpush1.bf16.msra.mxu0 %v2941
  %4174 = vmatprep.subr.bf16.mxu0 %v2958
  %4175 = vmatpush1.bf16.msra.mxu0 %v2957
  %4176 = vmatprep.subr.bf16.mxu0 %v2974
  %4177 = vmatpush1.bf16.msra.mxu0 %v2973
  %4178 = vmatprep.subr.bf16.mxu0 %v2990
  %4179 = vmatpush1.bf16.msra.mxu0 %v2989
  %4180 = vmatprep.mubr.bf16.mxu0 %v346
  %4181 = vmatmul.mubr.bf16.gmra.mrb[0].mxu0 %v345
  %v4182 = vpop.f32.mrb[0].mxu0
  %v4183 = vadd.f32 %v4140, %v4182
  %v4184 = vpop.f32.mrb[0].mxu0
  %v4185 = vadd.f32 %v4142, %v4184
  %v4186 = vpop.f32.mrb[0].mxu0
  %v4187 = vadd.f32 %v4144, %v4186
  %v4188 = vpop.f32.mrb[0].mxu0
  %v4189 = vadd.f32 %v4146, %v4188
  %4190 = vdwg.mxu0
  %v4191 = vmax.f32 %v3581, 0.0
  %v4192 = vmax.f32 %v3583, 0.0
  %v4193 = vmax.f32 %v3667, 0.0
  %v4194 = vmax.f32 %v3669, 0.0
  %v4195 = vmax.f32 %v3753, 0.0
  %v4196 = vmax.f32 %v3755, 0.0
  %v4197 = vmax.f32 %v3839, 0.0
  %v4198 = vmax.f32 %v3841, 0.0
  %v4199 = vmax.f32 %v3925, 0.0
  %v4200 = vmax.f32 %v3927, 0.0
  %v4201 = vmax.f32 %v4011, 0.0
  %v4202 = vmax.f32 %v4013, 0.0
  %v4203 = vmax.f32 %v4097, 0.0
  %v4204 = vmax.f32 %v4099, 0.0
  %v4205 = vmax.f32 %v4183, 0.0
  %v4206 = vmax.f32 %v4185, 0.0
  %v4207 = vmax.f32 %v3585, 0.0
  %v4208 = vmax.f32 %v3587, 0.0
  %v4209 = vmax.f32 %v3671, 0.0
  %v4210 = vmax.f32 %v3673, 0.0
  %v4211 = vmax.f32 %v3757, 0.0
  %v4212 = vmax.f32 %v3759, 0.0
  %v4213 = vmax.f32 %v3843, 0.0
  %v4214 = vmax.f32 %v3845, 0.0
  %v4215 = vmax.f32 %v3929, 0.0
  %v4216 = vmax.f32 %v3931, 0.0
  %v4217 = vmax.f32 %v4015, 0.0
  %v4218 = vmax.f32 %v4017, 0.0
  %v4219 = vmax.f32 %v4101, 0.0
  %v4220 = vmax.f32 %v4103, 0.0
  %v4221 = vmax.f32 %v4187, 0.0
  %v4222 = vmax.f32 %v4189, 0.0
  %v4223 = vpack.c.bf16 %v4207, %v4191
  %v4224 = vpack.c.bf16 %v4208, %v4192
  %v4225 = vpack.c.bf16 %v4209, %v4193
  %v4226 = vpack.c.bf16 %v4210, %v4194
  %v4227 = vpack.c.bf16 %v4211, %v4195
  %v4228 = vpack.c.bf16 %v4212, %v4196
  %v4229 = vpack.c.bf16 %v4213, %v4197
  %v4230 = vpack.c.bf16 %v4214, %v4198
  %v4231 = vpack.c.bf16 %v4215, %v4199
  %v4232 = vpack.c.bf16 %v4216, %v4200
  %v4233 = vpack.c.bf16 %v4217, %v4201
  %v4234 = vpack.c.bf16 %v4218, %v4202
  %v4235 = vpack.c.bf16 %v4219, %v4203
  %v4236 = vpack.c.bf16 %v4220, %v4204
  %v4237 = vpack.c.bf16 %v4221, %v4205
  %v4238 = vpack.c.bf16 %v4222, %v4206
  %v4239 = vld [vmem:[%s5] sm:$0xf]
  %v4240 = vld [vmem:[%s5 + $0x4] sm:$0xf]
  %v4241 = vld [vmem:[%s5 + $0x8] sm:$0xf]
  %v4242 = vld [vmem:[%s5 + $0xc] sm:$0xf]
  %v4243 = vld [vmem:[%s5 + $0x10] sm:$0xf]
  %v4244 = vld [vmem:[%s5 + $0x14] sm:$0xf]
  %v4245 = vld [vmem:[%s5 + $0x18] sm:$0xf]
  %v4246 = vld [vmem:[%s5 + $0x1c] sm:$0xf]
  %v4247 = vld [vmem:[%s5 + $0x20] sm:$0xf]
  %v4248 = vld [vmem:[%s5 + $0x24] sm:$0xf]
  %v4249 = vld [vmem:[%s5 + $0x28] sm:$0xf]
  %v4250 = vld [vmem:[%s5 + $0x2c] sm:$0xf]
  %v4251 = vld [vmem:[%s5 + $0x30] sm:$0xf]
  %v4252 = vld [vmem:[%s5 + $0x34] sm:$0xf]
  %v4253 = vld [vmem:[%s5 + $0x38] sm:$0xf]
  %v4254 = vld [vmem:[%s5 + $0x3c] sm:$0xf]
  %v4255 = vld [vmem:[%s5 + $0x40] sm:$0xf]
  %v4256 = vld [vmem:[%s5 + $0x44] sm:$0xf]
  %v4257 = vld [vmem:[%s5 + $0x48] sm:$0xf]
  %v4258 = vld [vmem:[%s5 + $0x4c] sm:$0xf]
  %v4259 = vld [vmem:[%s5 + $0x50] sm:$0xf]
  %v4260 = vld [vmem:[%s5 + $0x54] sm:$0xf]
  %v4261 = vld [vmem:[%s5 + $0x58] sm:$0xf]
  %v4262 = vld [vmem:[%s5 + $0x5c] sm:$0xf]
  %v4263 = vld [vmem:[%s5 + $0x60] sm:$0xf]
  %v4264 = vld [vmem:[%s5 + $0x64] sm:$0xf]
  %v4265 = vld [vmem:[%s5 + $0x68] sm:$0xf]
  %v4266 = vld [vmem:[%s5 + $0x6c] sm:$0xf]
  %v4267 = vld [vmem:[%s5 + $0x70] sm:$0xf]
  %v4268 = vld [vmem:[%s5 + $0x74] sm:$0xf]
  %v4269 = vld [vmem:[%s5 + $0x78] sm:$0xf]
  %v4270 = vld [vmem:[%s5 + $0x7c] sm:$0xf]
  %v4271 = vld [vmem:[%s5 + $0x80] sm:$0xf]
  %v4272 = vld [vmem:[%s5 + $0x84] sm:$0xf]
  %v4273 = vld [vmem:[%s5 + $0x88] sm:$0xf]
  %v4274 = vld [vmem:[%s5 + $0x8c] sm:$0xf]
  %v4275 = vld [vmem:[%s5 + $0x90] sm:$0xf]
  %v4276 = vld [vmem:[%s5 + $0x94] sm:$0xf]
  %v4277 = vld [vmem:[%s5 + $0x98] sm:$0xf]
  %v4278 = vld [vmem:[%s5 + $0x9c] sm:$0xf]
  %v4279 = vld [vmem:[%s5 + $0xa0] sm:$0xf]
  %v4280 = vld [vmem:[%s5 + $0xa4] sm:$0xf]
  %v4281 = vld [vmem:[%s5 + $0xa8] sm:$0xf]
  %v4282 = vld [vmem:[%s5 + $0xac] sm:$0xf]
  %v4283 = vld [vmem:[%s5 + $0xb0] sm:$0xf]
  %v4284 = vld [vmem:[%s5 + $0xb4] sm:$0xf]
  %v4285 = vld [vmem:[%s5 + $0xb8] sm:$0xf]
  %v4286 = vld [vmem:[%s5 + $0xbc] sm:$0xf]
  %v4287 = vld [vmem:[%s5 + $0xc0] sm:$0xf]
  %v4288 = vld [vmem:[%s5 + $0xc4] sm:$0xf]
  %v4289 = vld [vmem:[%s5 + $0xc8] sm:$0xf]
  %v4290 = vld [vmem:[%s5 + $0xcc] sm:$0xf]
  %v4291 = vld [vmem:[%s5 + $0xd0] sm:$0xf]
  %v4292 = vld [vmem:[%s5 + $0xd4] sm:$0xf]
  %v4293 = vld [vmem:[%s5 + $0xd8] sm:$0xf]
  %v4294 = vld [vmem:[%s5 + $0xdc] sm:$0xf]
  %v4295 = vld [vmem:[%s5 + $0xe0] sm:$0xf]
  %v4296 = vld [vmem:[%s5 + $0xe4] sm:$0xf]
  %v4297 = vld [vmem:[%s5 + $0xe8] sm:$0xf]
  %v4298 = vld [vmem:[%s5 + $0xec] sm:$0xf]
  %v4299 = vld [vmem:[%s5 + $0xf0] sm:$0xf]
  %v4300 = vld [vmem:[%s5 + $0xf4] sm:$0xf]
  %v4301 = vld [vmem:[%s5 + $0xf8] sm:$0xf]
  %v4302 = vld [vmem:[%s5 + $0xfc] sm:$0xf]
  %v4303 = vld [vmem:[%s5 + $0x100] sm:$0xf]
  %v4304 = vld [vmem:[%s5 + $0x104] sm:$0xf]
  %v4305 = vld [vmem:[%s5 + $0x108] sm:$0xf]
  %v4306 = vld [vmem:[%s5 + $0x10c] sm:$0xf]
  %v4307 = vld [vmem:[%s5 + $0x110] sm:$0xf]
  %v4308 = vld [vmem:[%s5 + $0x114] sm:$0xf]
  %v4309 = vld [vmem:[%s5 + $0x118] sm:$0xf]
  %v4310 = vld [vmem:[%s5 + $0x11c] sm:$0xf]
  %v4311 = vld [vmem:[%s5 + $0x120] sm:$0xf]
  %v4312 = vld [vmem:[%s5 + $0x124] sm:$0xf]
  %v4313 = vld [vmem:[%s5 + $0x128] sm:$0xf]
  %v4314 = vld [vmem:[%s5 + $0x12c] sm:$0xf]
  %v4315 = vld [vmem:[%s5 + $0x130] sm:$0xf]
  %v4316 = vld [vmem:[%s5 + $0x134] sm:$0xf]
  %v4317 = vld [vmem:[%s5 + $0x138] sm:$0xf]
  %v4318 = vld [vmem:[%s5 + $0x13c] sm:$0xf]
  %v4319 = vld [vmem:[%s5 + $0x140] sm:$0xf]
  %v4320 = vld [vmem:[%s5 + $0x144] sm:$0xf]
  %v4321 = vld [vmem:[%s5 + $0x148] sm:$0xf]
  %v4322 = vld [vmem:[%s5 + $0x14c] sm:$0xf]
  %v4323 = vld [vmem:[%s5 + $0x150] sm:$0xf]
  %v4324 = vld [vmem:[%s5 + $0x154] sm:$0xf]
  %v4325 = vld [vmem:[%s5 + $0x158] sm:$0xf]
  %v4326 = vld [vmem:[%s5 + $0x15c] sm:$0xf]
  %v4327 = vld [vmem:[%s5 + $0x160] sm:$0xf]
  %v4328 = vld [vmem:[%s5 + $0x164] sm:$0xf]
  %v4329 = vld [vmem:[%s5 + $0x168] sm:$0xf]
  %v4330 = vld [vmem:[%s5 + $0x16c] sm:$0xf]
  %v4331 = vld [vmem:[%s5 + $0x170] sm:$0xf]
  %v4332 = vld [vmem:[%s5 + $0x174] sm:$0xf]
  %v4333 = vld [vmem:[%s5 + $0x178] sm:$0xf]
  %v4334 = vld [vmem:[%s5 + $0x17c] sm:$0xf]
  %v4335 = vld [vmem:[%s5 + $0x180] sm:$0xf]
  %v4336 = vld [vmem:[%s5 + $0x184] sm:$0xf]
  %v4337 = vld [vmem:[%s5 + $0x188] sm:$0xf]
  %v4338 = vld [vmem:[%s5 + $0x18c] sm:$0xf]
  %v4339 = vld [vmem:[%s5 + $0x190] sm:$0xf]
  %v4340 = vld [vmem:[%s5 + $0x194] sm:$0xf]
  %v4341 = vld [vmem:[%s5 + $0x198] sm:$0xf]
  %v4342 = vld [vmem:[%s5 + $0x19c] sm:$0xf]
  %v4343 = vld [vmem:[%s5 + $0x1a0] sm:$0xf]
  %v4344 = vld [vmem:[%s5 + $0x1a4] sm:$0xf]
  %v4345 = vld [vmem:[%s5 + $0x1a8] sm:$0xf]
  %v4346 = vld [vmem:[%s5 + $0x1ac] sm:$0xf]
  %v4347 = vld [vmem:[%s5 + $0x1b0] sm:$0xf]
  %v4348 = vld [vmem:[%s5 + $0x1b4] sm:$0xf]
  %v4349 = vld [vmem:[%s5 + $0x1b8] sm:$0xf]
  %v4350 = vld [vmem:[%s5 + $0x1bc] sm:$0xf]
  %v4351 = vld [vmem:[%s5 + $0x1c0] sm:$0xf]
  %v4352 = vld [vmem:[%s5 + $0x1c4] sm:$0xf]
  %v4353 = vld [vmem:[%s5 + $0x1c8] sm:$0xf]
  %v4354 = vld [vmem:[%s5 + $0x1cc] sm:$0xf]
  %v4355 = vld [vmem:[%s5 + $0x1d0] sm:$0xf]
  %v4356 = vld [vmem:[%s5 + $0x1d4] sm:$0xf]
  %v4357 = vld [vmem:[%s5 + $0x1d8] sm:$0xf]
  %v4358 = vld [vmem:[%s5 + $0x1dc] sm:$0xf]
  %v4359 = vld [vmem:[%s5 + $0x1e0] sm:$0xf]
  %v4360 = vld [vmem:[%s5 + $0x1e4] sm:$0xf]
  %v4361 = vld [vmem:[%s5 + $0x1e8] sm:$0xf]
  %v4362 = vld [vmem:[%s5 + $0x1ec] sm:$0xf]
  %v4363 = vld [vmem:[%s5 + $0x1f0] sm:$0xf]
  %v4364 = vld [vmem:[%s5 + $0x1f4] sm:$0xf]
  %v4365 = vld [vmem:[%s5 + $0x1f8] sm:$0xf]
  %v4366 = vld [vmem:[%s5 + $0x1fc] sm:$0xf]
  %v4367 = vld [vmem:[%s5 + $0x200] sm:$0xf]
  %v4368 = vld [vmem:[%s5 + $0x204] sm:$0xf]
  %v4369 = vld [vmem:[%s5 + $0x208] sm:$0xf]
  %v4370 = vld [vmem:[%s5 + $0x20c] sm:$0xf]
  %v4371 = vld [vmem:[%s5 + $0x210] sm:$0xf]
  %v4372 = vld [vmem:[%s5 + $0x214] sm:$0xf]
  %v4373 = vld [vmem:[%s5 + $0x218] sm:$0xf]
  %v4374 = vld [vmem:[%s5 + $0x21c] sm:$0xf]
  %v4375 = vld [vmem:[%s5 + $0x220] sm:$0xf]
  %v4376 = vld [vmem:[%s5 + $0x224] sm:$0xf]
  %v4377 = vld [vmem:[%s5 + $0x228] sm:$0xf]
  %v4378 = vld [vmem:[%s5 + $0x22c] sm:$0xf]
  %v4379 = vld [vmem:[%s5 + $0x230] sm:$0xf]
  %v4380 = vld [vmem:[%s5 + $0x234] sm:$0xf]
  %v4381 = vld [vmem:[%s5 + $0x238] sm:$0xf]
  %v4382 = vld [vmem:[%s5 + $0x23c] sm:$0xf]
  %v4383 = vld [vmem:[%s5 + $0x240] sm:$0xf]
  %v4384 = vld [vmem:[%s5 + $0x244] sm:$0xf]
  %v4385 = vld [vmem:[%s5 + $0x248] sm:$0xf]
  %v4386 = vld [vmem:[%s5 + $0x24c] sm:$0xf]
  %v4387 = vld [vmem:[%s5 + $0x250] sm:$0xf]
  %v4388 = vld [vmem:[%s5 + $0x254] sm:$0xf]
  %v4389 = vld [vmem:[%s5 + $0x258] sm:$0xf]
  %v4390 = vld [vmem:[%s5 + $0x25c] sm:$0xf]
  %v4391 = vld [vmem:[%s5 + $0x260] sm:$0xf]
  %v4392 = vld [vmem:[%s5 + $0x264] sm:$0xf]
  %v4393 = vld [vmem:[%s5 + $0x268] sm:$0xf]
  %v4394 = vld [vmem:[%s5 + $0x26c] sm:$0xf]
  %v4395 = vld [vmem:[%s5 + $0x270] sm:$0xf]
  %v4396 = vld [vmem:[%s5 + $0x274] sm:$0xf]
  %v4397 = vld [vmem:[%s5 + $0x278] sm:$0xf]
  %v4398 = vld [vmem:[%s5 + $0x27c] sm:$0xf]
  %v4399 = vld [vmem:[%s5 + $0x280] sm:$0xf]
  %v4400 = vld [vmem:[%s5 + $0x284] sm:$0xf]
  %v4401 = vld [vmem:[%s5 + $0x288] sm:$0xf]
  %v4402 = vld [vmem:[%s5 + $0x28c] sm:$0xf]
  %v4403 = vld [vmem:[%s5 + $0x290] sm:$0xf]
  %v4404 = vld [vmem:[%s5 + $0x294] sm:$0xf]
  %v4405 = vld [vmem:[%s5 + $0x298] sm:$0xf]
  %v4406 = vld [vmem:[%s5 + $0x29c] sm:$0xf]
  %v4407 = vld [vmem:[%s5 + $0x2a0] sm:$0xf]
  %v4408 = vld [vmem:[%s5 + $0x2a4] sm:$0xf]
  %v4409 = vld [vmem:[%s5 + $0x2a8] sm:$0xf]
  %v4410 = vld [vmem:[%s5 + $0x2ac] sm:$0xf]
  %v4411 = vld [vmem:[%s5 + $0x2b0] sm:$0xf]
  %v4412 = vld [vmem:[%s5 + $0x2b4] sm:$0xf]
  %v4413 = vld [vmem:[%s5 + $0x2b8] sm:$0xf]
  %v4414 = vld [vmem:[%s5 + $0x2bc] sm:$0xf]
  %v4415 = vld [vmem:[%s5 + $0x2c0] sm:$0xf]
  %v4416 = vld [vmem:[%s5 + $0x2c4] sm:$0xf]
  %v4417 = vld [vmem:[%s5 + $0x2c8] sm:$0xf]
  %v4418 = vld [vmem:[%s5 + $0x2cc] sm:$0xf]
  %v4419 = vld [vmem:[%s5 + $0x2d0] sm:$0xf]
  %v4420 = vld [vmem:[%s5 + $0x2d4] sm:$0xf]
  %v4421 = vld [vmem:[%s5 + $0x2d8] sm:$0xf]
  %v4422 = vld [vmem:[%s5 + $0x2dc] sm:$0xf]
  %v4423 = vld [vmem:[%s5 + $0x2e0] sm:$0xf]
  %v4424 = vld [vmem:[%s5 + $0x2e4] sm:$0xf]
  %v4425 = vld [vmem:[%s5 + $0x2e8] sm:$0xf]
  %v4426 = vld [vmem:[%s5 + $0x2ec] sm:$0xf]
  %v4427 = vld [vmem:[%s5 + $0x2f0] sm:$0xf]
  %v4428 = vld [vmem:[%s5 + $0x2f4] sm:$0xf]
  %v4429 = vld [vmem:[%s5 + $0x2f8] sm:$0xf]
  %v4430 = vld [vmem:[%s5 + $0x2fc] sm:$0xf]
  %v4431 = vld [vmem:[%s5 + $0x300] sm:$0xf]
  %v4432 = vld [vmem:[%s5 + $0x304] sm:$0xf]
  %v4433 = vld [vmem:[%s5 + $0x308] sm:$0xf]
  %v4434 = vld [vmem:[%s5 + $0x30c] sm:$0xf]
  %v4435 = vld [vmem:[%s5 + $0x310] sm:$0xf]
  %v4436 = vld [vmem:[%s5 + $0x314] sm:$0xf]
  %v4437 = vld [vmem:[%s5 + $0x318] sm:$0xf]
  %v4438 = vld [vmem:[%s5 + $0x31c] sm:$0xf]
  %v4439 = vld [vmem:[%s5 + $0x320] sm:$0xf]
  %v4440 = vld [vmem:[%s5 + $0x324] sm:$0xf]
  %v4441 = vld [vmem:[%s5 + $0x328] sm:$0xf]
  %v4442 = vld [vmem:[%s5 + $0x32c] sm:$0xf]
  %v4443 = vld [vmem:[%s5 + $0x330] sm:$0xf]
  %v4444 = vld [vmem:[%s5 + $0x334] sm:$0xf]
  %v4445 = vld [vmem:[%s5 + $0x338] sm:$0xf]
  %v4446 = vld [vmem:[%s5 + $0x33c] sm:$0xf]
  %v4447 = vld [vmem:[%s5 + $0x340] sm:$0xf]
  %v4448 = vld [vmem:[%s5 + $0x344] sm:$0xf]
  %v4449 = vld [vmem:[%s5 + $0x348] sm:$0xf]
  %v4450 = vld [vmem:[%s5 + $0x34c] sm:$0xf]
  %v4451 = vld [vmem:[%s5 + $0x350] sm:$0xf]
  %v4452 = vld [vmem:[%s5 + $0x354] sm:$0xf]
  %v4453 = vld [vmem:[%s5 + $0x358] sm:$0xf]
  %v4454 = vld [vmem:[%s5 + $0x35c] sm:$0xf]
  %v4455 = vld [vmem:[%s5 + $0x360] sm:$0xf]
  %v4456 = vld [vmem:[%s5 + $0x364] sm:$0xf]
  %v4457 = vld [vmem:[%s5 + $0x368] sm:$0xf]
  %v4458 = vld [vmem:[%s5 + $0x36c] sm:$0xf]
  %v4459 = vld [vmem:[%s5 + $0x370] sm:$0xf]
  %v4460 = vld [vmem:[%s5 + $0x374] sm:$0xf]
  %v4461 = vld [vmem:[%s5 + $0x378] sm:$0xf]
  %v4462 = vld [vmem:[%s5 + $0x37c] sm:$0xf]
  %v4463 = vld [vmem:[%s5 + $0x380] sm:$0xf]
  %v4464 = vld [vmem:[%s5 + $0x384] sm:$0xf]
  %v4465 = vld [vmem:[%s5 + $0x388] sm:$0xf]
  %v4466 = vld [vmem:[%s5 + $0x38c] sm:$0xf]
  %v4467 = vld [vmem:[%s5 + $0x390] sm:$0xf]
  %v4468 = vld [vmem:[%s5 + $0x394] sm:$0xf]
  %v4469 = vld [vmem:[%s5 + $0x398] sm:$0xf]
  %v4470 = vld [vmem:[%s5 + $0x39c] sm:$0xf]
  %v4471 = vld [vmem:[%s5 + $0x3a0] sm:$0xf]
  %v4472 = vld [vmem:[%s5 + $0x3a4] sm:$0xf]
  %v4473 = vld [vmem:[%s5 + $0x3a8] sm:$0xf]
  %v4474 = vld [vmem:[%s5 + $0x3ac] sm:$0xf]
  %v4475 = vld [vmem:[%s5 + $0x3b0] sm:$0xf]
  %v4476 = vld [vmem:[%s5 + $0x3b4] sm:$0xf]
  %v4477 = vld [vmem:[%s5 + $0x3b8] sm:$0xf]
  %v4478 = vld [vmem:[%s5 + $0x3bc] sm:$0xf]
  %v4479 = vld [vmem:[%s5 + $0x3c0] sm:$0xf]
  %v4480 = vld [vmem:[%s5 + $0x3c4] sm:$0xf]
  %v4481 = vld [vmem:[%s5 + $0x3c8] sm:$0xf]
  %v4482 = vld [vmem:[%s5 + $0x3cc] sm:$0xf]
  %v4483 = vld [vmem:[%s5 + $0x3d0] sm:$0xf]
  %v4484 = vld [vmem:[%s5 + $0x3d4] sm:$0xf]
  %v4485 = vld [vmem:[%s5 + $0x3d8] sm:$0xf]
  %v4486 = vld [vmem:[%s5 + $0x3dc] sm:$0xf]
  %v4487 = vld [vmem:[%s5 + $0x3e0] sm:$0xf]
  %v4488 = vld [vmem:[%s5 + $0x3e4] sm:$0xf]
  %v4489 = vld [vmem:[%s5 + $0x3e8] sm:$0xf]
  %v4490 = vld [vmem:[%s5 + $0x3ec] sm:$0xf]
  %v4491 = vld [vmem:[%s5 + $0x3f0] sm:$0xf]
  %v4492 = vld [vmem:[%s5 + $0x3f4] sm:$0xf]
  %v4493 = vld [vmem:[%s5 + $0x3f8] sm:$0xf]
  %v4494 = vld [vmem:[%s5 + $0x3fc] sm:$0xf]
  %v4495 = vld [vmem:[%s6] sm:$0x1]
  %v4497 = vlaneseq
  %v4498 = vshrl.u32 %v4497, 7
  %v4499 = vsub.s32 0, %v4498
  %v4500 = vrot.slane %v4495, %v4499
  %v4758 = vunpack.c.l.b16 %v4239
  %v4759 = vunpack.c.l.b16 %v4240
  %v4760 = vunpack.c.l.b16 %v4241
  %v4761 = vunpack.c.l.b16 %v4242
  %v4762 = vunpack.c.l.b16 %v4243
  %v4763 = vunpack.c.l.b16 %v4244
  %v4764 = vunpack.c.l.b16 %v4245
  %v4765 = vunpack.c.l.b16 %v4246
  %v4766 = vunpack.c.l.b16 %v4247
  %v4767 = vunpack.c.l.b16 %v4248
  %v4768 = vunpack.c.l.b16 %v4249
  %v4769 = vunpack.c.l.b16 %v4250
  %v4770 = vunpack.c.l.b16 %v4251
  %v4771 = vunpack.c.l.b16 %v4252
  %v4772 = vunpack.c.l.b16 %v4253
  %v4773 = vunpack.c.l.b16 %v4254
  %v4774 = vunpack.c.l.b16 %v4255
  %v4775 = vunpack.c.l.b16 %v4256
  %v4776 = vunpack.c.l.b16 %v4257
  %v4777 = vunpack.c.l.b16 %v4258
  %v4778 = vunpack.c.l.b16 %v4259
  %v4779 = vunpack.c.l.b16 %v4260
  %v4780 = vunpack.c.l.b16 %v4261
  %v4781 = vunpack.c.l.b16 %v4262
  %v4782 = vunpack.c.l.b16 %v4263
  %v4783 = vunpack.c.l.b16 %v4264
  %v4784 = vunpack.c.l.b16 %v4265
  %v4785 = vunpack.c.l.b16 %v4266
  %v4786 = vunpack.c.l.b16 %v4267
  %v4787 = vunpack.c.l.b16 %v4268
  %v4788 = vunpack.c.l.b16 %v4269
  %v4789 = vunpack.c.l.b16 %v4270
  %v4790 = vunpack.c.l.b16 %v4271
  %v4791 = vunpack.c.l.b16 %v4272
  %v4792 = vunpack.c.l.b16 %v4273
  %v4793 = vunpack.c.l.b16 %v4274
  %v4794 = vunpack.c.l.b16 %v4275
  %v4795 = vunpack.c.l.b16 %v4276
  %v4796 = vunpack.c.l.b16 %v4277
  %v4797 = vunpack.c.l.b16 %v4278
  %v4798 = vunpack.c.l.b16 %v4279
  %v4799 = vunpack.c.l.b16 %v4280
  %v4800 = vunpack.c.l.b16 %v4281
  %v4801 = vunpack.c.l.b16 %v4282
  %v4802 = vunpack.c.l.b16 %v4283
  %v4803 = vunpack.c.l.b16 %v4284
  %v4804 = vunpack.c.l.b16 %v4285
  %v4805 = vunpack.c.l.b16 %v4286
  %v4806 = vunpack.c.l.b16 %v4287
  %v4807 = vunpack.c.l.b16 %v4288
  %v4808 = vunpack.c.l.b16 %v4289
  %v4809 = vunpack.c.l.b16 %v4290
  %v4810 = vunpack.c.l.b16 %v4291
  %v4811 = vunpack.c.l.b16 %v4292
  %v4812 = vunpack.c.l.b16 %v4293
  %v4813 = vunpack.c.l.b16 %v4294
  %v4814 = vunpack.c.l.b16 %v4295
  %v4815 = vunpack.c.l.b16 %v4296
  %v4816 = vunpack.c.l.b16 %v4297
  %v4817 = vunpack.c.l.b16 %v4298
  %v4818 = vunpack.c.l.b16 %v4299
  %v4819 = vunpack.c.l.b16 %v4300
  %v4820 = vunpack.c.l.b16 %v4301
  %v4821 = vunpack.c.l.b16 %v4302
  %v4822 = vunpack.c.l.b16 %v4303
  %v4823 = vunpack.c.l.b16 %v4304
  %v4824 = vunpack.c.l.b16 %v4305
  %v4825 = vunpack.c.l.b16 %v4306
  %v4826 = vunpack.c.l.b16 %v4307
  %v4827 = vunpack.c.l.b16 %v4308
  %v4828 = vunpack.c.l.b16 %v4309
  %v4829 = vunpack.c.l.b16 %v4310
  %v4830 = vunpack.c.l.b16 %v4311
  %v4831 = vunpack.c.l.b16 %v4312
  %v4832 = vunpack.c.l.b16 %v4313
  %v4833 = vunpack.c.l.b16 %v4314
  %v4834 = vunpack.c.l.b16 %v4315
  %v4835 = vunpack.c.l.b16 %v4316
  %v4836 = vunpack.c.l.b16 %v4317
  %v4837 = vunpack.c.l.b16 %v4318
  %v4838 = vunpack.c.l.b16 %v4319
  %v4839 = vunpack.c.l.b16 %v4320
  %v4840 = vunpack.c.l.b16 %v4321
  %v4841 = vunpack.c.l.b16 %v4322
  %v4842 = vunpack.c.l.b16 %v4323
  %v4843 = vunpack.c.l.b16 %v4324
  %v4844 = vunpack.c.l.b16 %v4325
  %v4845 = vunpack.c.l.b16 %v4326
  %v4846 = vunpack.c.l.b16 %v4327
  %v4847 = vunpack.c.l.b16 %v4328
  %v4848 = vunpack.c.l.b16 %v4329
  %v4849 = vunpack.c.l.b16 %v4330
  %v4850 = vunpack.c.l.b16 %v4331
  %v4851 = vunpack.c.l.b16 %v4332
  %v4852 = vunpack.c.l.b16 %v4333
  %v4853 = vunpack.c.l.b16 %v4334
  %v4854 = vunpack.c.l.b16 %v4335
  %v4855 = vunpack.c.l.b16 %v4336
  %v4856 = vunpack.c.l.b16 %v4337
  %v4857 = vunpack.c.l.b16 %v4338
  %v4858 = vunpack.c.l.b16 %v4339
  %v4859 = vunpack.c.l.b16 %v4340
  %v4860 = vunpack.c.l.b16 %v4341
  %v4861 = vunpack.c.l.b16 %v4342
  %v4862 = vunpack.c.l.b16 %v4343
  %v4863 = vunpack.c.l.b16 %v4344
  %v4864 = vunpack.c.l.b16 %v4345
  %v4865 = vunpack.c.l.b16 %v4346
  %v4866 = vunpack.c.l.b16 %v4347
  %v4867 = vunpack.c.l.b16 %v4348
  %v4868 = vunpack.c.l.b16 %v4349
  %v4869 = vunpack.c.l.b16 %v4350
  %v4870 = vunpack.c.l.b16 %v4351
  %v4871 = vunpack.c.l.b16 %v4352
  %v4872 = vunpack.c.l.b16 %v4353
  %v4873 = vunpack.c.l.b16 %v4354
  %v4874 = vunpack.c.l.b16 %v4355
  %v4875 = vunpack.c.l.b16 %v4356
  %v4876 = vunpack.c.l.b16 %v4357
  %v4877 = vunpack.c.l.b16 %v4358
  %v4878 = vunpack.c.l.b16 %v4359
  %v4879 = vunpack.c.l.b16 %v4360
  %v4880 = vunpack.c.l.b16 %v4361
  %v4881 = vunpack.c.l.b16 %v4362
  %v4882 = vunpack.c.l.b16 %v4363
  %v4883 = vunpack.c.l.b16 %v4364
  %v4884 = vunpack.c.l.b16 %v4365
  %v4885 = vunpack.c.l.b16 %v4366
  %v4886 = vunpack.c.l.b16 %v4367
  %v4887 = vunpack.c.l.b16 %v4368
  %v4888 = vunpack.c.l.b16 %v4369
  %v4889 = vunpack.c.l.b16 %v4370
  %v4890 = vunpack.c.l.b16 %v4371
  %v4891 = vunpack.c.l.b16 %v4372
  %v4892 = vunpack.c.l.b16 %v4373
  %v4893 = vunpack.c.l.b16 %v4374
  %v4894 = vunpack.c.l.b16 %v4375
  %v4895 = vunpack.c.l.b16 %v4376
  %v4896 = vunpack.c.l.b16 %v4377
  %v4897 = vunpack.c.l.b16 %v4378
  %v4898 = vunpack.c.l.b16 %v4379
  %v4899 = vunpack.c.l.b16 %v4380
  %v4900 = vunpack.c.l.b16 %v4381
  %v4901 = vunpack.c.l.b16 %v4382
  %v4902 = vunpack.c.l.b16 %v4383
  %v4903 = vunpack.c.l.b16 %v4384
  %v4904 = vunpack.c.l.b16 %v4385
  %v4905 = vunpack.c.l.b16 %v4386
  %v4906 = vunpack.c.l.b16 %v4387
  %v4907 = vunpack.c.l.b16 %v4388
  %v4908 = vunpack.c.l.b16 %v4389
  %v4909 = vunpack.c.l.b16 %v4390
  %v4910 = vunpack.c.l.b16 %v4391
  %v4911 = vunpack.c.l.b16 %v4392
  %v4912 = vunpack.c.l.b16 %v4393
  %v4913 = vunpack.c.l.b16 %v4394
  %v4914 = vunpack.c.l.b16 %v4395
  %v4915 = vunpack.c.l.b16 %v4396
  %v4916 = vunpack.c.l.b16 %v4397
  %v4917 = vunpack.c.l.b16 %v4398
  %v4918 = vunpack.c.l.b16 %v4399
  %v4919 = vunpack.c.l.b16 %v4400
  %v4920 = vunpack.c.l.b16 %v4401
  %v4921 = vunpack.c.l.b16 %v4402
  %v4922 = vunpack.c.l.b16 %v4403
  %v4923 = vunpack.c.l.b16 %v4404
  %v4924 = vunpack.c.l.b16 %v4405
  %v4925 = vunpack.c.l.b16 %v4406
  %v4926 = vunpack.c.l.b16 %v4407
  %v4927 = vunpack.c.l.b16 %v4408
  %v4928 = vunpack.c.l.b16 %v4409
  %v4929 = vunpack.c.l.b16 %v4410
  %v4930 = vunpack.c.l.b16 %v4411
  %v4931 = vunpack.c.l.b16 %v4412
  %v4932 = vunpack.c.l.b16 %v4413
  %v4933 = vunpack.c.l.b16 %v4414
  %v4934 = vunpack.c.l.b16 %v4415
  %v4935 = vunpack.c.l.b16 %v4416
  %v4936 = vunpack.c.l.b16 %v4417
  %v4937 = vunpack.c.l.b16 %v4418
  %v4938 = vunpack.c.l.b16 %v4419
  %v4939 = vunpack.c.l.b16 %v4420
  %v4940 = vunpack.c.l.b16 %v4421
  %v4941 = vunpack.c.l.b16 %v4422
  %v4942 = vunpack.c.l.b16 %v4423
  %v4943 = vunpack.c.l.b16 %v4424
  %v4944 = vunpack.c.l.b16 %v4425
  %v4945 = vunpack.c.l.b16 %v4426
  %v4946 = vunpack.c.l.b16 %v4427
  %v4947 = vunpack.c.l.b16 %v4428
  %v4948 = vunpack.c.l.b16 %v4429
  %v4949 = vunpack.c.l.b16 %v4430
  %v4950 = vunpack.c.l.b16 %v4431
  %v4951 = vunpack.c.l.b16 %v4432
  %v4952 = vunpack.c.l.b16 %v4433
  %v4953 = vunpack.c.l.b16 %v4434
  %v4954 = vunpack.c.l.b16 %v4435
  %v4955 = vunpack.c.l.b16 %v4436
  %v4956 = vunpack.c.l.b16 %v4437
  %v4957 = vunpack.c.l.b16 %v4438
  %v4958 = vunpack.c.l.b16 %v4439
  %v4959 = vunpack.c.l.b16 %v4440
  %v4960 = vunpack.c.l.b16 %v4441
  %v4961 = vunpack.c.l.b16 %v4442
  %v4962 = vunpack.c.l.b16 %v4443
  %v4963 = vunpack.c.l.b16 %v4444
  %v4964 = vunpack.c.l.b16 %v4445
  %v4965 = vunpack.c.l.b16 %v4446
  %v4966 = vunpack.c.l.b16 %v4447
  %v4967 = vunpack.c.l.b16 %v4448
  %v4968 = vunpack.c.l.b16 %v4449
  %v4969 = vunpack.c.l.b16 %v4450
  %v4970 = vunpack.c.l.b16 %v4451
  %v4971 = vunpack.c.l.b16 %v4452
  %v4972 = vunpack.c.l.b16 %v4453
  %v4973 = vunpack.c.l.b16 %v4454
  %v4974 = vunpack.c.l.b16 %v4455
  %v4975 = vunpack.c.l.b16 %v4456
  %v4976 = vunpack.c.l.b16 %v4457
  %v4977 = vunpack.c.l.b16 %v4458
  %v4978 = vunpack.c.l.b16 %v4459
  %v4979 = vunpack.c.l.b16 %v4460
  %v4980 = vunpack.c.l.b16 %v4461
  %v4981 = vunpack.c.l.b16 %v4462
  %v4982 = vunpack.c.l.b16 %v4463
  %v4983 = vunpack.c.l.b16 %v4464
  %v4984 = vunpack.c.l.b16 %v4465
  %v4985 = vunpack.c.l.b16 %v4466
  %v4986 = vunpack.c.l.b16 %v4467
  %v4987 = vunpack.c.l.b16 %v4468
  %v4988 = vunpack.c.l.b16 %v4469
  %v4989 = vunpack.c.l.b16 %v4470
  %v4990 = vunpack.c.l.b16 %v4471
  %v4991 = vunpack.c.l.b16 %v4472
  %v4992 = vunpack.c.l.b16 %v4473
  %v4993 = vunpack.c.l.b16 %v4474
  %v4994 = vunpack.c.l.b16 %v4475
  %v4995 = vunpack.c.l.b16 %v4476
  %v4996 = vunpack.c.l.b16 %v4477
  %v4997 = vunpack.c.l.b16 %v4478
  %v4998 = vunpack.c.l.b16 %v4479
  %v4999 = vunpack.c.l.b16 %v4480
  %v5000 = vunpack.c.l.b16 %v4481
  %v5001 = vunpack.c.l.b16 %v4482
  %v5002 = vunpack.c.l.b16 %v4483
  %v5003 = vunpack.c.l.b16 %v4484
  %v5004 = vunpack.c.l.b16 %v4485
  %v5005 = vunpack.c.l.b16 %v4486
  %v5006 = vunpack.c.l.b16 %v4487
  %v5007 = vunpack.c.l.b16 %v4488
  %v5008 = vunpack.c.l.b16 %v4489
  %v5009 = vunpack.c.l.b16 %v4490
  %v5010 = vunpack.c.l.b16 %v4491
  %v5011 = vunpack.c.l.b16 %v4492
  %v5012 = vunpack.c.l.b16 %v4493
  %v5013 = vunpack.c.l.b16 %v4494
  %v5014 = vpack.c.b16 %v4759, %v4758
  %v5015 = vpack.c.b16 %v4761, %v4760
  %v5016 = vpack.c.b16 %v4763, %v4762
  %v5017 = vpack.c.b16 %v4765, %v4764
  %v5018 = vpack.c.b16 %v4767, %v4766
  %v5019 = vpack.c.b16 %v4769, %v4768
  %v5020 = vpack.c.b16 %v4771, %v4770
  %v5021 = vpack.c.b16 %v4773, %v4772
  %v5022 = vpack.c.b16 %v4775, %v4774
  %v5023 = vpack.c.b16 %v4777, %v4776
  %v5024 = vpack.c.b16 %v4779, %v4778
  %v5025 = vpack.c.b16 %v4781, %v4780
  %v5026 = vpack.c.b16 %v4783, %v4782
  %v5027 = vpack.c.b16 %v4785, %v4784
  %v5028 = vpack.c.b16 %v4787, %v4786
  %v5029 = vpack.c.b16 %v4789, %v4788
  %v5030 = vpack.c.b16 %v4791, %v4790
  %v5031 = vpack.c.b16 %v4793, %v4792
  %v5032 = vpack.c.b16 %v4795, %v4794
  %v5033 = vpack.c.b16 %v4797, %v4796
  %v5034 = vpack.c.b16 %v4799, %v4798
  %v5035 = vpack.c.b16 %v4801, %v4800
  %v5036 = vpack.c.b16 %v4803, %v4802
  %v5037 = vpack.c.b16 %v4805, %v4804
  %v5038 = vpack.c.b16 %v4807, %v4806
  %v5039 = vpack.c.b16 %v4809, %v4808
  %v5040 = vpack.c.b16 %v4811, %v4810
  %v5041 = vpack.c.b16 %v4813, %v4812
  %v5042 = vpack.c.b16 %v4815, %v4814
  %v5043 = vpack.c.b16 %v4817, %v4816
  %v5044 = vpack.c.b16 %v4819, %v4818
  %v5045 = vpack.c.b16 %v4821, %v4820
  %v5046 = vpack.c.b16 %v4823, %v4822
  %v5047 = vpack.c.b16 %v4825, %v4824
  %v5048 = vpack.c.b16 %v4827, %v4826
  %v5049 = vpack.c.b16 %v4829, %v4828
  %v5050 = vpack.c.b16 %v4831, %v4830
  %v5051 = vpack.c.b16 %v4833, %v4832
  %v5052 = vpack.c.b16 %v4835, %v4834
  %v5053 = vpack.c.b16 %v4837, %v4836
  %v5054 = vpack.c.b16 %v4839, %v4838
  %v5055 = vpack.c.b16 %v4841, %v4840
  %v5056 = vpack.c.b16 %v4843, %v4842
  %v5057 = vpack.c.b16 %v4845, %v4844
  %v5058 = vpack.c.b16 %v4847, %v4846
  %v5059 = vpack.c.b16 %v4849, %v4848
  %v5060 = vpack.c.b16 %v4851, %v4850
  %v5061 = vpack.c.b16 %v4853, %v4852
  %v5062 = vpack.c.b16 %v4855, %v4854
  %v5063 = vpack.c.b16 %v4857, %v4856
  %v5064 = vpack.c.b16 %v4859, %v4858
  %v5065 = vpack.c.b16 %v4861, %v4860
  %v5066 = vpack.c.b16 %v4863, %v4862
  %v5067 = vpack.c.b16 %v4865, %v4864
  %v5068 = vpack.c.b16 %v4867, %v4866
  %v5069 = vpack.c.b16 %v4869, %v4868
  %v5070 = vpack.c.b16 %v4871, %v4870
  %v5071 = vpack.c.b16 %v4873, %v4872
  %v5072 = vpack.c.b16 %v4875, %v4874
  %v5073 = vpack.c.b16 %v4877, %v4876
  %v5074 = vpack.c.b16 %v4879, %v4878
  %v5075 = vpack.c.b16 %v4881, %v4880
  %v5076 = vpack.c.b16 %v4883, %v4882
  %v5077 = vpack.c.b16 %v4885, %v4884
  %v5078 = vpack.c.b16 %v4887, %v4886
  %v5079 = vpack.c.b16 %v4889, %v4888
  %v5080 = vpack.c.b16 %v4891, %v4890
  %v5081 = vpack.c.b16 %v4893, %v4892
  %v5082 = vpack.c.b16 %v4895, %v4894
  %v5083 = vpack.c.b16 %v4897, %v4896
  %v5084 = vpack.c.b16 %v4899, %v4898
  %v5085 = vpack.c.b16 %v4901, %v4900
  %v5086 = vpack.c.b16 %v4903, %v4902
  %v5087 = vpack.c.b16 %v4905, %v4904
  %v5088 = vpack.c.b16 %v4907, %v4906
  %v5089 = vpack.c.b16 %v4909, %v4908
  %v5090 = vpack.c.b16 %v4911, %v4910
  %v5091 = vpack.c.b16 %v4913, %v4912
  %v5092 = vpack.c.b16 %v4915, %v4914
  %v5093 = vpack.c.b16 %v4917, %v4916
  %v5094 = vpack.c.b16 %v4919, %v4918
  %v5095 = vpack.c.b16 %v4921, %v4920
  %v5096 = vpack.c.b16 %v4923, %v4922
  %v5097 = vpack.c.b16 %v4925, %v4924
  %v5098 = vpack.c.b16 %v4927, %v4926
  %v5099 = vpack.c.b16 %v4929, %v4928
  %v5100 = vpack.c.b16 %v4931, %v4930
  %v5101 = vpack.c.b16 %v4933, %v4932
  %v5102 = vpack.c.b16 %v4935, %v4934
  %v5103 = vpack.c.b16 %v4937, %v4936
  %v5104 = vpack.c.b16 %v4939, %v4938
  %v5105 = vpack.c.b16 %v4941, %v4940
  %v5106 = vpack.c.b16 %v4943, %v4942
  %v5107 = vpack.c.b16 %v4945, %v4944
  %v5108 = vpack.c.b16 %v4947, %v4946
  %v5109 = vpack.c.b16 %v4949, %v4948
  %v5110 = vpack.c.b16 %v4951, %v4950
  %v5111 = vpack.c.b16 %v4953, %v4952
  %v5112 = vpack.c.b16 %v4955, %v4954
  %v5113 = vpack.c.b16 %v4957, %v4956
  %v5114 = vpack.c.b16 %v4959, %v4958
  %v5115 = vpack.c.b16 %v4961, %v4960
  %v5116 = vpack.c.b16 %v4963, %v4962
  %v5117 = vpack.c.b16 %v4965, %v4964
  %v5118 = vpack.c.b16 %v4967, %v4966
  %v5119 = vpack.c.b16 %v4969, %v4968
  %v5120 = vpack.c.b16 %v4971, %v4970
  %v5121 = vpack.c.b16 %v4973, %v4972
  %v5122 = vpack.c.b16 %v4975, %v4974
  %v5123 = vpack.c.b16 %v4977, %v4976
  %v5124 = vpack.c.b16 %v4979, %v4978
  %v5125 = vpack.c.b16 %v4981, %v4980
  %v5126 = vpack.c.b16 %v4983, %v4982
  %v5127 = vpack.c.b16 %v4985, %v4984
  %v5128 = vpack.c.b16 %v4987, %v4986
  %v5129 = vpack.c.b16 %v4989, %v4988
  %v5130 = vpack.c.b16 %v4991, %v4990
  %v5131 = vpack.c.b16 %v4993, %v4992
  %v5132 = vpack.c.b16 %v4995, %v4994
  %v5133 = vpack.c.b16 %v4997, %v4996
  %v5134 = vpack.c.b16 %v4999, %v4998
  %v5135 = vpack.c.b16 %v5001, %v5000
  %v5136 = vpack.c.b16 %v5003, %v5002
  %v5137 = vpack.c.b16 %v5005, %v5004
  %v5138 = vpack.c.b16 %v5007, %v5006
  %v5139 = vpack.c.b16 %v5009, %v5008
  %v5140 = vpack.c.b16 %v5011, %v5010
  %v5141 = vpack.c.b16 %v5013, %v5012
  %5270 = vmatprep.subr.bf16.mxu0 0
  %5271 = vmatpush1.bf16.msra.mxu0 %v5014
  %5272 = vmatprep.subr.bf16.mxu0 0
  %5273 = vmatpush1.bf16.msra.mxu0 %v5015
  %5274 = vmatprep.subr.bf16.mxu0 0
  %5275 = vmatpush1.bf16.msra.mxu0 %v5016
  %5276 = vmatprep.subr.bf16.mxu0 0
  %5277 = vmatpush1.bf16.msra.mxu0 %v5017
  %5278 = vmatprep.subr.bf16.mxu0 0
  %5279 = vmatpush1.bf16.msra.mxu0 %v5018
  %5280 = vmatprep.subr.bf16.mxu0 0
  %5281 = vmatpush1.bf16.msra.mxu0 %v5019
  %5282 = vmatprep.subr.bf16.mxu0 0
  %5283 = vmatpush1.bf16.msra.mxu0 %v5020
  %5284 = vmatprep.subr.bf16.mxu0 0
  %5285 = vmatpush1.bf16.msra.mxu0 %v5021
  %5286 = vmatprep.subr.bf16.mxu0 0
  %5287 = vmatpush1.bf16.msra.mxu0 %v5022
  %5288 = vmatprep.subr.bf16.mxu0 0
  %5289 = vmatpush1.bf16.msra.mxu0 %v5023
  %5290 = vmatprep.subr.bf16.mxu0 0
  %5291 = vmatpush1.bf16.msra.mxu0 %v5024
  %5292 = vmatprep.subr.bf16.mxu0 0
  %5293 = vmatpush1.bf16.msra.mxu0 %v5025
  %5294 = vmatprep.subr.bf16.mxu0 0
  %5295 = vmatpush1.bf16.msra.mxu0 %v5026
  %5296 = vmatprep.subr.bf16.mxu0 0
  %5297 = vmatpush1.bf16.msra.mxu0 %v5027
  %5298 = vmatprep.subr.bf16.mxu0 0
  %5299 = vmatpush1.bf16.msra.mxu0 %v5028
  %5300 = vmatprep.subr.bf16.mxu0 0
  %5301 = vmatpush1.bf16.msra.mxu0 %v5029
  %5302 = vmatprep.mubr.bf16.mxu0 %v4224
  %5303 = vmatmul.mubr.bf16.gmra.mrb[0].mxu0 %v4223
  %v5304 = vpop.f32.mrb[0].mxu0
  %v5305 = vadd.f32 %v4500, %v5304
  %v5306 = vpop.f32.mrb[0].mxu0
  %v5307 = vpop.f32.mrb[0].mxu0
  %v5308 = vadd.f32 %v4500, %v5307
  %v5309 = vpop.f32.mrb[0].mxu0
  %5310 = vdwg.mxu0
  %5311 = vmatprep.subr.bf16.mxu0 0
  %5312 = vmatpush1.bf16.msra.mxu0 %v5030
  %5313 = vmatprep.subr.bf16.mxu0 0
  %5314 = vmatpush1.bf16.msra.mxu0 %v5031
  %5315 = vmatprep.subr.bf16.mxu0 0
  %5316 = vmatpush1.bf16.msra.mxu0 %v5032
  %5317 = vmatprep.subr.bf16.mxu0 0
  %5318 = vmatpush1.bf16.msra.mxu0 %v5033
  %5319 = vmatprep.subr.bf16.mxu0 0
  %5320 = vmatpush1.bf16.msra.mxu0 %v5034
  %5321 = vmatprep.subr.bf16.mxu0 0
  %5322 = vmatpush1.bf16.msra.mxu0 %v5035
  %5323 = vmatprep.subr.bf16.mxu0 0
  %5324 = vmatpush1.bf16.msra.mxu0 %v5036
  %5325 = vmatprep.subr.bf16.mxu0 0
  %5326 = vmatpush1.bf16.msra.mxu0 %v5037
  %5327 = vmatprep.subr.bf16.mxu0 0
  %5328 = vmatpush1.bf16.msra.mxu0 %v5038
  %5329 = vmatprep.subr.bf16.mxu0 0
  %5330 = vmatpush1.bf16.msra.mxu0 %v5039
  %5331 = vmatprep.subr.bf16.mxu0 0
  %5332 = vmatpush1.bf16.msra.mxu0 %v5040
  %5333 = vmatprep.subr.bf16.mxu0 0
  %5334 = vmatpush1.bf16.msra.mxu0 %v5041
  %5335 = vmatprep.subr.bf16.mxu0 0
  %5336 = vmatpush1.bf16.msra.mxu0 %v5042
  %5337 = vmatprep.subr.bf16.mxu0 0
  %5338 = vmatpush1.bf16.msra.mxu0 %v5043
  %5339 = vmatprep.subr.bf16.mxu0 0
  %5340 = vmatpush1.bf16.msra.mxu0 %v5044
  %5341 = vmatprep.subr.bf16.mxu0 0
  %5342 = vmatpush1.bf16.msra.mxu0 %v5045
  %5343 = vmatprep.mubr.bf16.mxu0 %v4226
  %5344 = vmatmul.mubr.bf16.gmra.mrb[0].mxu0 %v4225
  %v5345 = vpop.f32.mrb[0].mxu0
  %v5346 = vadd.f32 %v5305, %v5345
  %v5347 = vpop.f32.mrb[0].mxu0
  %v5348 = vpop.f32.mrb[0].mxu0
  %v5349 = vadd.f32 %v5308, %v5348
  %v5350 = vpop.f32.mrb[0].mxu0
  %5351 = vdwg.mxu0
  %5352 = vmatprep.subr.bf16.mxu0 0
  %5353 = vmatpush1.bf16.msra.mxu0 %v5046
  %5354 = vmatprep.subr.bf16.mxu0 0
  %5355 = vmatpush1.bf16.msra.mxu0 %v5047
  %5356 = vmatprep.subr.bf16.mxu0 0
  %5357 = vmatpush1.bf16.msra.mxu0 %v5048
  %5358 = vmatprep.subr.bf16.mxu0 0
  %5359 = vmatpush1.bf16.msra.mxu0 %v5049
  %5360 = vmatprep.subr.bf16.mxu0 0
  %5361 = vmatpush1.bf16.msra.mxu0 %v5050
  %5362 = vmatprep.subr.bf16.mxu0 0
  %5363 = vmatpush1.bf16.msra.mxu0 %v5051
  %5364 = vmatprep.subr.bf16.mxu0 0
  %5365 = vmatpush1.bf16.msra.mxu0 %v5052
  %5366 = vmatprep.subr.bf16.mxu0 0
  %5367 = vmatpush1.bf16.msra.mxu0 %v5053
  %5368 = vmatprep.subr.bf16.mxu0 0
  %5369 = vmatpush1.bf16.msra.mxu0 %v5054
  %5370 = vmatprep.subr.bf16.mxu0 0
  %5371 = vmatpush1.bf16.msra.mxu0 %v5055
  %5372 = vmatprep.subr.bf16.mxu0 0
  %5373 = vmatpush1.bf16.msra.mxu0 %v5056
  %5374 = vmatprep.subr.bf16.mxu0 0
  %5375 = vmatpush1.bf16.msra.mxu0 %v5057
  %5376 = vmatprep.subr.bf16.mxu0 0
  %5377 = vmatpush1.bf16.msra.mxu0 %v5058
  %5378 = vmatprep.subr.bf16.mxu0 0
  %5379 = vmatpush1.bf16.msra.mxu0 %v5059
  %5380 = vmatprep.subr.bf16.mxu0 0
  %5381 = vmatpush1.bf16.msra.mxu0 %v5060
  %5382 = vmatprep.subr.bf16.mxu0 0
  %5383 = vmatpush1.bf16.msra.mxu0 %v5061
  %5384 = vmatprep.mubr.bf16.mxu0 %v4228
  %5385 = vmatmul.mubr.bf16.gmra.mrb[0].mxu0 %v4227
  %v5386 = vpop.f32.mrb[0].mxu0
  %v5387 = vadd.f32 %v5346, %v5386
  %v5388 = vpop.f32.mrb[0].mxu0
  %v5389 = vpop.f32.mrb[0].mxu0
  %v5390 = vadd.f32 %v5349, %v5389
  %v5391 = vpop.f32.mrb[0].mxu0
  %5392 = vdwg.mxu0
  %5393 = vmatprep.subr.bf16.mxu0 0
  %5394 = vmatpush1.bf16.msra.mxu0 %v5062
  %5395 = vmatprep.subr.bf16.mxu0 0
  %5396 = vmatpush1.bf16.msra.mxu0 %v5063
  %5397 = vmatprep.subr.bf16.mxu0 0
  %5398 = vmatpush1.bf16.msra.mxu0 %v5064
  %5399 = vmatprep.subr.bf16.mxu0 0
  %5400 = vmatpush1.bf16.msra.mxu0 %v5065
  %5401 = vmatprep.subr.bf16.mxu0 0
  %5402 = vmatpush1.bf16.msra.mxu0 %v5066
  %5403 = vmatprep.subr.bf16.mxu0 0
  %5404 = vmatpush1.bf16.msra.mxu0 %v5067
  %5405 = vmatprep.subr.bf16.mxu0 0
  %5406 = vmatpush1.bf16.msra.mxu0 %v5068
  %5407 = vmatprep.subr.bf16.mxu0 0
  %5408 = vmatpush1.bf16.msra.mxu0 %v5069
  %5409 = vmatprep.subr.bf16.mxu0 0
  %5410 = vmatpush1.bf16.msra.mxu0 %v5070
  %5411 = vmatprep.subr.bf16.mxu0 0
  %5412 = vmatpush1.bf16.msra.mxu0 %v5071
  %5413 = vmatprep.subr.bf16.mxu0 0
  %5414 = vmatpush1.bf16.msra.mxu0 %v5072
  %5415 = vmatprep.subr.bf16.mxu0 0
  %5416 = vmatpush1.bf16.msra.mxu0 %v5073
  %5417 = vmatprep.subr.bf16.mxu0 0
  %5418 = vmatpush1.bf16.msra.mxu0 %v5074
  %5419 = vmatprep.subr.bf16.mxu0 0
  %5420 = vmatpush1.bf16.msra.mxu0 %v5075
  %5421 = vmatprep.subr.bf16.mxu0 0
  %5422 = vmatpush1.bf16.msra.mxu0 %v5076
  %5423 = vmatprep.subr.bf16.mxu0 0
  %5424 = vmatpush1.bf16.msra.mxu0 %v5077
  %5425 = vmatprep.mubr.bf16.mxu0 %v4230
  %5426 = vmatmul.mubr.bf16.gmra.mrb[0].mxu0 %v4229
  %v5427 = vpop.f32.mrb[0].mxu0
  %v5428 = vadd.f32 %v5387, %v5427
  %v5429 = vpop.f32.mrb[0].mxu0
  %v5430 = vpop.f32.mrb[0].mxu0
  %v5431 = vadd.f32 %v5390, %v5430
  %v5432 = vpop.f32.mrb[0].mxu0
  %5433 = vdwg.mxu0
  %5434 = vmatprep.subr.bf16.mxu0 0
  %5435 = vmatpush1.bf16.msra.mxu0 %v5078
  %5436 = vmatprep.subr.bf16.mxu0 0
  %5437 = vmatpush1.bf16.msra.mxu0 %v5079
  %5438 = vmatprep.subr.bf16.mxu0 0
  %5439 = vmatpush1.bf16.msra.mxu0 %v5080
  %5440 = vmatprep.subr.bf16.mxu0 0
  %5441 = vmatpush1.bf16.msra.mxu0 %v5081
  %5442 = vmatprep.subr.bf16.mxu0 0
  %5443 = vmatpush1.bf16.msra.mxu0 %v5082
  %5444 = vmatprep.subr.bf16.mxu0 0
  %5445 = vmatpush1.bf16.msra.mxu0 %v5083
  %5446 = vmatprep.subr.bf16.mxu0 0
  %5447 = vmatpush1.bf16.msra.mxu0 %v5084
  %5448 = vmatprep.subr.bf16.mxu0 0
  %5449 = vmatpush1.bf16.msra.mxu0 %v5085
  %5450 = vmatprep.subr.bf16.mxu0 0
  %5451 = vmatpush1.bf16.msra.mxu0 %v5086
  %5452 = vmatprep.subr.bf16.mxu0 0
  %5453 = vmatpush1.bf16.msra.mxu0 %v5087
  %5454 = vmatprep.subr.bf16.mxu0 0
  %5455 = vmatpush1.bf16.msra.mxu0 %v5088
  %5456 = vmatprep.subr.bf16.mxu0 0
  %5457 = vmatpush1.bf16.msra.mxu0 %v5089
  %5458 = vmatprep.subr.bf16.mxu0 0
  %5459 = vmatpush1.bf16.msra.mxu0 %v5090
  %5460 = vmatprep.subr.bf16.mxu0 0
  %5461 = vmatpush1.bf16.msra.mxu0 %v5091
  %5462 = vmatprep.subr.bf16.mxu0 0
  %5463 = vmatpush1.bf16.msra.mxu0 %v5092
  %5464 = vmatprep.subr.bf16.mxu0 0
  %5465 = vmatpush1.bf16.msra.mxu0 %v5093
  %5466 = vmatprep.mubr.bf16.mxu0 %v4232
  %5467 = vmatmul.mubr.bf16.gmra.mrb[0].mxu0 %v4231
  %v5468 = vpop.f32.mrb[0].mxu0
  %v5469 = vadd.f32 %v5428, %v5468
  %v5470 = vpop.f32.mrb[0].mxu0
  %v5471 = vpop.f32.mrb[0].mxu0
  %v5472 = vadd.f32 %v5431, %v5471
  %v5473 = vpop.f32.mrb[0].mxu0
  %5474 = vdwg.mxu0
  %5475 = vmatprep.subr.bf16.mxu0 0
  %5476 = vmatpush1.bf16.msra.mxu0 %v5094
  %5477 = vmatprep.subr.bf16.mxu0 0
  %5478 = vmatpush1.bf16.msra.mxu0 %v5095
  %5479 = vmatprep.subr.bf16.mxu0 0
  %5480 = vmatpush1.bf16.msra.mxu0 %v5096
  %5481 = vmatprep.subr.bf16.mxu0 0
  %5482 = vmatpush1.bf16.msra.mxu0 %v5097
  %5483 = vmatprep.subr.bf16.mxu0 0
  %5484 = vmatpush1.bf16.msra.mxu0 %v5098
  %5485 = vmatprep.subr.bf16.mxu0 0
  %5486 = vmatpush1.bf16.msra.mxu0 %v5099
  %5487 = vmatprep.subr.bf16.mxu0 0
  %5488 = vmatpush1.bf16.msra.mxu0 %v5100
  %5489 = vmatprep.subr.bf16.mxu0 0
  %5490 = vmatpush1.bf16.msra.mxu0 %v5101
  %5491 = vmatprep.subr.bf16.mxu0 0
  %5492 = vmatpush1.bf16.msra.mxu0 %v5102
  %5493 = vmatprep.subr.bf16.mxu0 0
  %5494 = vmatpush1.bf16.msra.mxu0 %v5103
  %5495 = vmatprep.subr.bf16.mxu0 0
  %5496 = vmatpush1.bf16.msra.mxu0 %v5104
  %5497 = vmatprep.subr.bf16.mxu0 0
  %5498 = vmatpush1.bf16.msra.mxu0 %v5105
  %5499 = vmatprep.subr.bf16.mxu0 0
  %5500 = vmatpush1.bf16.msra.mxu0 %v5106
  %5501 = vmatprep.subr.bf16.mxu0 0
  %5502 = vmatpush1.bf16.msra.mxu0 %v5107
  %5503 = vmatprep.subr.bf16.mxu0 0
  %5504 = vmatpush1.bf16.msra.mxu0 %v5108
  %5505 = vmatprep.subr.bf16.mxu0 0
  %5506 = vmatpush1.bf16.msra.mxu0 %v5109
  %5507 = vmatprep.mubr.bf16.mxu0 %v4234
  %5508 = vmatmul.mubr.bf16.gmra.mrb[0].mxu0 %v4233
  %v5509 = vpop.f32.mrb[0].mxu0
  %v5510 = vadd.f32 %v5469, %v5509
  %v5511 = vpop.f32.mrb[0].mxu0
  %v5512 = vpop.f32.mrb[0].mxu0
  %v5513 = vadd.f32 %v5472, %v5512
  %v5514 = vpop.f32.mrb[0].mxu0
  %5515 = vdwg.mxu0
  %5516 = vmatprep.subr.bf16.mxu0 0
  %5517 = vmatpush1.bf16.msra.mxu0 %v5110
  %5518 = vmatprep.subr.bf16.mxu0 0
  %5519 = vmatpush1.bf16.msra.mxu0 %v5111
  %5520 = vmatprep.subr.bf16.mxu0 0
  %5521 = vmatpush1.bf16.msra.mxu0 %v5112
  %5522 = vmatprep.subr.bf16.mxu0 0
  %5523 = vmatpush1.bf16.msra.mxu0 %v5113
  %5524 = vmatprep.subr.bf16.mxu0 0
  %5525 = vmatpush1.bf16.msra.mxu0 %v5114
  %5526 = vmatprep.subr.bf16.mxu0 0
  %5527 = vmatpush1.bf16.msra.mxu0 %v5115
  %5528 = vmatprep.subr.bf16.mxu0 0
  %5529 = vmatpush1.bf16.msra.mxu0 %v5116
  %5530 = vmatprep.subr.bf16.mxu0 0
  %5531 = vmatpush1.bf16.msra.mxu0 %v5117
  %5532 = vmatprep.subr.bf16.mxu0 0
  %5533 = vmatpush1.bf16.msra.mxu0 %v5118
  %5534 = vmatprep.subr.bf16.mxu0 0
  %5535 = vmatpush1.bf16.msra.mxu0 %v5119
  %5536 = vmatprep.subr.bf16.mxu0 0
  %5537 = vmatpush1.bf16.msra.mxu0 %v5120
  %5538 = vmatprep.subr.bf16.mxu0 0
  %5539 = vmatpush1.bf16.msra.mxu0 %v5121
  %5540 = vmatprep.subr.bf16.mxu0 0
  %5541 = vmatpush1.bf16.msra.mxu0 %v5122
  %5542 = vmatprep.subr.bf16.mxu0 0
  %5543 = vmatpush1.bf16.msra.mxu0 %v5123
  %5544 = vmatprep.subr.bf16.mxu0 0
  %5545 = vmatpush1.bf16.msra.mxu0 %v5124
  %5546 = vmatprep.subr.bf16.mxu0 0
  %5547 = vmatpush1.bf16.msra.mxu0 %v5125
  %5548 = vmatprep.mubr.bf16.mxu0 %v4236
  %5549 = vmatmul.mubr.bf16.gmra.mrb[0].mxu0 %v4235
  %v5550 = vpop.f32.mrb[0].mxu0
  %v5551 = vadd.f32 %v5510, %v5550
  %v5552 = vpop.f32.mrb[0].mxu0
  %v5553 = vpop.f32.mrb[0].mxu0
  %v5554 = vadd.f32 %v5513, %v5553
  %v5555 = vpop.f32.mrb[0].mxu0
  %5556 = vdwg.mxu0
  %5557 = vmatprep.subr.bf16.mxu0 0
  %5558 = vmatpush1.bf16.msra.mxu0 %v5126
  %5559 = vmatprep.subr.bf16.mxu0 0
  %5560 = vmatpush1.bf16.msra.mxu0 %v5127
  %5561 = vmatprep.subr.bf16.mxu0 0
  %5562 = vmatpush1.bf16.msra.mxu0 %v5128
  %5563 = vmatprep.subr.bf16.mxu0 0
  %5564 = vmatpush1.bf16.msra.mxu0 %v5129
  %5565 = vmatprep.subr.bf16.mxu0 0
  %5566 = vmatpush1.bf16.msra.mxu0 %v5130
  %5567 = vmatprep.subr.bf16.mxu0 0
  %5568 = vmatpush1.bf16.msra.mxu0 %v5131
  %5569 = vmatprep.subr.bf16.mxu0 0
  %5570 = vmatpush1.bf16.msra.mxu0 %v5132
  %5571 = vmatprep.subr.bf16.mxu0 0
  %5572 = vmatpush1.bf16.msra.mxu0 %v5133
  %5573 = vmatprep.subr.bf16.mxu0 0
  %5574 = vmatpush1.bf16.msra.mxu0 %v5134
  %5575 = vmatprep.subr.bf16.mxu0 0
  %5576 = vmatpush1.bf16.msra.mxu0 %v5135
  %5577 = vmatprep.subr.bf16.mxu0 0
  %5578 = vmatpush1.bf16.msra.mxu0 %v5136
  %5579 = vmatprep.subr.bf16.mxu0 0
  %5580 = vmatpush1.bf16.msra.mxu0 %v5137
  %5581 = vmatprep.subr.bf16.mxu0 0
  %5582 = vmatpush1.bf16.msra.mxu0 %v5138
  %5583 = vmatprep.subr.bf16.mxu0 0
  %5584 = vmatpush1.bf16.msra.mxu0 %v5139
  %5585 = vmatprep.subr.bf16.mxu0 0
  %5586 = vmatpush1.bf16.msra.mxu0 %v5140
  %5587 = vmatprep.subr.bf16.mxu0 0
  %5588 = vmatpush1.bf16.msra.mxu0 %v5141
  %5589 = vmatprep.mubr.bf16.mxu0 %v4238
  %5590 = vmatmul.mubr.bf16.gmra.mrb[0].mxu0 %v4237
  %v5591 = vpop.f32.mrb[0].mxu0
  %v5592 = vadd.f32 %v5551, %v5591
  %v5593 = vpop.f32.mrb[0].mxu0
  %v5594 = vpop.f32.mrb[0].mxu0
  %v5595 = vadd.f32 %v5554, %v5594
  %v5596 = vpop.f32.mrb[0].mxu0
  %5597 = vdwg.mxu0
  %v5598 = vmax.f32 %v5592, 0.0
  %v5599 = vmax.f32 %v5595, 0.0
  %5600 = vst [vmem:[%s7] sm:$0xff] %v5598
  %5601 = vst [vmem:[%s7 + $0x8] sm:$0xff] %v5599
  // Predicated region
  $region30: #{encoder2_forward.1} parent=0 // pred_check
    _
  $region31: #{encoder2_forward.1} parent=0 // pred_check_branch
    %5603 = sbr.rel (0) target = $region33
  $region32: #{encoder2_forward.1} parent=0 // pred_region
    _
  $region33: #{encoder2_forward.1} parent=0 // pred_fallthru
    _
  // Predicated region
  $region34: #{encoder2_forward.1} parent=0 // pred_check
    _
  $region35: #{encoder2_forward.1} parent=0 // pred_check_branch
    %5605 = sbr.rel (0) target = $region37
  $region36: #{encoder2_forward.1} parent=0 // pred_region
    _
  $region37: #{encoder2_forward.1} parent=0 // pred_fallthru
    _

</llo_original>
